<compile_context>
chip_gen: v5e
topology: v5e:2x2
jax: 0.10.0
libtpu: 0.0.40
codegen_flags: <defaults>
</compile_context>

<pallas_src>
import functools

import jax
import jax.numpy as jnp
from jax.experimental import pallas as pl
from jax.experimental.pallas import tpu as pltpu

D_MODEL = 512
D_FF = 2048


def _ffn_kernel(x_ref, w1_ref, b1_ref, w2_ref, b2_ref, o_ref):
    """One token tile of y = relu(x @ W1 + b1) @ W2 + b2 (full d_ff in one step)."""
    # In-kernel cast of the activation tile to the matmul dtype (bf16 fast path);
    # avoids a separate wrapper-side conversion pass over x in HBM.
    x = x_ref[...].astype(w1_ref.dtype)
    # First GEMM (MXU) over the full d_ff; bias-add + ReLU in f32 on the VPU.
    h = jnp.dot(x, w1_ref[...], preferred_element_type=jnp.float32)
    h = jnp.maximum(h + b1_ref[...], 0.0)
    # Second GEMM: cast activations to the weight dtype, accumulate in f32,
    # add output bias, write a lane-dense (d_model = 512 wide) output tile.
    o = jnp.dot(h.astype(w2_ref.dtype), w2_ref[...],
                preferred_element_type=jnp.float32)
    o_ref[...] = (o + b2_ref[...]).astype(o_ref.dtype)


def _round_up(n, m):
    return ((n + m - 1) // m) * m


@functools.partial(jax.jit, static_argnames=("tm", "compute_dtype"))
def position_wise_feed_forward(x, w1, b1, w2, b2, *, tm=512,
                               compute_dtype=jnp.bfloat16):
    """x: (batch, seq, d_model) -> (batch, seq, d_model)."""
    batch, seq, d_model = x.shape
    d_ff = w1.shape[1]
    tokens = batch * seq

    x2d = x.reshape(tokens, d_model)

    # Shrink the token tile for tiny inputs; keep it a multiple of 8 (f32 sublane).
    tm_eff = min(tm, _round_up(tokens, 8))
    tokens_padded = _round_up(tokens, tm_eff)
    if tokens_padded != tokens:
        x2d = jnp.pad(x2d, ((0, tokens_padded - tokens), (0, 0)))

    # bf16 weights -> full-rate MXU and halved resident-weight DMA; biases stay
    # f32 so the elementwise bias+ReLU path is f32 (also keeps v5e's VPU happy).
    w1c = w1.astype(compute_dtype)
    w2c = w2.astype(compute_dtype)
    b1_2d = b1.reshape(1, d_ff).astype(jnp.float32)
    b2_2d = b2.reshape(1, d_model).astype(jnp.float32)

    grid = (tokens_padded // tm_eff,)

    out2d = pl.pallas_call(
        _ffn_kernel,
        out_shape=jax.ShapeDtypeStruct((tokens_padded, d_model), x.dtype),
        grid_spec=pltpu.PrefetchScalarGridSpec(
            num_scalar_prefetch=0,
            grid=grid,
            in_specs=[
                pl.BlockSpec((tm_eff, d_model), lambda i: (i, 0)),  # x tile (orig dtype)
                pl.BlockSpec((d_model, d_ff),   lambda i: (0, 0)),  # W1 (VMEM-resident)
                pl.BlockSpec((1, d_ff),         lambda i: (0, 0)),  # b1 (resident)
                pl.BlockSpec((d_ff, d_model),   lambda i: (0, 0)),  # W2 (VMEM-resident)
                pl.BlockSpec((1, d_model),      lambda i: (0, 0)),  # b2 (resident)
            ],
            out_specs=pl.BlockSpec((tm_eff, d_model), lambda i: (i, 0)),
        ),
        compiler_params=pltpu.CompilerParams(
            dimension_semantics=("parallel",),          # token tiles shard across TCs
            vmem_limit_bytes=40 * 1024 * 1024,          # safe on v7x's 64 MiB VMEM
        ),
    )(x2d, w1c, b1_2d, w2c, b2_2d)

    return out2d[:tokens].reshape(batch, seq, d_model)


def _reference(x, w1, b1, w2, b2, compute_dtype=jnp.float32):
    """Pure-JAX reference with the same operand precision as the kernel."""
    h = jnp.einsum("bsd,df->bsf", x.astype(compute_dtype), w1.astype(compute_dtype),
                   preferred_element_type=jnp.float32)
    h = jnp.maximum(h + b1.astype(jnp.float32), 0.0)
    o = jnp.einsum("bsf,fd->bsd", h.astype(compute_dtype), w2.astype(compute_dtype),
                   preferred_element_type=jnp.float32)
    return o + b2.astype(jnp.float32)


if __name__ == "__main__":
    key = jax.random.PRNGKey(0)
    k_x, k_w1, k_b1, k_w2, k_b2 = jax.random.split(key, 5)

    batch, seq = 2, 8  # small token count; feature dims follow the module

    x = jax.random.normal(k_x, (batch, seq, D_MODEL), dtype=jnp.float32)
    # Deterministic synthetic parameters (shapes from nn.Linear in __init__).
    w1 = jax.random.normal(k_w1, (D_MODEL, D_FF), dtype=jnp.float32) * (1.0 / D_MODEL**0.5)
    b1 = jax.random.normal(k_b1, (D_FF,), dtype=jnp.float32) * 0.01
    w2 = jax.random.normal(k_w2, (D_FF, D_MODEL), dtype=jnp.float32) * (1.0 / D_FF**0.5)
    b2 = jax.random.normal(k_b2, (D_MODEL,), dtype=jnp.float32) * 0.01

    y = position_wise_feed_forward(x, w1, b1, w2, b2)
    y = jax.block_until_ready(y)
    assert y.shape == (batch, seq, D_MODEL)

    # Exactness check vs. a reference using the same bf16 operands / f32 accumulation.
    y_ref_bf16 = _reference(x, w1, b1, w2, b2, compute_dtype=jnp.bfloat16)
    assert jnp.allclose(y, y_ref_bf16, atol=1e-2, rtol=1e-2), "mismatch vs bf16 reference"

    # Sanity check vs. the full-f32 module semantics (loose tol for bf16 quantization).
    y_ref_f32 = _reference(x, w1, b1, w2, b2, compute_dtype=jnp.float32)
    assert jnp.allclose(y, y_ref_f32, atol=6e-2, rtol=6e-2), "mismatch vs f32 reference"

    print("KERNEL_OK")
</pallas_src>

<mosaic_0001>
module attributes {stable_mosaic.version = 11 : i64} {
  func.func @_ffn_kernel(%arg0: i32, %arg1: memref<16x512xf32, #tpu.memory_space<vmem>>, %arg2: memref<512x2048xbf16, #tpu.memory_space<vmem>>, %arg3: memref<1x2048xf32, #tpu.memory_space<vmem>>, %arg4: memref<2048x512xbf16, #tpu.memory_space<vmem>>, %arg5: memref<1x512xf32, #tpu.memory_space<vmem>>, %arg6: memref<16x512xf32, #tpu.memory_space<vmem>>) attributes {dimension_semantics = [#tpu.dimension_semantics<parallel>], iteration_bounds = array<i64: 1>, scalar_prefetch = 0 : i64, scratch_operands = 0 : i64, tpu.core_type = #tpu.core_type<tc>, window_params = [{transform_indices = @transform_0, window_bounds = array<i64: 16, 512>}, {pipeline_mode = #tpu.pipeline_mode<synchronous>, transform_indices = @transform_1, window_bounds = array<i64: 512, 2048>}, {pipeline_mode = #tpu.pipeline_mode<synchronous>, transform_indices = @transform_2, window_bounds = array<i64: 1, 2048>}, {pipeline_mode = #tpu.pipeline_mode<synchronous>, transform_indices = @transform_3, window_bounds = array<i64: 2048, 512>}, {pipeline_mode = #tpu.pipeline_mode<synchronous>, transform_indices = @transform_4, window_bounds = array<i64: 1, 512>}, {transform_indices = @transform_5, window_bounds = array<i64: 16, 512>}]} {
    %c0 = arith.constant 0 : index
    %c0_0 = arith.constant 0 : index
    %0 = vector.load %arg1[%c0, %c0_0] : memref<16x512xf32, #tpu.memory_space<vmem>>, vector<16x512xf32>
    %1 = arith.truncf %0 : vector<16x512xf32> to vector<16x512xbf16>
    %c0_1 = arith.constant 0 : index
    %c0_2 = arith.constant 0 : index
    %2 = vector.load %arg2[%c0_1, %c0_2] : memref<512x2048xbf16, #tpu.memory_space<vmem>>, vector<512x2048xbf16>
    %cst = arith.constant dense<0.000000e+00> : vector<16x2048xf32>
    %3 = tpu.matmul %1, %2, %cst {dimension_numbers = #tpu.dot_dimension_numbers<[1], [0], [0], [1], [0, 0, 1, 1], [], []>} : vector<16x512xbf16>, vector<512x2048xbf16>, vector<16x2048xf32> -> vector<16x2048xf32>
    %c0_3 = arith.constant 0 : index
    %c0_4 = arith.constant 0 : index
    %4 = vector.load %arg3[%c0_3, %c0_4] : memref<1x2048xf32, #tpu.memory_space<vmem>>, vector<1x2048xf32>
    %5 = vector.broadcast %4 : vector<1x2048xf32> to vector<16x2048xf32>
    %6 = arith.addf %3, %5 : vector<16x2048xf32>
    %cst_5 = arith.constant 0.000000e+00 : f32
    %7 = vector.broadcast %cst_5 : f32 to vector<16x2048xf32>
    %8 = arith.maximumf %6, %7 : vector<16x2048xf32>
    %9 = arith.truncf %8 : vector<16x2048xf32> to vector<16x2048xbf16>
    %c0_6 = arith.constant 0 : index
    %c0_7 = arith.constant 0 : index
    %10 = vector.load %arg4[%c0_6, %c0_7] : memref<2048x512xbf16, #tpu.memory_space<vmem>>, vector<2048x512xbf16>
    %cst_8 = arith.constant dense<0.000000e+00> : vector<16x512xf32>
    %11 = tpu.matmul %9, %10, %cst_8 {dimension_numbers = #tpu.dot_dimension_numbers<[1], [0], [0], [1], [0, 0, 1, 1], [], []>} : vector<16x2048xbf16>, vector<2048x512xbf16>, vector<16x512xf32> -> vector<16x512xf32>
    %c0_9 = arith.constant 0 : index
    %c0_10 = arith.constant 0 : index
    %12 = vector.load %arg5[%c0_9, %c0_10] : memref<1x512xf32, #tpu.memory_space<vmem>>, vector<1x512xf32>
    %13 = vector.broadcast %12 : vector<1x512xf32> to vector<16x512xf32>
    %14 = arith.addf %11, %13 : vector<16x512xf32>
    %c0_11 = arith.constant 0 : index
    %c0_12 = arith.constant 0 : index
    %15 = vector.load %arg6[%c0_11, %c0_12] : memref<16x512xf32, #tpu.memory_space<vmem>>, vector<16x512xf32>
    tpu.vector_store %arg6[%c0_11, %c0_12], %14 {strides = array<i32>} : memref<16x512xf32, #tpu.memory_space<vmem>>, vector<16x512xf32>,
    return
  }
  func.func @transform_0(%arg0: i32) -> (i32, i32) {
    %c0_i32 = arith.constant 0 : i32
    %c0_i32_0 = arith.constant 0 : i32
    return %arg0, %c0_i32 : i32, i32
  }
  func.func @transform_1(%arg0: i32) -> (i32, i32) {
    %c0_i32 = arith.constant 0 : i32
    %c0_i32_0 = arith.constant 0 : i32
    %c0_i32_1 = arith.constant 0 : i32
    return %c0_i32, %c0_i32_0 : i32, i32
  }
  func.func @transform_2(%arg0: i32) -> (i32, i32) {
    %c0_i32 = arith.constant 0 : i32
    %c0_i32_0 = arith.constant 0 : i32
    %c0_i32_1 = arith.constant 0 : i32
    return %c0_i32, %c0_i32_0 : i32, i32
  }
  func.func @transform_3(%arg0: i32) -> (i32, i32) {
    %c0_i32 = arith.constant 0 : i32
    %c0_i32_0 = arith.constant 0 : i32
    %c0_i32_1 = arith.constant 0 : i32
    return %c0_i32, %c0_i32_0 : i32, i32
  }
  func.func @transform_4(%arg0: i32) -> (i32, i32) {
    %c0_i32 = arith.constant 0 : i32
    %c0_i32_0 = arith.constant 0 : i32
    %c0_i32_1 = arith.constant 0 : i32
    return %c0_i32, %c0_i32_0 : i32, i32
  }
  func.func @transform_5(%arg0: i32) -> (i32, i32) {
    %c0_i32 = arith.constant 0 : i32
    %c0_i32_0 = arith.constant 0 : i32
    return %arg0, %c0_i32 : i32, i32
  }
}

</mosaic_0001>

<llo_original>
// kernel: position_wise_feed_forward.1
$region0: #{position_wise_feed_forward.1}
  #allocation0 [shape = 'u32[]', space=smem, size = 0x4, offset = 0x4, fixed_abs, tag = 'smem constant byte address 0x4 - core index']
  #allocation1 [shape = 'u32[72,128]{1,0:T(1,128)}', space=vmem, size = 0x9000, scoped, tag = 'internal scratch']
  %s0 = inlined_call_operand.vmem [shape: f32[16,512], index: 0, kind: input, shape index: {}]
  %s1 = inlined_call_operand.vmem [shape: bf16[512,2048], index: 1, kind: input, shape index: {}]
  %s2 = inlined_call_operand.vmem [shape: f32[1,2048], index: 2, kind: input, shape index: {}]
  %s3 = inlined_call_operand.vmem [shape: bf16[2048,512], index: 3, kind: input, shape index: {}]
  %s4 = inlined_call_operand.vmem [shape: f32[1,512], index: 4, kind: input, shape index: {}]
  %s5 = inlined_call_operand.hbm [shape: f32[16,512], index: 5, kind: output, shape index: {}]
  %s6 = sld [smem:[#allocation0]]
  $region30: #{position_wise_feed_forward.1} parent=0
    _
  %s8 = ssub.s32 1, %s6
  %s9 = scalar_select 0, %s8, %s6
  $region1: #{position_wise_feed_forward.1} parent=0
    #allocation2 [shape = 'u8[32768]{0}', space=vmem, size = 0x8000, scoped, tag = 'output window, operand 0, single buffered']
    #allocation3 [shape = 's32[1]{0}', space=sflag, size = 0x4, scoped, tag = 'scoped memory for position_wise_feed_forward.1']
    %10 = vsyncpa [#allocation3], 0
    // Predicated region
    $region2: #{position_wise_feed_forward.1} parent=1 // pred_check
      _
    $region3: #{position_wise_feed_forward.1} parent=1 // pred_check_branch
      %12 = sbr.rel (0) target = $region5
    $region4: #{position_wise_feed_forward.1} parent=1 // pred_region
      _
    $region5: #{position_wise_feed_forward.1} parent=1 // pred_fallthru
      _
    // Predicated region
    $region6: #{position_wise_feed_forward.1} parent=1 // pred_check
      _
    $region7: #{position_wise_feed_forward.1} parent=1 // pred_check_branch
      %14 = sbr.rel (0) target = $region9
    $region8: #{position_wise_feed_forward.1} parent=1 // pred_region
      _
    $region9: #{position_wise_feed_forward.1} parent=1 // pred_fallthru
      _
    // Predicated region
    $region10: #{position_wise_feed_forward.1} parent=1 // pred_check
      _
    $region11: #{position_wise_feed_forward.1} parent=1 // pred_check_branch
      %16 = sbr.rel (0) target = $region13
    $region12: #{position_wise_feed_forward.1} parent=1 // pred_region
      _
    $region13: #{position_wise_feed_forward.1} parent=1 // pred_fallthru
      _
    // Predicated region
    $region14: #{position_wise_feed_forward.1} parent=1 // pred_check
      _
    $region15: #{position_wise_feed_forward.1} parent=1 // pred_check_branch
      %18 = sbr.rel (0) target = $region17
    $region16: #{position_wise_feed_forward.1} parent=1 // pred_region
      _
    $region17: #{position_wise_feed_forward.1} parent=1 // pred_fallthru
      _
    // Predicated region
    $region18: #{position_wise_feed_forward.1} parent=1 // pred_check
      _
    $region19: #{position_wise_feed_forward.1} parent=1 // pred_check_branch
      %20 = sbr.rel (0) target = $region21
    $region20: #{position_wise_feed_forward.1} parent=1 // pred_region
      _
    $region21: #{position_wise_feed_forward.1} parent=1 // pred_fallthru
      _
    %v21 = vld [vmem:[%s0] sm:$0xff]
    %v22 = vld [vmem:[%s0 + $0x8] sm:$0xff]
    %v23 = vld [vmem:[%s0 + $0x10] sm:$0xff]
    %v24 = vld [vmem:[%s0 + $0x18] sm:$0xff]
    %v25 = vld [vmem:[%s0 + $0x20] sm:$0xff]
    %v26 = vld [vmem:[%s0 + $0x28] sm:$0xff]
    %v27 = vld [vmem:[%s0 + $0x30] sm:$0xff]
    %v28 = vld [vmem:[%s0 + $0x38] sm:$0xff]
    %v29 = vpack.c.bf16 %v25, %v21
    %v30 = vpack.c.bf16 %v26, %v22
    %v31 = vpack.c.bf16 %v27, %v23
    %v32 = vpack.c.bf16 %v28, %v24
    %v33 = vld [vmem:[%s1] sm:$0xff]
    %v34 = vld [vmem:[%s1 + $0x8] sm:$0xff]
    %v35 = vld [vmem:[%s1 + $0x10] sm:$0xff]
    %v36 = vld [vmem:[%s1 + $0x18] sm:$0xff]
    %v37 = vld [vmem:[%s1 + $0x20] sm:$0xff]
    %v38 = vld [vmem:[%s1 + $0x28] sm:$0xff]
    %v39 = vld [vmem:[%s1 + $0x30] sm:$0xff]
    %v40 = vld [vmem:[%s1 + $0x38] sm:$0xff]
    %v41 = vld [vmem:[%s1 + $0x40] sm:$0xff]
    %v42 = vld [vmem:[%s1 + $0x48] sm:$0xff]
    %v43 = vld [vmem:[%s1 + $0x50] sm:$0xff]
    %v44 = vld [vmem:[%s1 + $0x58] sm:$0xff]
    %v45 = vld [vmem:[%s1 + $0x60] sm:$0xff]
    %v46 = vld [vmem:[%s1 + $0x68] sm:$0xff]
    %v47 = vld [vmem:[%s1 + $0x70] sm:$0xff]
    %v48 = vld [vmem:[%s1 + $0x78] sm:$0xff]
    %v49 = vld [vmem:[%s1 + $0x80] sm:$0xff]
    %v50 = vld [vmem:[%s1 + $0x88] sm:$0xff]
    %v51 = vld [vmem:[%s1 + $0x90] sm:$0xff]
    %v52 = vld [vmem:[%s1 + $0x98] sm:$0xff]
    %v53 = vld [vmem:[%s1 + $0xa0] sm:$0xff]
    %v54 = vld [vmem:[%s1 + $0xa8] sm:$0xff]
    %v55 = vld [vmem:[%s1 + $0xb0] sm:$0xff]
    %v56 = vld [vmem:[%s1 + $0xb8] sm:$0xff]
    %v57 = vld [vmem:[%s1 + $0xc0] sm:$0xff]
    %v58 = vld [vmem:[%s1 + $0xc8] sm:$0xff]
    %v59 = vld [vmem:[%s1 + $0xd0] sm:$0xff]
    %v60 = vld [vmem:[%s1 + $0xd8] sm:$0xff]
    %v61 = vld [vmem:[%s1 + $0xe0] sm:$0xff]
    %v62 = vld [vmem:[%s1 + $0xe8] sm:$0xff]
    %v63 = vld [vmem:[%s1 + $0xf0] sm:$0xff]
    %v64 = vld [vmem:[%s1 + $0xf8] sm:$0xff]
    %v65 = vld [vmem:[%s1 + $0x100] sm:$0xff]
    %v66 = vld [vmem:[%s1 + $0x108] sm:$0xff]
    %v67 = vld [vmem:[%s1 + $0x110] sm:$0xff]
    %v68 = vld [vmem:[%s1 + $0x118] sm:$0xff]
    %v69 = vld [vmem:[%s1 + $0x120] sm:$0xff]
    %v70 = vld [vmem:[%s1 + $0x128] sm:$0xff]
    %v71 = vld [vmem:[%s1 + $0x130] sm:$0xff]
    %v72 = vld [vmem:[%s1 + $0x138] sm:$0xff]
    %v73 = vld [vmem:[%s1 + $0x140] sm:$0xff]
    %v74 = vld [vmem:[%s1 + $0x148] sm:$0xff]
    %v75 = vld [vmem:[%s1 + $0x150] sm:$0xff]
    %v76 = vld [vmem:[%s1 + $0x158] sm:$0xff]
    %v77 = vld [vmem:[%s1 + $0x160] sm:$0xff]
    %v78 = vld [vmem:[%s1 + $0x168] sm:$0xff]
    %v79 = vld [vmem:[%s1 + $0x170] sm:$0xff]
    %v80 = vld [vmem:[%s1 + $0x178] sm:$0xff]
    %v81 = vld [vmem:[%s1 + $0x180] sm:$0xff]
    %v82 = vld [vmem:[%s1 + $0x188] sm:$0xff]
    %v83 = vld [vmem:[%s1 + $0x190] sm:$0xff]
    %v84 = vld [vmem:[%s1 + $0x198] sm:$0xff]
    %v85 = vld [vmem:[%s1 + $0x1a0] sm:$0xff]
    %v86 = vld [vmem:[%s1 + $0x1a8] sm:$0xff]
    %v87 = vld [vmem:[%s1 + $0x1b0] sm:$0xff]
    %v88 = vld [vmem:[%s1 + $0x1b8] sm:$0xff]
    %v89 = vld [vmem:[%s1 + $0x1c0] sm:$0xff]
    %v90 = vld [vmem:[%s1 + $0x1c8] sm:$0xff]
    %v91 = vld [vmem:[%s1 + $0x1d0] sm:$0xff]
    %v92 = vld [vmem:[%s1 + $0x1d8] sm:$0xff]
    %v93 = vld [vmem:[%s1 + $0x1e0] sm:$0xff]
    %v94 = vld [vmem:[%s1 + $0x1e8] sm:$0xff]
    %v95 = vld [vmem:[%s1 + $0x1f0] sm:$0xff]
    %v96 = vld [vmem:[%s1 + $0x1f8] sm:$0xff]
    %v97 = vld [vmem:[%s1 + $0x200] sm:$0xff]
    %v98 = vld [vmem:[%s1 + $0x208] sm:$0xff]
    %v99 = vld [vmem:[%s1 + $0x210] sm:$0xff]
    %v100 = vld [vmem:[%s1 + $0x218] sm:$0xff]
    %v101 = vld [vmem:[%s1 + $0x220] sm:$0xff]
    %v102 = vld [vmem:[%s1 + $0x228] sm:$0xff]
    %v103 = vld [vmem:[%s1 + $0x230] sm:$0xff]
    %v104 = vld [vmem:[%s1 + $0x238] sm:$0xff]
    %v105 = vld [vmem:[%s1 + $0x240] sm:$0xff]
    %v106 = vld [vmem:[%s1 + $0x248] sm:$0xff]
    %v107 = vld [vmem:[%s1 + $0x250] sm:$0xff]
    %v108 = vld [vmem:[%s1 + $0x258] sm:$0xff]
    %v109 = vld [vmem:[%s1 + $0x260] sm:$0xff]
    %v110 = vld [vmem:[%s1 + $0x268] sm:$0xff]
    %v111 = vld [vmem:[%s1 + $0x270] sm:$0xff]
    %v112 = vld [vmem:[%s1 + $0x278] sm:$0xff]
    %v113 = vld [vmem:[%s1 + $0x280] sm:$0xff]
    %v114 = vld [vmem:[%s1 + $0x288] sm:$0xff]
    %v115 = vld [vmem:[%s1 + $0x290] sm:$0xff]
    %v116 = vld [vmem:[%s1 + $0x298] sm:$0xff]
    %v117 = vld [vmem:[%s1 + $0x2a0] sm:$0xff]
    %v118 = vld [vmem:[%s1 + $0x2a8] sm:$0xff]
    %v119 = vld [vmem:[%s1 + $0x2b0] sm:$0xff]
    %v120 = vld [vmem:[%s1 + $0x2b8] sm:$0xff]
    %v121 = vld [vmem:[%s1 + $0x2c0] sm:$0xff]
    %v122 = vld [vmem:[%s1 + $0x2c8] sm:$0xff]
    %v123 = vld [vmem:[%s1 + $0x2d0] sm:$0xff]
    %v124 = vld [vmem:[%s1 + $0x2d8] sm:$0xff]
    %v125 = vld [vmem:[%s1 + $0x2e0] sm:$0xff]
    %v126 = vld [vmem:[%s1 + $0x2e8] sm:$0xff]
    %v127 = vld [vmem:[%s1 + $0x2f0] sm:$0xff]
    %v128 = vld [vmem:[%s1 + $0x2f8] sm:$0xff]
    %v129 = vld [vmem:[%s1 + $0x300] sm:$0xff]
    %v130 = vld [vmem:[%s1 + $0x308] sm:$0xff]
    %v131 = vld [vmem:[%s1 + $0x310] sm:$0xff]
    %v132 = vld [vmem:[%s1 + $0x318] sm:$0xff]
    %v133 = vld [vmem:[%s1 + $0x320] sm:$0xff]
    %v134 = vld [vmem:[%s1 + $0x328] sm:$0xff]
    %v135 = vld [vmem:[%s1 + $0x330] sm:$0xff]
    %v136 = vld [vmem:[%s1 + $0x338] sm:$0xff]
    %v137 = vld [vmem:[%s1 + $0x340] sm:$0xff]
    %v138 = vld [vmem:[%s1 + $0x348] sm:$0xff]
    %v139 = vld [vmem:[%s1 + $0x350] sm:$0xff]
    %v140 = vld [vmem:[%s1 + $0x358] sm:$0xff]
    %v141 = vld [vmem:[%s1 + $0x360] sm:$0xff]
    %v142 = vld [vmem:[%s1 + $0x368] sm:$0xff]
    %v143 = vld [vmem:[%s1 + $0x370] sm:$0xff]
    %v144 = vld [vmem:[%s1 + $0x378] sm:$0xff]
    %v145 = vld [vmem:[%s1 + $0x380] sm:$0xff]
    %v146 = vld [vmem:[%s1 + $0x388] sm:$0xff]
    %v147 = vld [vmem:[%s1 + $0x390] sm:$0xff]
    %v148 = vld [vmem:[%s1 + $0x398] sm:$0xff]
    %v149 = vld [vmem:[%s1 + $0x3a0] sm:$0xff]
    %v150 = vld [vmem:[%s1 + $0x3a8] sm:$0xff]
    %v151 = vld [vmem:[%s1 + $0x3b0] sm:$0xff]
    %v152 = vld [vmem:[%s1 + $0x3b8] sm:$0xff]
    %v153 = vld [vmem:[%s1 + $0x3c0] sm:$0xff]
    %v154 = vld [vmem:[%s1 + $0x3c8] sm:$0xff]
    %v155 = vld [vmem:[%s1 + $0x3d0] sm:$0xff]
    %v156 = vld [vmem:[%s1 + $0x3d8] sm:$0xff]
    %v157 = vld [vmem:[%s1 + $0x3e0] sm:$0xff]
    %v158 = vld [vmem:[%s1 + $0x3e8] sm:$0xff]
    %v159 = vld [vmem:[%s1 + $0x3f0] sm:$0xff]
    %v160 = vld [vmem:[%s1 + $0x3f8] sm:$0xff]
    %v161 = vld [vmem:[%s1 + $0x400] sm:$0xff]
    %v162 = vld [vmem:[%s1 + $0x408] sm:$0xff]
    %v163 = vld [vmem:[%s1 + $0x410] sm:$0xff]
    %v164 = vld [vmem:[%s1 + $0x418] sm:$0xff]
    %v165 = vld [vmem:[%s1 + $0x420] sm:$0xff]
    %v166 = vld [vmem:[%s1 + $0x428] sm:$0xff]
    %v167 = vld [vmem:[%s1 + $0x430] sm:$0xff]
    %v168 = vld [vmem:[%s1 + $0x438] sm:$0xff]
    %v169 = vld [vmem:[%s1 + $0x440] sm:$0xff]
    %v170 = vld [vmem:[%s1 + $0x448] sm:$0xff]
    %v171 = vld [vmem:[%s1 + $0x450] sm:$0xff]
    %v172 = vld [vmem:[%s1 + $0x458] sm:$0xff]
    %v173 = vld [vmem:[%s1 + $0x460] sm:$0xff]
    %v174 = vld [vmem:[%s1 + $0x468] sm:$0xff]
    %v175 = vld [vmem:[%s1 + $0x470] sm:$0xff]
    %v176 = vld [vmem:[%s1 + $0x478] sm:$0xff]
    %v177 = vld [vmem:[%s1 + $0x480] sm:$0xff]
    %v178 = vld [vmem:[%s1 + $0x488] sm:$0xff]
    %v179 = vld [vmem:[%s1 + $0x490] sm:$0xff]
    %v180 = vld [vmem:[%s1 + $0x498] sm:$0xff]
    %v181 = vld [vmem:[%s1 + $0x4a0] sm:$0xff]
    %v182 = vld [vmem:[%s1 + $0x4a8] sm:$0xff]
    %v183 = vld [vmem:[%s1 + $0x4b0] sm:$0xff]
    %v184 = vld [vmem:[%s1 + $0x4b8] sm:$0xff]
    %v185 = vld [vmem:[%s1 + $0x4c0] sm:$0xff]
    %v186 = vld [vmem:[%s1 + $0x4c8] sm:$0xff]
    %v187 = vld [vmem:[%s1 + $0x4d0] sm:$0xff]
    %v188 = vld [vmem:[%s1 + $0x4d8] sm:$0xff]
    %v189 = vld [vmem:[%s1 + $0x4e0] sm:$0xff]
    %v190 = vld [vmem:[%s1 + $0x4e8] sm:$0xff]
    %v191 = vld [vmem:[%s1 + $0x4f0] sm:$0xff]
    %v192 = vld [vmem:[%s1 + $0x4f8] sm:$0xff]
    %v193 = vld [vmem:[%s1 + $0x500] sm:$0xff]
    %v194 = vld [vmem:[%s1 + $0x508] sm:$0xff]
    %v195 = vld [vmem:[%s1 + $0x510] sm:$0xff]
    %v196 = vld [vmem:[%s1 + $0x518] sm:$0xff]
    %v197 = vld [vmem:[%s1 + $0x520] sm:$0xff]
    %v198 = vld [vmem:[%s1 + $0x528] sm:$0xff]
    %v199 = vld [vmem:[%s1 + $0x530] sm:$0xff]
    %v200 = vld [vmem:[%s1 + $0x538] sm:$0xff]
    %v201 = vld [vmem:[%s1 + $0x540] sm:$0xff]
    %v202 = vld [vmem:[%s1 + $0x548] sm:$0xff]
    %v203 = vld [vmem:[%s1 + $0x550] sm:$0xff]
    %v204 = vld [vmem:[%s1 + $0x558] sm:$0xff]
    %v205 = vld [vmem:[%s1 + $0x560] sm:$0xff]
    %v206 = vld [vmem:[%s1 + $0x568] sm:$0xff]
    %v207 = vld [vmem:[%s1 + $0x570] sm:$0xff]
    %v208 = vld [vmem:[%s1 + $0x578] sm:$0xff]
    %v209 = vld [vmem:[%s1 + $0x580] sm:$0xff]
    %v210 = vld [vmem:[%s1 + $0x588] sm:$0xff]
    %v211 = vld [vmem:[%s1 + $0x590] sm:$0xff]
    %v212 = vld [vmem:[%s1 + $0x598] sm:$0xff]
    %v213 = vld [vmem:[%s1 + $0x5a0] sm:$0xff]
    %v214 = vld [vmem:[%s1 + $0x5a8] sm:$0xff]
    %v215 = vld [vmem:[%s1 + $0x5b0] sm:$0xff]
    %v216 = vld [vmem:[%s1 + $0x5b8] sm:$0xff]
    %v217 = vld [vmem:[%s1 + $0x5c0] sm:$0xff]
    %v218 = vld [vmem:[%s1 + $0x5c8] sm:$0xff]
    %v219 = vld [vmem:[%s1 + $0x5d0] sm:$0xff]
    %v220 = vld [vmem:[%s1 + $0x5d8] sm:$0xff]
    %v221 = vld [vmem:[%s1 + $0x5e0] sm:$0xff]
    %v222 = vld [vmem:[%s1 + $0x5e8] sm:$0xff]
    %v223 = vld [vmem:[%s1 + $0x5f0] sm:$0xff]
    %v224 = vld [vmem:[%s1 + $0x5f8] sm:$0xff]
    %v225 = vld [vmem:[%s1 + $0x600] sm:$0xff]
    %v226 = vld [vmem:[%s1 + $0x608] sm:$0xff]
    %v227 = vld [vmem:[%s1 + $0x610] sm:$0xff]
    %v228 = vld [vmem:[%s1 + $0x618] sm:$0xff]
    %v229 = vld [vmem:[%s1 + $0x620] sm:$0xff]
    %v230 = vld [vmem:[%s1 + $0x628] sm:$0xff]
    %v231 = vld [vmem:[%s1 + $0x630] sm:$0xff]
    %v232 = vld [vmem:[%s1 + $0x638] sm:$0xff]
    %v233 = vld [vmem:[%s1 + $0x640] sm:$0xff]
    %v234 = vld [vmem:[%s1 + $0x648] sm:$0xff]
    %v235 = vld [vmem:[%s1 + $0x650] sm:$0xff]
    %v236 = vld [vmem:[%s1 + $0x658] sm:$0xff]
    %v237 = vld [vmem:[%s1 + $0x660] sm:$0xff]
    %v238 = vld [vmem:[%s1 + $0x668] sm:$0xff]
    %v239 = vld [vmem:[%s1 + $0x670] sm:$0xff]
    %v240 = vld [vmem:[%s1 + $0x678] sm:$0xff]
    %v241 = vld [vmem:[%s1 + $0x680] sm:$0xff]
    %v242 = vld [vmem:[%s1 + $0x688] sm:$0xff]
    %v243 = vld [vmem:[%s1 + $0x690] sm:$0xff]
    %v244 = vld [vmem:[%s1 + $0x698] sm:$0xff]
    %v245 = vld [vmem:[%s1 + $0x6a0] sm:$0xff]
    %v246 = vld [vmem:[%s1 + $0x6a8] sm:$0xff]
    %v247 = vld [vmem:[%s1 + $0x6b0] sm:$0xff]
    %v248 = vld [vmem:[%s1 + $0x6b8] sm:$0xff]
    %v249 = vld [vmem:[%s1 + $0x6c0] sm:$0xff]
    %v250 = vld [vmem:[%s1 + $0x6c8] sm:$0xff]
    %v251 = vld [vmem:[%s1 + $0x6d0] sm:$0xff]
    %v252 = vld [vmem:[%s1 + $0x6d8] sm:$0xff]
    %v253 = vld [vmem:[%s1 + $0x6e0] sm:$0xff]
    %v254 = vld [vmem:[%s1 + $0x6e8] sm:$0xff]
    %v255 = vld [vmem:[%s1 + $0x6f0] sm:$0xff]
    %v256 = vld [vmem:[%s1 + $0x6f8] sm:$0xff]
    %v257 = vld [vmem:[%s1 + $0x700] sm:$0xff]
    %v258 = vld [vmem:[%s1 + $0x708] sm:$0xff]
    %v259 = vld [vmem:[%s1 + $0x710] sm:$0xff]
    %v260 = vld [vmem:[%s1 + $0x718] sm:$0xff]
    %v261 = vld [vmem:[%s1 + $0x720] sm:$0xff]
    %v262 = vld [vmem:[%s1 + $0x728] sm:$0xff]
    %v263 = vld [vmem:[%s1 + $0x730] sm:$0xff]
    %v264 = vld [vmem:[%s1 + $0x738] sm:$0xff]
    %v265 = vld [vmem:[%s1 + $0x740] sm:$0xff]
    %v266 = vld [vmem:[%s1 + $0x748] sm:$0xff]
    %v267 = vld [vmem:[%s1 + $0x750] sm:$0xff]
    %v268 = vld [vmem:[%s1 + $0x758] sm:$0xff]
    %v269 = vld [vmem:[%s1 + $0x760] sm:$0xff]
    %v270 = vld [vmem:[%s1 + $0x768] sm:$0xff]
    %v271 = vld [vmem:[%s1 + $0x770] sm:$0xff]
    %v272 = vld [vmem:[%s1 + $0x778] sm:$0xff]
    %v273 = vld [vmem:[%s1 + $0x780] sm:$0xff]
    %v274 = vld [vmem:[%s1 + $0x788] sm:$0xff]
    %v275 = vld [vmem:[%s1 + $0x790] sm:$0xff]
    %v276 = vld [vmem:[%s1 + $0x798] sm:$0xff]
    %v277 = vld [vmem:[%s1 + $0x7a0] sm:$0xff]
    %v278 = vld [vmem:[%s1 + $0x7a8] sm:$0xff]
    %v279 = vld [vmem:[%s1 + $0x7b0] sm:$0xff]
    %v280 = vld [vmem:[%s1 + $0x7b8] sm:$0xff]
    %v281 = vld [vmem:[%s1 + $0x7c0] sm:$0xff]
    %v282 = vld [vmem:[%s1 + $0x7c8] sm:$0xff]
    %v283 = vld [vmem:[%s1 + $0x7d0] sm:$0xff]
    %v284 = vld [vmem:[%s1 + $0x7d8] sm:$0xff]
    %v285 = vld [vmem:[%s1 + $0x7e0] sm:$0xff]
    %v286 = vld [vmem:[%s1 + $0x7e8] sm:$0xff]
    %v287 = vld [vmem:[%s1 + $0x7f0] sm:$0xff]
    %v288 = vld [vmem:[%s1 + $0x7f8] sm:$0xff]
    %v289 = vld [vmem:[%s1 + $0x800] sm:$0xff]
    %v290 = vld [vmem:[%s1 + $0x808] sm:$0xff]
    %v291 = vld [vmem:[%s1 + $0x810] sm:$0xff]
    %v292 = vld [vmem:[%s1 + $0x818] sm:$0xff]
    %v293 = vld [vmem:[%s1 + $0x820] sm:$0xff]
    %v294 = vld [vmem:[%s1 + $0x828] sm:$0xff]
    %v295 = vld [vmem:[%s1 + $0x830] sm:$0xff]
    %v296 = vld [vmem:[%s1 + $0x838] sm:$0xff]
    %v297 = vld [vmem:[%s1 + $0x840] sm:$0xff]
    %v298 = vld [vmem:[%s1 + $0x848] sm:$0xff]
    %v299 = vld [vmem:[%s1 + $0x850] sm:$0xff]
    %v300 = vld [vmem:[%s1 + $0x858] sm:$0xff]
    %v301 = vld [vmem:[%s1 + $0x860] sm:$0xff]
    %v302 = vld [vmem:[%s1 + $0x868] sm:$0xff]
    %v303 = vld [vmem:[%s1 + $0x870] sm:$0xff]
    %v304 = vld [vmem:[%s1 + $0x878] sm:$0xff]
    %v305 = vld [vmem:[%s1 + $0x880] sm:$0xff]
    %v306 = vld [vmem:[%s1 + $0x888] sm:$0xff]
    %v307 = vld [vmem:[%s1 + $0x890] sm:$0xff]
    %v308 = vld [vmem:[%s1 + $0x898] sm:$0xff]
    %v309 = vld [vmem:[%s1 + $0x8a0] sm:$0xff]
    %v310 = vld [vmem:[%s1 + $0x8a8] sm:$0xff]
    %v311 = vld [vmem:[%s1 + $0x8b0] sm:$0xff]
    %v312 = vld [vmem:[%s1 + $0x8b8] sm:$0xff]
    %v313 = vld [vmem:[%s1 + $0x8c0] sm:$0xff]
    %v314 = vld [vmem:[%s1 + $0x8c8] sm:$0xff]
    %v315 = vld [vmem:[%s1 + $0x8d0] sm:$0xff]
    %v316 = vld [vmem:[%s1 + $0x8d8] sm:$0xff]
    %v317 = vld [vmem:[%s1 + $0x8e0] sm:$0xff]
    %v318 = vld [vmem:[%s1 + $0x8e8] sm:$0xff]
    %v319 = vld [vmem:[%s1 + $0x8f0] sm:$0xff]
    %v320 = vld [vmem:[%s1 + $0x8f8] sm:$0xff]
    %v321 = vld [vmem:[%s1 + $0x900] sm:$0xff]
    %v322 = vld [vmem:[%s1 + $0x908] sm:$0xff]
    %v323 = vld [vmem:[%s1 + $0x910] sm:$0xff]
    %v324 = vld [vmem:[%s1 + $0x918] sm:$0xff]
    %v325 = vld [vmem:[%s1 + $0x920] sm:$0xff]
    %v326 = vld [vmem:[%s1 + $0x928] sm:$0xff]
    %v327 = vld [vmem:[%s1 + $0x930] sm:$0xff]
    %v328 = vld [vmem:[%s1 + $0x938] sm:$0xff]
    %v329 = vld [vmem:[%s1 + $0x940] sm:$0xff]
    %v330 = vld [vmem:[%s1 + $0x948] sm:$0xff]
    %v331 = vld [vmem:[%s1 + $0x950] sm:$0xff]
    %v332 = vld [vmem:[%s1 + $0x958] sm:$0xff]
    %v333 = vld [vmem:[%s1 + $0x960] sm:$0xff]
    %v334 = vld [vmem:[%s1 + $0x968] sm:$0xff]
    %v335 = vld [vmem:[%s1 + $0x970] sm:$0xff]
    %v336 = vld [vmem:[%s1 + $0x978] sm:$0xff]
    %v337 = vld [vmem:[%s1 + $0x980] sm:$0xff]
    %v338 = vld [vmem:[%s1 + $0x988] sm:$0xff]
    %v339 = vld [vmem:[%s1 + $0x990] sm:$0xff]
    %v340 = vld [vmem:[%s1 + $0x998] sm:$0xff]
    %v341 = vld [vmem:[%s1 + $0x9a0] sm:$0xff]
    %v342 = vld [vmem:[%s1 + $0x9a8] sm:$0xff]
    %v343 = vld [vmem:[%s1 + $0x9b0] sm:$0xff]
    %v344 = vld [vmem:[%s1 + $0x9b8] sm:$0xff]
    %v345 = vld [vmem:[%s1 + $0x9c0] sm:$0xff]
    %v346 = vld [vmem:[%s1 + $0x9c8] sm:$0xff]
    %v347 = vld [vmem:[%s1 + $0x9d0] sm:$0xff]
    %v348 = vld [vmem:[%s1 + $0x9d8] sm:$0xff]
    %v349 = vld [vmem:[%s1 + $0x9e0] sm:$0xff]
    %v350 = vld [vmem:[%s1 + $0x9e8] sm:$0xff]
    %v351 = vld [vmem:[%s1 + $0x9f0] sm:$0xff]
    %v352 = vld [vmem:[%s1 + $0x9f8] sm:$0xff]
    %v353 = vld [vmem:[%s1 + $0xa00] sm:$0xff]
    %v354 = vld [vmem:[%s1 + $0xa08] sm:$0xff]
    %v355 = vld [vmem:[%s1 + $0xa10] sm:$0xff]
    %v356 = vld [vmem:[%s1 + $0xa18] sm:$0xff]
    %v357 = vld [vmem:[%s1 + $0xa20] sm:$0xff]
    %v358 = vld [vmem:[%s1 + $0xa28] sm:$0xff]
    %v359 = vld [vmem:[%s1 + $0xa30] sm:$0xff]
    %v360 = vld [vmem:[%s1 + $0xa38] sm:$0xff]
    %v361 = vld [vmem:[%s1 + $0xa40] sm:$0xff]
    %v362 = vld [vmem:[%s1 + $0xa48] sm:$0xff]
    %v363 = vld [vmem:[%s1 + $0xa50] sm:$0xff]
    %v364 = vld [vmem:[%s1 + $0xa58] sm:$0xff]
    %v365 = vld [vmem:[%s1 + $0xa60] sm:$0xff]
    %v366 = vld [vmem:[%s1 + $0xa68] sm:$0xff]
    %v367 = vld [vmem:[%s1 + $0xa70] sm:$0xff]
    %v368 = vld [vmem:[%s1 + $0xa78] sm:$0xff]
    %v369 = vld [vmem:[%s1 + $0xa80] sm:$0xff]
    %v370 = vld [vmem:[%s1 + $0xa88] sm:$0xff]
    %v371 = vld [vmem:[%s1 + $0xa90] sm:$0xff]
    %v372 = vld [vmem:[%s1 + $0xa98] sm:$0xff]
    %v373 = vld [vmem:[%s1 + $0xaa0] sm:$0xff]
    %v374 = vld [vmem:[%s1 + $0xaa8] sm:$0xff]
    %v375 = vld [vmem:[%s1 + $0xab0] sm:$0xff]
    %v376 = vld [vmem:[%s1 + $0xab8] sm:$0xff]
    %v377 = vld [vmem:[%s1 + $0xac0] sm:$0xff]
    %v378 = vld [vmem:[%s1 + $0xac8] sm:$0xff]
    %v379 = vld [vmem:[%s1 + $0xad0] sm:$0xff]
    %v380 = vld [vmem:[%s1 + $0xad8] sm:$0xff]
    %v381 = vld [vmem:[%s1 + $0xae0] sm:$0xff]
    %v382 = vld [vmem:[%s1 + $0xae8] sm:$0xff]
    %v383 = vld [vmem:[%s1 + $0xaf0] sm:$0xff]
    %v384 = vld [vmem:[%s1 + $0xaf8] sm:$0xff]
    %v385 = vld [vmem:[%s1 + $0xb00] sm:$0xff]
    %v386 = vld [vmem:[%s1 + $0xb08] sm:$0xff]
    %v387 = vld [vmem:[%s1 + $0xb10] sm:$0xff]
    %v388 = vld [vmem:[%s1 + $0xb18] sm:$0xff]
    %v389 = vld [vmem:[%s1 + $0xb20] sm:$0xff]
    %v390 = vld [vmem:[%s1 + $0xb28] sm:$0xff]
    %v391 = vld [vmem:[%s1 + $0xb30] sm:$0xff]
    %v392 = vld [vmem:[%s1 + $0xb38] sm:$0xff]
    %v393 = vld [vmem:[%s1 + $0xb40] sm:$0xff]
    %v394 = vld [vmem:[%s1 + $0xb48] sm:$0xff]
    %v395 = vld [vmem:[%s1 + $0xb50] sm:$0xff]
    %v396 = vld [vmem:[%s1 + $0xb58] sm:$0xff]
    %v397 = vld [vmem:[%s1 + $0xb60] sm:$0xff]
    %v398 = vld [vmem:[%s1 + $0xb68] sm:$0xff]
    %v399 = vld [vmem:[%s1 + $0xb70] sm:$0xff]
    %v400 = vld [vmem:[%s1 + $0xb78] sm:$0xff]
    %v401 = vld [vmem:[%s1 + $0xb80] sm:$0xff]
    %v402 = vld [vmem:[%s1 + $0xb88] sm:$0xff]
    %v403 = vld [vmem:[%s1 + $0xb90] sm:$0xff]
    %v404 = vld [vmem:[%s1 + $0xb98] sm:$0xff]
    %v405 = vld [vmem:[%s1 + $0xba0] sm:$0xff]
    %v406 = vld [vmem:[%s1 + $0xba8] sm:$0xff]
    %v407 = vld [vmem:[%s1 + $0xbb0] sm:$0xff]
    %v408 = vld [vmem:[%s1 + $0xbb8] sm:$0xff]
    %v409 = vld [vmem:[%s1 + $0xbc0] sm:$0xff]
    %v410 = vld [vmem:[%s1 + $0xbc8] sm:$0xff]
    %v411 = vld [vmem:[%s1 + $0xbd0] sm:$0xff]
    %v412 = vld [vmem:[%s1 + $0xbd8] sm:$0xff]
    %v413 = vld [vmem:[%s1 + $0xbe0] sm:$0xff]
    %v414 = vld [vmem:[%s1 + $0xbe8] sm:$0xff]
    %v415 = vld [vmem:[%s1 + $0xbf0] sm:$0xff]
    %v416 = vld [vmem:[%s1 + $0xbf8] sm:$0xff]
    %v417 = vld [vmem:[%s1 + $0xc00] sm:$0xff]
    %v418 = vld [vmem:[%s1 + $0xc08] sm:$0xff]
    %v419 = vld [vmem:[%s1 + $0xc10] sm:$0xff]
    %v420 = vld [vmem:[%s1 + $0xc18] sm:$0xff]
    %v421 = vld [vmem:[%s1 + $0xc20] sm:$0xff]
    %v422 = vld [vmem:[%s1 + $0xc28] sm:$0xff]
    %v423 = vld [vmem:[%s1 + $0xc30] sm:$0xff]
    %v424 = vld [vmem:[%s1 + $0xc38] sm:$0xff]
    %v425 = vld [vmem:[%s1 + $0xc40] sm:$0xff]
    %v426 = vld [vmem:[%s1 + $0xc48] sm:$0xff]
    %v427 = vld [vmem:[%s1 + $0xc50] sm:$0xff]
    %v428 = vld [vmem:[%s1 + $0xc58] sm:$0xff]
    %v429 = vld [vmem:[%s1 + $0xc60] sm:$0xff]
    %v430 = vld [vmem:[%s1 + $0xc68] sm:$0xff]
    %v431 = vld [vmem:[%s1 + $0xc70] sm:$0xff]
    %v432 = vld [vmem:[%s1 + $0xc78] sm:$0xff]
    %v433 = vld [vmem:[%s1 + $0xc80] sm:$0xff]
    %v434 = vld [vmem:[%s1 + $0xc88] sm:$0xff]
    %v435 = vld [vmem:[%s1 + $0xc90] sm:$0xff]
    %v436 = vld [vmem:[%s1 + $0xc98] sm:$0xff]
    %v437 = vld [vmem:[%s1 + $0xca0] sm:$0xff]
    %v438 = vld [vmem:[%s1 + $0xca8] sm:$0xff]
    %v439 = vld [vmem:[%s1 + $0xcb0] sm:$0xff]
    %v440 = vld [vmem:[%s1 + $0xcb8] sm:$0xff]
    %v441 = vld [vmem:[%s1 + $0xcc0] sm:$0xff]
    %v442 = vld [vmem:[%s1 + $0xcc8] sm:$0xff]
    %v443 = vld [vmem:[%s1 + $0xcd0] sm:$0xff]
    %v444 = vld [vmem:[%s1 + $0xcd8] sm:$0xff]
    %v445 = vld [vmem:[%s1 + $0xce0] sm:$0xff]
    %v446 = vld [vmem:[%s1 + $0xce8] sm:$0xff]
    %v447 = vld [vmem:[%s1 + $0xcf0] sm:$0xff]
    %v448 = vld [vmem:[%s1 + $0xcf8] sm:$0xff]
    %v449 = vld [vmem:[%s1 + $0xd00] sm:$0xff]
    %v450 = vld [vmem:[%s1 + $0xd08] sm:$0xff]
    %v451 = vld [vmem:[%s1 + $0xd10] sm:$0xff]
    %v452 = vld [vmem:[%s1 + $0xd18] sm:$0xff]
    %v453 = vld [vmem:[%s1 + $0xd20] sm:$0xff]
    %v454 = vld [vmem:[%s1 + $0xd28] sm:$0xff]
    %v455 = vld [vmem:[%s1 + $0xd30] sm:$0xff]
    %v456 = vld [vmem:[%s1 + $0xd38] sm:$0xff]
    %v457 = vld [vmem:[%s1 + $0xd40] sm:$0xff]
    %v458 = vld [vmem:[%s1 + $0xd48] sm:$0xff]
    %v459 = vld [vmem:[%s1 + $0xd50] sm:$0xff]
    %v460 = vld [vmem:[%s1 + $0xd58] sm:$0xff]
    %v461 = vld [vmem:[%s1 + $0xd60] sm:$0xff]
    %v462 = vld [vmem:[%s1 + $0xd68] sm:$0xff]
    %v463 = vld [vmem:[%s1 + $0xd70] sm:$0xff]
    %v464 = vld [vmem:[%s1 + $0xd78] sm:$0xff]
    %v465 = vld [vmem:[%s1 + $0xd80] sm:$0xff]
    %v466 = vld [vmem:[%s1 + $0xd88] sm:$0xff]
    %v467 = vld [vmem:[%s1 + $0xd90] sm:$0xff]
    %v468 = vld [vmem:[%s1 + $0xd98] sm:$0xff]
    %v469 = vld [vmem:[%s1 + $0xda0] sm:$0xff]
    %v470 = vld [vmem:[%s1 + $0xda8] sm:$0xff]
    %v471 = vld [vmem:[%s1 + $0xdb0] sm:$0xff]
    %v472 = vld [vmem:[%s1 + $0xdb8] sm:$0xff]
    %v473 = vld [vmem:[%s1 + $0xdc0] sm:$0xff]
    %v474 = vld [vmem:[%s1 + $0xdc8] sm:$0xff]
    %v475 = vld [vmem:[%s1 + $0xdd0] sm:$0xff]
    %v476 = vld [vmem:[%s1 + $0xdd8] sm:$0xff]
    %v477 = vld [vmem:[%s1 + $0xde0] sm:$0xff]
    %v478 = vld [vmem:[%s1 + $0xde8] sm:$0xff]
    %v479 = vld [vmem:[%s1 + $0xdf0] sm:$0xff]
    %v480 = vld [vmem:[%s1 + $0xdf8] sm:$0xff]
    %v481 = vld [vmem:[%s1 + $0xe00] sm:$0xff]
    %v482 = vld [vmem:[%s1 + $0xe08] sm:$0xff]
    %v483 = vld [vmem:[%s1 + $0xe10] sm:$0xff]
    %v484 = vld [vmem:[%s1 + $0xe18] sm:$0xff]
    %v485 = vld [vmem:[%s1 + $0xe20] sm:$0xff]
    %v486 = vld [vmem:[%s1 + $0xe28] sm:$0xff]
    %v487 = vld [vmem:[%s1 + $0xe30] sm:$0xff]
    %v488 = vld [vmem:[%s1 + $0xe38] sm:$0xff]
    %v489 = vld [vmem:[%s1 + $0xe40] sm:$0xff]
    %v490 = vld [vmem:[%s1 + $0xe48] sm:$0xff]
    %v491 = vld [vmem:[%s1 + $0xe50] sm:$0xff]
    %v492 = vld [vmem:[%s1 + $0xe58] sm:$0xff]
    %v493 = vld [vmem:[%s1 + $0xe60] sm:$0xff]
    %v494 = vld [vmem:[%s1 + $0xe68] sm:$0xff]
    %v495 = vld [vmem:[%s1 + $0xe70] sm:$0xff]
    %v496 = vld [vmem:[%s1 + $0xe78] sm:$0xff]
    %v497 = vld [vmem:[%s1 + $0xe80] sm:$0xff]
    %v498 = vld [vmem:[%s1 + $0xe88] sm:$0xff]
    %v499 = vld [vmem:[%s1 + $0xe90] sm:$0xff]
    %v500 = vld [vmem:[%s1 + $0xe98] sm:$0xff]
    %v501 = vld [vmem:[%s1 + $0xea0] sm:$0xff]
    %v502 = vld [vmem:[%s1 + $0xea8] sm:$0xff]
    %v503 = vld [vmem:[%s1 + $0xeb0] sm:$0xff]
    %v504 = vld [vmem:[%s1 + $0xeb8] sm:$0xff]
    %v505 = vld [vmem:[%s1 + $0xec0] sm:$0xff]
    %v506 = vld [vmem:[%s1 + $0xec8] sm:$0xff]
    %v507 = vld [vmem:[%s1 + $0xed0] sm:$0xff]
    %v508 = vld [vmem:[%s1 + $0xed8] sm:$0xff]
    %v509 = vld [vmem:[%s1 + $0xee0] sm:$0xff]
    %v510 = vld [vmem:[%s1 + $0xee8] sm:$0xff]
    %v511 = vld [vmem:[%s1 + $0xef0] sm:$0xff]
    %v512 = vld [vmem:[%s1 + $0xef8] sm:$0xff]
    %v513 = vld [vmem:[%s1 + $0xf00] sm:$0xff]
    %v514 = vld [vmem:[%s1 + $0xf08] sm:$0xff]
    %v515 = vld [vmem:[%s1 + $0xf10] sm:$0xff]
    %v516 = vld [vmem:[%s1 + $0xf18] sm:$0xff]
    %v517 = vld [vmem:[%s1 + $0xf20] sm:$0xff]
    %v518 = vld [vmem:[%s1 + $0xf28] sm:$0xff]
    %v519 = vld [vmem:[%s1 + $0xf30] sm:$0xff]
    %v520 = vld [vmem:[%s1 + $0xf38] sm:$0xff]
    %v521 = vld [vmem:[%s1 + $0xf40] sm:$0xff]
    %v522 = vld [vmem:[%s1 + $0xf48] sm:$0xff]
    %v523 = vld [vmem:[%s1 + $0xf50] sm:$0xff]
    %v524 = vld [vmem:[%s1 + $0xf58] sm:$0xff]
    %v525 = vld [vmem:[%s1 + $0xf60] sm:$0xff]
    %v526 = vld [vmem:[%s1 + $0xf68] sm:$0xff]
    %v527 = vld [vmem:[%s1 + $0xf70] sm:$0xff]
    %v528 = vld [vmem:[%s1 + $0xf78] sm:$0xff]
    %v529 = vld [vmem:[%s1 + $0xf80] sm:$0xff]
    %v530 = vld [vmem:[%s1 + $0xf88] sm:$0xff]
    %v531 = vld [vmem:[%s1 + $0xf90] sm:$0xff]
    %v532 = vld [vmem:[%s1 + $0xf98] sm:$0xff]
    %v533 = vld [vmem:[%s1 + $0xfa0] sm:$0xff]
    %v534 = vld [vmem:[%s1 + $0xfa8] sm:$0xff]
    %v535 = vld [vmem:[%s1 + $0xfb0] sm:$0xff]
    %v536 = vld [vmem:[%s1 + $0xfb8] sm:$0xff]
    %v537 = vld [vmem:[%s1 + $0xfc0] sm:$0xff]
    %v538 = vld [vmem:[%s1 + $0xfc8] sm:$0xff]
    %v539 = vld [vmem:[%s1 + $0xfd0] sm:$0xff]
    %v540 = vld [vmem:[%s1 + $0xfd8] sm:$0xff]
    %v541 = vld [vmem:[%s1 + $0xfe0] sm:$0xff]
    %v542 = vld [vmem:[%s1 + $0xfe8] sm:$0xff]
    %v543 = vld [vmem:[%s1 + $0xff0] sm:$0xff]
    %v544 = vld [vmem:[%s1 + $0xff8] sm:$0xff]
    %v545 = vld [vmem:[%s2] sm:$0xff]
    %v546 = vld [vmem:[%s2 + $0x8] sm:$0xff]
    %v549 = vperm.slane %v545, 0
    %v550 = vperm.slane %v545, 1
    %v551 = vperm.slane %v545, 2
    %v552 = vperm.slane %v545, 3
    %v553 = vperm.slane %v545, 4
    %v554 = vperm.slane %v545, 5
    %v555 = vperm.slane %v545, 6
    %v556 = vperm.slane %v545, 7
    %v557 = vperm.slane %v546, 0
    %v558 = vperm.slane %v546, 1
    %v559 = vperm.slane %v546, 2
    %v560 = vperm.slane %v546, 3
    %v561 = vperm.slane %v546, 4
    %v562 = vperm.slane %v546, 5
    %v563 = vperm.slane %v546, 6
    %v564 = vperm.slane %v546, 7
    %v1093 = vunpack.c.l.b16 %v33
    %v1094 = vunpack.c.h.b16 %v33
    %v1095 = vunpack.c.l.b16 %v34
    %v1096 = vunpack.c.h.b16 %v34
    %v1097 = vunpack.c.l.b16 %v35
    %v1098 = vunpack.c.h.b16 %v35
    %v1099 = vunpack.c.l.b16 %v36
    %v1100 = vunpack.c.h.b16 %v36
    %v1101 = vunpack.c.l.b16 %v37
    %v1102 = vunpack.c.h.b16 %v37
    %v1103 = vunpack.c.l.b16 %v38
    %v1104 = vunpack.c.h.b16 %v38
    %v1105 = vunpack.c.l.b16 %v39
    %v1106 = vunpack.c.h.b16 %v39
    %v1107 = vunpack.c.l.b16 %v40
    %v1108 = vunpack.c.h.b16 %v40
    %v1109 = vunpack.c.l.b16 %v41
    %v1110 = vunpack.c.h.b16 %v41
    %v1111 = vunpack.c.l.b16 %v42
    %v1112 = vunpack.c.h.b16 %v42
    %v1113 = vunpack.c.l.b16 %v43
    %v1114 = vunpack.c.h.b16 %v43
    %v1115 = vunpack.c.l.b16 %v44
    %v1116 = vunpack.c.h.b16 %v44
    %v1117 = vunpack.c.l.b16 %v45
    %v1118 = vunpack.c.h.b16 %v45
    %v1119 = vunpack.c.l.b16 %v46
    %v1120 = vunpack.c.h.b16 %v46
    %v1121 = vunpack.c.l.b16 %v47
    %v1122 = vunpack.c.h.b16 %v47
    %v1123 = vunpack.c.l.b16 %v48
    %v1124 = vunpack.c.h.b16 %v48
    %v1125 = vunpack.c.l.b16 %v49
    %v1126 = vunpack.c.h.b16 %v49
    %v1127 = vunpack.c.l.b16 %v50
    %v1128 = vunpack.c.h.b16 %v50
    %v1129 = vunpack.c.l.b16 %v51
    %v1130 = vunpack.c.h.b16 %v51
    %v1131 = vunpack.c.l.b16 %v52
    %v1132 = vunpack.c.h.b16 %v52
    %v1133 = vunpack.c.l.b16 %v53
    %v1134 = vunpack.c.h.b16 %v53
    %v1135 = vunpack.c.l.b16 %v54
    %v1136 = vunpack.c.h.b16 %v54
    %v1137 = vunpack.c.l.b16 %v55
    %v1138 = vunpack.c.h.b16 %v55
    %v1139 = vunpack.c.l.b16 %v56
    %v1140 = vunpack.c.h.b16 %v56
    %v1141 = vunpack.c.l.b16 %v57
    %v1142 = vunpack.c.h.b16 %v57
    %v1143 = vunpack.c.l.b16 %v58
    %v1144 = vunpack.c.h.b16 %v58
    %v1145 = vunpack.c.l.b16 %v59
    %v1146 = vunpack.c.h.b16 %v59
    %v1147 = vunpack.c.l.b16 %v60
    %v1148 = vunpack.c.h.b16 %v60
    %v1149 = vunpack.c.l.b16 %v61
    %v1150 = vunpack.c.h.b16 %v61
    %v1151 = vunpack.c.l.b16 %v62
    %v1152 = vunpack.c.h.b16 %v62
    %v1153 = vunpack.c.l.b16 %v63
    %v1154 = vunpack.c.h.b16 %v63
    %v1155 = vunpack.c.l.b16 %v64
    %v1156 = vunpack.c.h.b16 %v64
    %v1157 = vunpack.c.l.b16 %v65
    %v1158 = vunpack.c.h.b16 %v65
    %v1159 = vunpack.c.l.b16 %v66
    %v1160 = vunpack.c.h.b16 %v66
    %v1161 = vunpack.c.l.b16 %v67
    %v1162 = vunpack.c.h.b16 %v67
    %v1163 = vunpack.c.l.b16 %v68
    %v1164 = vunpack.c.h.b16 %v68
    %v1165 = vunpack.c.l.b16 %v69
    %v1166 = vunpack.c.h.b16 %v69
    %v1167 = vunpack.c.l.b16 %v70
    %v1168 = vunpack.c.h.b16 %v70
    %v1169 = vunpack.c.l.b16 %v71
    %v1170 = vunpack.c.h.b16 %v71
    %v1171 = vunpack.c.l.b16 %v72
    %v1172 = vunpack.c.h.b16 %v72
    %v1173 = vunpack.c.l.b16 %v73
    %v1174 = vunpack.c.h.b16 %v73
    %v1175 = vunpack.c.l.b16 %v74
    %v1176 = vunpack.c.h.b16 %v74
    %v1177 = vunpack.c.l.b16 %v75
    %v1178 = vunpack.c.h.b16 %v75
    %v1179 = vunpack.c.l.b16 %v76
    %v1180 = vunpack.c.h.b16 %v76
    %v1181 = vunpack.c.l.b16 %v77
    %v1182 = vunpack.c.h.b16 %v77
    %v1183 = vunpack.c.l.b16 %v78
    %v1184 = vunpack.c.h.b16 %v78
    %v1185 = vunpack.c.l.b16 %v79
    %v1186 = vunpack.c.h.b16 %v79
    %v1187 = vunpack.c.l.b16 %v80
    %v1188 = vunpack.c.h.b16 %v80
    %v1189 = vunpack.c.l.b16 %v81
    %v1190 = vunpack.c.h.b16 %v81
    %v1191 = vunpack.c.l.b16 %v82
    %v1192 = vunpack.c.h.b16 %v82
    %v1193 = vunpack.c.l.b16 %v83
    %v1194 = vunpack.c.h.b16 %v83
    %v1195 = vunpack.c.l.b16 %v84
    %v1196 = vunpack.c.h.b16 %v84
    %v1197 = vunpack.c.l.b16 %v85
    %v1198 = vunpack.c.h.b16 %v85
    %v1199 = vunpack.c.l.b16 %v86
    %v1200 = vunpack.c.h.b16 %v86
    %v1201 = vunpack.c.l.b16 %v87
    %v1202 = vunpack.c.h.b16 %v87
    %v1203 = vunpack.c.l.b16 %v88
    %v1204 = vunpack.c.h.b16 %v88
    %v1205 = vunpack.c.l.b16 %v89
    %v1206 = vunpack.c.h.b16 %v89
    %v1207 = vunpack.c.l.b16 %v90
    %v1208 = vunpack.c.h.b16 %v90
    %v1209 = vunpack.c.l.b16 %v91
    %v1210 = vunpack.c.h.b16 %v91
    %v1211 = vunpack.c.l.b16 %v92
    %v1212 = vunpack.c.h.b16 %v92
    %v1213 = vunpack.c.l.b16 %v93
    %v1214 = vunpack.c.h.b16 %v93
    %v1215 = vunpack.c.l.b16 %v94
    %v1216 = vunpack.c.h.b16 %v94
    %v1217 = vunpack.c.l.b16 %v95
    %v1218 = vunpack.c.h.b16 %v95
    %v1219 = vunpack.c.l.b16 %v96
    %v1220 = vunpack.c.h.b16 %v96
    %v1221 = vunpack.c.l.b16 %v97
    %v1222 = vunpack.c.h.b16 %v97
    %v1223 = vunpack.c.l.b16 %v98
    %v1224 = vunpack.c.h.b16 %v98
    %v1225 = vunpack.c.l.b16 %v99
    %v1226 = vunpack.c.h.b16 %v99
    %v1227 = vunpack.c.l.b16 %v100
    %v1228 = vunpack.c.h.b16 %v100
    %v1229 = vunpack.c.l.b16 %v101
    %v1230 = vunpack.c.h.b16 %v101
    %v1231 = vunpack.c.l.b16 %v102
    %v1232 = vunpack.c.h.b16 %v102
    %v1233 = vunpack.c.l.b16 %v103
    %v1234 = vunpack.c.h.b16 %v103
    %v1235 = vunpack.c.l.b16 %v104
    %v1236 = vunpack.c.h.b16 %v104
    %v1237 = vunpack.c.l.b16 %v105
    %v1238 = vunpack.c.h.b16 %v105
    %v1239 = vunpack.c.l.b16 %v106
    %v1240 = vunpack.c.h.b16 %v106
    %v1241 = vunpack.c.l.b16 %v107
    %v1242 = vunpack.c.h.b16 %v107
    %v1243 = vunpack.c.l.b16 %v108
    %v1244 = vunpack.c.h.b16 %v108
    %v1245 = vunpack.c.l.b16 %v109
    %v1246 = vunpack.c.h.b16 %v109
    %v1247 = vunpack.c.l.b16 %v110
    %v1248 = vunpack.c.h.b16 %v110
    %v1249 = vunpack.c.l.b16 %v111
    %v1250 = vunpack.c.h.b16 %v111
    %v1251 = vunpack.c.l.b16 %v112
    %v1252 = vunpack.c.h.b16 %v112
    %v1253 = vunpack.c.l.b16 %v113
    %v1254 = vunpack.c.h.b16 %v113
    %v1255 = vunpack.c.l.b16 %v114
    %v1256 = vunpack.c.h.b16 %v114
    %v1257 = vunpack.c.l.b16 %v115
    %v1258 = vunpack.c.h.b16 %v115
    %v1259 = vunpack.c.l.b16 %v116
    %v1260 = vunpack.c.h.b16 %v116
    %v1261 = vunpack.c.l.b16 %v117
    %v1262 = vunpack.c.h.b16 %v117
    %v1263 = vunpack.c.l.b16 %v118
    %v1264 = vunpack.c.h.b16 %v118
    %v1265 = vunpack.c.l.b16 %v119
    %v1266 = vunpack.c.h.b16 %v119
    %v1267 = vunpack.c.l.b16 %v120
    %v1268 = vunpack.c.h.b16 %v120
    %v1269 = vunpack.c.l.b16 %v121
    %v1270 = vunpack.c.h.b16 %v121
    %v1271 = vunpack.c.l.b16 %v122
    %v1272 = vunpack.c.h.b16 %v122
    %v1273 = vunpack.c.l.b16 %v123
    %v1274 = vunpack.c.h.b16 %v123
    %v1275 = vunpack.c.l.b16 %v124
    %v1276 = vunpack.c.h.b16 %v124
    %v1277 = vunpack.c.l.b16 %v125
    %v1278 = vunpack.c.h.b16 %v125
    %v1279 = vunpack.c.l.b16 %v126
    %v1280 = vunpack.c.h.b16 %v126
    %v1281 = vunpack.c.l.b16 %v127
    %v1282 = vunpack.c.h.b16 %v127
    %v1283 = vunpack.c.l.b16 %v128
    %v1284 = vunpack.c.h.b16 %v128
    %v1285 = vunpack.c.l.b16 %v129
    %v1286 = vunpack.c.h.b16 %v129
    %v1287 = vunpack.c.l.b16 %v130
    %v1288 = vunpack.c.h.b16 %v130
    %v1289 = vunpack.c.l.b16 %v131
    %v1290 = vunpack.c.h.b16 %v131
    %v1291 = vunpack.c.l.b16 %v132
    %v1292 = vunpack.c.h.b16 %v132
    %v1293 = vunpack.c.l.b16 %v133
    %v1294 = vunpack.c.h.b16 %v133
    %v1295 = vunpack.c.l.b16 %v134
    %v1296 = vunpack.c.h.b16 %v134
    %v1297 = vunpack.c.l.b16 %v135
    %v1298 = vunpack.c.h.b16 %v135
    %v1299 = vunpack.c.l.b16 %v136
    %v1300 = vunpack.c.h.b16 %v136
    %v1301 = vunpack.c.l.b16 %v137
    %v1302 = vunpack.c.h.b16 %v137
    %v1303 = vunpack.c.l.b16 %v138
    %v1304 = vunpack.c.h.b16 %v138
    %v1305 = vunpack.c.l.b16 %v139
    %v1306 = vunpack.c.h.b16 %v139
    %v1307 = vunpack.c.l.b16 %v140
    %v1308 = vunpack.c.h.b16 %v140
    %v1309 = vunpack.c.l.b16 %v141
    %v1310 = vunpack.c.h.b16 %v141
    %v1311 = vunpack.c.l.b16 %v142
    %v1312 = vunpack.c.h.b16 %v142
    %v1313 = vunpack.c.l.b16 %v143
    %v1314 = vunpack.c.h.b16 %v143
    %v1315 = vunpack.c.l.b16 %v144
    %v1316 = vunpack.c.h.b16 %v144
    %v1317 = vunpack.c.l.b16 %v145
    %v1318 = vunpack.c.h.b16 %v145
    %v1319 = vunpack.c.l.b16 %v146
    %v1320 = vunpack.c.h.b16 %v146
    %v1321 = vunpack.c.l.b16 %v147
    %v1322 = vunpack.c.h.b16 %v147
    %v1323 = vunpack.c.l.b16 %v148
    %v1324 = vunpack.c.h.b16 %v148
    %v1325 = vunpack.c.l.b16 %v149
    %v1326 = vunpack.c.h.b16 %v149
    %v1327 = vunpack.c.l.b16 %v150
    %v1328 = vunpack.c.h.b16 %v150
    %v1329 = vunpack.c.l.b16 %v151
    %v1330 = vunpack.c.h.b16 %v151
    %v1331 = vunpack.c.l.b16 %v152
    %v1332 = vunpack.c.h.b16 %v152
    %v1333 = vunpack.c.l.b16 %v153
    %v1334 = vunpack.c.h.b16 %v153
    %v1335 = vunpack.c.l.b16 %v154
    %v1336 = vunpack.c.h.b16 %v154
    %v1337 = vunpack.c.l.b16 %v155
    %v1338 = vunpack.c.h.b16 %v155
    %v1339 = vunpack.c.l.b16 %v156
    %v1340 = vunpack.c.h.b16 %v156
    %v1341 = vunpack.c.l.b16 %v157
    %v1342 = vunpack.c.h.b16 %v157
    %v1343 = vunpack.c.l.b16 %v158
    %v1344 = vunpack.c.h.b16 %v158
    %v1345 = vunpack.c.l.b16 %v159
    %v1346 = vunpack.c.h.b16 %v159
    %v1347 = vunpack.c.l.b16 %v160
    %v1348 = vunpack.c.h.b16 %v160
    %v1349 = vunpack.c.l.b16 %v161
    %v1350 = vunpack.c.h.b16 %v161
    %v1351 = vunpack.c.l.b16 %v162
    %v1352 = vunpack.c.h.b16 %v162
    %v1353 = vunpack.c.l.b16 %v163
    %v1354 = vunpack.c.h.b16 %v163
    %v1355 = vunpack.c.l.b16 %v164
    %v1356 = vunpack.c.h.b16 %v164
    %v1357 = vunpack.c.l.b16 %v165
    %v1358 = vunpack.c.h.b16 %v165
    %v1359 = vunpack.c.l.b16 %v166
    %v1360 = vunpack.c.h.b16 %v166
    %v1361 = vunpack.c.l.b16 %v167
    %v1362 = vunpack.c.h.b16 %v167
    %v1363 = vunpack.c.l.b16 %v168
    %v1364 = vunpack.c.h.b16 %v168
    %v1365 = vunpack.c.l.b16 %v169
    %v1366 = vunpack.c.h.b16 %v169
    %v1367 = vunpack.c.l.b16 %v170
    %v1368 = vunpack.c.h.b16 %v170
    %v1369 = vunpack.c.l.b16 %v171
    %v1370 = vunpack.c.h.b16 %v171
    %v1371 = vunpack.c.l.b16 %v172
    %v1372 = vunpack.c.h.b16 %v172
    %v1373 = vunpack.c.l.b16 %v173
    %v1374 = vunpack.c.h.b16 %v173
    %v1375 = vunpack.c.l.b16 %v174
    %v1376 = vunpack.c.h.b16 %v174
    %v1377 = vunpack.c.l.b16 %v175
    %v1378 = vunpack.c.h.b16 %v175
    %v1379 = vunpack.c.l.b16 %v176
    %v1380 = vunpack.c.h.b16 %v176
    %v1381 = vunpack.c.l.b16 %v177
    %v1382 = vunpack.c.h.b16 %v177
    %v1383 = vunpack.c.l.b16 %v178
    %v1384 = vunpack.c.h.b16 %v178
    %v1385 = vunpack.c.l.b16 %v179
    %v1386 = vunpack.c.h.b16 %v179
    %v1387 = vunpack.c.l.b16 %v180
    %v1388 = vunpack.c.h.b16 %v180
    %v1389 = vunpack.c.l.b16 %v181
    %v1390 = vunpack.c.h.b16 %v181
    %v1391 = vunpack.c.l.b16 %v182
    %v1392 = vunpack.c.h.b16 %v182
    %v1393 = vunpack.c.l.b16 %v183
    %v1394 = vunpack.c.h.b16 %v183
    %v1395 = vunpack.c.l.b16 %v184
    %v1396 = vunpack.c.h.b16 %v184
    %v1397 = vunpack.c.l.b16 %v185
    %v1398 = vunpack.c.h.b16 %v185
    %v1399 = vunpack.c.l.b16 %v186
    %v1400 = vunpack.c.h.b16 %v186
    %v1401 = vunpack.c.l.b16 %v187
    %v1402 = vunpack.c.h.b16 %v187
    %v1403 = vunpack.c.l.b16 %v188
    %v1404 = vunpack.c.h.b16 %v188
    %v1405 = vunpack.c.l.b16 %v189
    %v1406 = vunpack.c.h.b16 %v189
    %v1407 = vunpack.c.l.b16 %v190
    %v1408 = vunpack.c.h.b16 %v190
    %v1409 = vunpack.c.l.b16 %v191
    %v1410 = vunpack.c.h.b16 %v191
    %v1411 = vunpack.c.l.b16 %v192
    %v1412 = vunpack.c.h.b16 %v192
    %v1413 = vunpack.c.l.b16 %v193
    %v1414 = vunpack.c.h.b16 %v193
    %v1415 = vunpack.c.l.b16 %v194
    %v1416 = vunpack.c.h.b16 %v194
    %v1417 = vunpack.c.l.b16 %v195
    %v1418 = vunpack.c.h.b16 %v195
    %v1419 = vunpack.c.l.b16 %v196
    %v1420 = vunpack.c.h.b16 %v196
    %v1421 = vunpack.c.l.b16 %v197
    %v1422 = vunpack.c.h.b16 %v197
    %v1423 = vunpack.c.l.b16 %v198
    %v1424 = vunpack.c.h.b16 %v198
    %v1425 = vunpack.c.l.b16 %v199
    %v1426 = vunpack.c.h.b16 %v199
    %v1427 = vunpack.c.l.b16 %v200
    %v1428 = vunpack.c.h.b16 %v200
    %v1429 = vunpack.c.l.b16 %v201
    %v1430 = vunpack.c.h.b16 %v201
    %v1431 = vunpack.c.l.b16 %v202
    %v1432 = vunpack.c.h.b16 %v202
    %v1433 = vunpack.c.l.b16 %v203
    %v1434 = vunpack.c.h.b16 %v203
    %v1435 = vunpack.c.l.b16 %v204
    %v1436 = vunpack.c.h.b16 %v204
    %v1437 = vunpack.c.l.b16 %v205
    %v1438 = vunpack.c.h.b16 %v205
    %v1439 = vunpack.c.l.b16 %v206
    %v1440 = vunpack.c.h.b16 %v206
    %v1441 = vunpack.c.l.b16 %v207
    %v1442 = vunpack.c.h.b16 %v207
    %v1443 = vunpack.c.l.b16 %v208
    %v1444 = vunpack.c.h.b16 %v208
    %v1445 = vunpack.c.l.b16 %v209
    %v1446 = vunpack.c.h.b16 %v209
    %v1447 = vunpack.c.l.b16 %v210
    %v1448 = vunpack.c.h.b16 %v210
    %v1449 = vunpack.c.l.b16 %v211
    %v1450 = vunpack.c.h.b16 %v211
    %v1451 = vunpack.c.l.b16 %v212
    %v1452 = vunpack.c.h.b16 %v212
    %v1453 = vunpack.c.l.b16 %v213
    %v1454 = vunpack.c.h.b16 %v213
    %v1455 = vunpack.c.l.b16 %v214
    %v1456 = vunpack.c.h.b16 %v214
    %v1457 = vunpack.c.l.b16 %v215
    %v1458 = vunpack.c.h.b16 %v215
    %v1459 = vunpack.c.l.b16 %v216
    %v1460 = vunpack.c.h.b16 %v216
    %v1461 = vunpack.c.l.b16 %v217
    %v1462 = vunpack.c.h.b16 %v217
    %v1463 = vunpack.c.l.b16 %v218
    %v1464 = vunpack.c.h.b16 %v218
    %v1465 = vunpack.c.l.b16 %v219
    %v1466 = vunpack.c.h.b16 %v219
    %v1467 = vunpack.c.l.b16 %v220
    %v1468 = vunpack.c.h.b16 %v220
    %v1469 = vunpack.c.l.b16 %v221
    %v1470 = vunpack.c.h.b16 %v221
    %v1471 = vunpack.c.l.b16 %v222
    %v1472 = vunpack.c.h.b16 %v222
    %v1473 = vunpack.c.l.b16 %v223
    %v1474 = vunpack.c.h.b16 %v223
    %v1475 = vunpack.c.l.b16 %v224
    %v1476 = vunpack.c.h.b16 %v224
    %v1477 = vunpack.c.l.b16 %v225
    %v1478 = vunpack.c.h.b16 %v225
    %v1479 = vunpack.c.l.b16 %v226
    %v1480 = vunpack.c.h.b16 %v226
    %v1481 = vunpack.c.l.b16 %v227
    %v1482 = vunpack.c.h.b16 %v227
    %v1483 = vunpack.c.l.b16 %v228
    %v1484 = vunpack.c.h.b16 %v228
    %v1485 = vunpack.c.l.b16 %v229
    %v1486 = vunpack.c.h.b16 %v229
    %v1487 = vunpack.c.l.b16 %v230
    %v1488 = vunpack.c.h.b16 %v230
    %v1489 = vunpack.c.l.b16 %v231
    %v1490 = vunpack.c.h.b16 %v231
    %v1491 = vunpack.c.l.b16 %v232
    %v1492 = vunpack.c.h.b16 %v232
    %v1493 = vunpack.c.l.b16 %v233
    %v1494 = vunpack.c.h.b16 %v233
    %v1495 = vunpack.c.l.b16 %v234
    %v1496 = vunpack.c.h.b16 %v234
    %v1497 = vunpack.c.l.b16 %v235
    %v1498 = vunpack.c.h.b16 %v235
    %v1499 = vunpack.c.l.b16 %v236
    %v1500 = vunpack.c.h.b16 %v236
    %v1501 = vunpack.c.l.b16 %v237
    %v1502 = vunpack.c.h.b16 %v237
    %v1503 = vunpack.c.l.b16 %v238
    %v1504 = vunpack.c.h.b16 %v238
    %v1505 = vunpack.c.l.b16 %v239
    %v1506 = vunpack.c.h.b16 %v239
    %v1507 = vunpack.c.l.b16 %v240
    %v1508 = vunpack.c.h.b16 %v240
    %v1509 = vunpack.c.l.b16 %v241
    %v1510 = vunpack.c.h.b16 %v241
    %v1511 = vunpack.c.l.b16 %v242
    %v1512 = vunpack.c.h.b16 %v242
    %v1513 = vunpack.c.l.b16 %v243
    %v1514 = vunpack.c.h.b16 %v243
    %v1515 = vunpack.c.l.b16 %v244
    %v1516 = vunpack.c.h.b16 %v244
    %v1517 = vunpack.c.l.b16 %v245
    %v1518 = vunpack.c.h.b16 %v245
    %v1519 = vunpack.c.l.b16 %v246
    %v1520 = vunpack.c.h.b16 %v246
    %v1521 = vunpack.c.l.b16 %v247
    %v1522 = vunpack.c.h.b16 %v247
    %v1523 = vunpack.c.l.b16 %v248
    %v1524 = vunpack.c.h.b16 %v248
    %v1525 = vunpack.c.l.b16 %v249
    %v1526 = vunpack.c.h.b16 %v249
    %v1527 = vunpack.c.l.b16 %v250
    %v1528 = vunpack.c.h.b16 %v250
    %v1529 = vunpack.c.l.b16 %v251
    %v1530 = vunpack.c.h.b16 %v251
    %v1531 = vunpack.c.l.b16 %v252
    %v1532 = vunpack.c.h.b16 %v252
    %v1533 = vunpack.c.l.b16 %v253
    %v1534 = vunpack.c.h.b16 %v253
    %v1535 = vunpack.c.l.b16 %v254
    %v1536 = vunpack.c.h.b16 %v254
    %v1537 = vunpack.c.l.b16 %v255
    %v1538 = vunpack.c.h.b16 %v255
    %v1539 = vunpack.c.l.b16 %v256
    %v1540 = vunpack.c.h.b16 %v256
    %v1541 = vunpack.c.l.b16 %v257
    %v1542 = vunpack.c.h.b16 %v257
    %v1543 = vunpack.c.l.b16 %v258
    %v1544 = vunpack.c.h.b16 %v258
    %v1545 = vunpack.c.l.b16 %v259
    %v1546 = vunpack.c.h.b16 %v259
    %v1547 = vunpack.c.l.b16 %v260
    %v1548 = vunpack.c.h.b16 %v260
    %v1549 = vunpack.c.l.b16 %v261
    %v1550 = vunpack.c.h.b16 %v261
    %v1551 = vunpack.c.l.b16 %v262
    %v1552 = vunpack.c.h.b16 %v262
    %v1553 = vunpack.c.l.b16 %v263
    %v1554 = vunpack.c.h.b16 %v263
    %v1555 = vunpack.c.l.b16 %v264
    %v1556 = vunpack.c.h.b16 %v264
    %v1557 = vunpack.c.l.b16 %v265
    %v1558 = vunpack.c.h.b16 %v265
    %v1559 = vunpack.c.l.b16 %v266
    %v1560 = vunpack.c.h.b16 %v266
    %v1561 = vunpack.c.l.b16 %v267
    %v1562 = vunpack.c.h.b16 %v267
    %v1563 = vunpack.c.l.b16 %v268
    %v1564 = vunpack.c.h.b16 %v268
    %v1565 = vunpack.c.l.b16 %v269
    %v1566 = vunpack.c.h.b16 %v269
    %v1567 = vunpack.c.l.b16 %v270
    %v1568 = vunpack.c.h.b16 %v270
    %v1569 = vunpack.c.l.b16 %v271
    %v1570 = vunpack.c.h.b16 %v271
    %v1571 = vunpack.c.l.b16 %v272
    %v1572 = vunpack.c.h.b16 %v272
    %v1573 = vunpack.c.l.b16 %v273
    %v1574 = vunpack.c.h.b16 %v273
    %v1575 = vunpack.c.l.b16 %v274
    %v1576 = vunpack.c.h.b16 %v274
    %v1577 = vunpack.c.l.b16 %v275
    %v1578 = vunpack.c.h.b16 %v275
    %v1579 = vunpack.c.l.b16 %v276
    %v1580 = vunpack.c.h.b16 %v276
    %v1581 = vunpack.c.l.b16 %v277
    %v1582 = vunpack.c.h.b16 %v277
    %v1583 = vunpack.c.l.b16 %v278
    %v1584 = vunpack.c.h.b16 %v278
    %v1585 = vunpack.c.l.b16 %v279
    %v1586 = vunpack.c.h.b16 %v279
    %v1587 = vunpack.c.l.b16 %v280
    %v1588 = vunpack.c.h.b16 %v280
    %v1589 = vunpack.c.l.b16 %v281
    %v1590 = vunpack.c.h.b16 %v281
    %v1591 = vunpack.c.l.b16 %v282
    %v1592 = vunpack.c.h.b16 %v282
    %v1593 = vunpack.c.l.b16 %v283
    %v1594 = vunpack.c.h.b16 %v283
    %v1595 = vunpack.c.l.b16 %v284
    %v1596 = vunpack.c.h.b16 %v284
    %v1597 = vunpack.c.l.b16 %v285
    %v1598 = vunpack.c.h.b16 %v285
    %v1599 = vunpack.c.l.b16 %v286
    %v1600 = vunpack.c.h.b16 %v286
    %v1601 = vunpack.c.l.b16 %v287
    %v1602 = vunpack.c.h.b16 %v287
    %v1603 = vunpack.c.l.b16 %v288
    %v1604 = vunpack.c.h.b16 %v288
    %v1605 = vunpack.c.l.b16 %v289
    %v1606 = vunpack.c.h.b16 %v289
    %v1607 = vunpack.c.l.b16 %v290
    %v1608 = vunpack.c.h.b16 %v290
    %v1609 = vunpack.c.l.b16 %v291
    %v1610 = vunpack.c.h.b16 %v291
    %v1611 = vunpack.c.l.b16 %v292
    %v1612 = vunpack.c.h.b16 %v292
    %v1613 = vunpack.c.l.b16 %v293
    %v1614 = vunpack.c.h.b16 %v293
    %v1615 = vunpack.c.l.b16 %v294
    %v1616 = vunpack.c.h.b16 %v294
    %v1617 = vunpack.c.l.b16 %v295
    %v1618 = vunpack.c.h.b16 %v295
    %v1619 = vunpack.c.l.b16 %v296
    %v1620 = vunpack.c.h.b16 %v296
    %v1621 = vunpack.c.l.b16 %v297
    %v1622 = vunpack.c.h.b16 %v297
    %v1623 = vunpack.c.l.b16 %v298
    %v1624 = vunpack.c.h.b16 %v298
    %v1625 = vunpack.c.l.b16 %v299
    %v1626 = vunpack.c.h.b16 %v299
    %v1627 = vunpack.c.l.b16 %v300
    %v1628 = vunpack.c.h.b16 %v300
    %v1629 = vunpack.c.l.b16 %v301
    %v1630 = vunpack.c.h.b16 %v301
    %v1631 = vunpack.c.l.b16 %v302
    %v1632 = vunpack.c.h.b16 %v302
    %v1633 = vunpack.c.l.b16 %v303
    %v1634 = vunpack.c.h.b16 %v303
    %v1635 = vunpack.c.l.b16 %v304
    %v1636 = vunpack.c.h.b16 %v304
    %v1637 = vunpack.c.l.b16 %v305
    %v1638 = vunpack.c.h.b16 %v305
    %v1639 = vunpack.c.l.b16 %v306
    %v1640 = vunpack.c.h.b16 %v306
    %v1641 = vunpack.c.l.b16 %v307
    %v1642 = vunpack.c.h.b16 %v307
    %v1643 = vunpack.c.l.b16 %v308
    %v1644 = vunpack.c.h.b16 %v308
    %v1645 = vunpack.c.l.b16 %v309
    %v1646 = vunpack.c.h.b16 %v309
    %v1647 = vunpack.c.l.b16 %v310
    %v1648 = vunpack.c.h.b16 %v310
    %v1649 = vunpack.c.l.b16 %v311
    %v1650 = vunpack.c.h.b16 %v311
    %v1651 = vunpack.c.l.b16 %v312
    %v1652 = vunpack.c.h.b16 %v312
    %v1653 = vunpack.c.l.b16 %v313
    %v1654 = vunpack.c.h.b16 %v313
    %v1655 = vunpack.c.l.b16 %v314
    %v1656 = vunpack.c.h.b16 %v314
    %v1657 = vunpack.c.l.b16 %v315
    %v1658 = vunpack.c.h.b16 %v315
    %v1659 = vunpack.c.l.b16 %v316
    %v1660 = vunpack.c.h.b16 %v316
    %v1661 = vunpack.c.l.b16 %v317
    %v1662 = vunpack.c.h.b16 %v317
    %v1663 = vunpack.c.l.b16 %v318
    %v1664 = vunpack.c.h.b16 %v318
    %v1665 = vunpack.c.l.b16 %v319
    %v1666 = vunpack.c.h.b16 %v319
    %v1667 = vunpack.c.l.b16 %v320
    %v1668 = vunpack.c.h.b16 %v320
    %v1669 = vunpack.c.l.b16 %v321
    %v1670 = vunpack.c.h.b16 %v321
    %v1671 = vunpack.c.l.b16 %v322
    %v1672 = vunpack.c.h.b16 %v322
    %v1673 = vunpack.c.l.b16 %v323
    %v1674 = vunpack.c.h.b16 %v323
    %v1675 = vunpack.c.l.b16 %v324
    %v1676 = vunpack.c.h.b16 %v324
    %v1677 = vunpack.c.l.b16 %v325
    %v1678 = vunpack.c.h.b16 %v325
    %v1679 = vunpack.c.l.b16 %v326
    %v1680 = vunpack.c.h.b16 %v326
    %v1681 = vunpack.c.l.b16 %v327
    %v1682 = vunpack.c.h.b16 %v327
    %v1683 = vunpack.c.l.b16 %v328
    %v1684 = vunpack.c.h.b16 %v328
    %v1685 = vunpack.c.l.b16 %v329
    %v1686 = vunpack.c.h.b16 %v329
    %v1687 = vunpack.c.l.b16 %v330
    %v1688 = vunpack.c.h.b16 %v330
    %v1689 = vunpack.c.l.b16 %v331
    %v1690 = vunpack.c.h.b16 %v331
    %v1691 = vunpack.c.l.b16 %v332
    %v1692 = vunpack.c.h.b16 %v332
    %v1693 = vunpack.c.l.b16 %v333
    %v1694 = vunpack.c.h.b16 %v333
    %v1695 = vunpack.c.l.b16 %v334
    %v1696 = vunpack.c.h.b16 %v334
    %v1697 = vunpack.c.l.b16 %v335
    %v1698 = vunpack.c.h.b16 %v335
    %v1699 = vunpack.c.l.b16 %v336
    %v1700 = vunpack.c.h.b16 %v336
    %v1701 = vunpack.c.l.b16 %v337
    %v1702 = vunpack.c.h.b16 %v337
    %v1703 = vunpack.c.l.b16 %v338
    %v1704 = vunpack.c.h.b16 %v338
    %v1705 = vunpack.c.l.b16 %v339
    %v1706 = vunpack.c.h.b16 %v339
    %v1707 = vunpack.c.l.b16 %v340
    %v1708 = vunpack.c.h.b16 %v340
    %v1709 = vunpack.c.l.b16 %v341
    %v1710 = vunpack.c.h.b16 %v341
    %v1711 = vunpack.c.l.b16 %v342
    %v1712 = vunpack.c.h.b16 %v342
    %v1713 = vunpack.c.l.b16 %v343
    %v1714 = vunpack.c.h.b16 %v343
    %v1715 = vunpack.c.l.b16 %v344
    %v1716 = vunpack.c.h.b16 %v344
    %v1717 = vunpack.c.l.b16 %v345
    %v1718 = vunpack.c.h.b16 %v345
    %v1719 = vunpack.c.l.b16 %v346
    %v1720 = vunpack.c.h.b16 %v346
    %v1721 = vunpack.c.l.b16 %v347
    %v1722 = vunpack.c.h.b16 %v347
    %v1723 = vunpack.c.l.b16 %v348
    %v1724 = vunpack.c.h.b16 %v348
    %v1725 = vunpack.c.l.b16 %v349
    %v1726 = vunpack.c.h.b16 %v349
    %v1727 = vunpack.c.l.b16 %v350
    %v1728 = vunpack.c.h.b16 %v350
    %v1729 = vunpack.c.l.b16 %v351
    %v1730 = vunpack.c.h.b16 %v351
    %v1731 = vunpack.c.l.b16 %v352
    %v1732 = vunpack.c.h.b16 %v352
    %v1733 = vunpack.c.l.b16 %v353
    %v1734 = vunpack.c.h.b16 %v353
    %v1735 = vunpack.c.l.b16 %v354
    %v1736 = vunpack.c.h.b16 %v354
    %v1737 = vunpack.c.l.b16 %v355
    %v1738 = vunpack.c.h.b16 %v355
    %v1739 = vunpack.c.l.b16 %v356
    %v1740 = vunpack.c.h.b16 %v356
    %v1741 = vunpack.c.l.b16 %v357
    %v1742 = vunpack.c.h.b16 %v357
    %v1743 = vunpack.c.l.b16 %v358
    %v1744 = vunpack.c.h.b16 %v358
    %v1745 = vunpack.c.l.b16 %v359
    %v1746 = vunpack.c.h.b16 %v359
    %v1747 = vunpack.c.l.b16 %v360
    %v1748 = vunpack.c.h.b16 %v360
    %v1749 = vunpack.c.l.b16 %v361
    %v1750 = vunpack.c.h.b16 %v361
    %v1751 = vunpack.c.l.b16 %v362
    %v1752 = vunpack.c.h.b16 %v362
    %v1753 = vunpack.c.l.b16 %v363
    %v1754 = vunpack.c.h.b16 %v363
    %v1755 = vunpack.c.l.b16 %v364
    %v1756 = vunpack.c.h.b16 %v364
    %v1757 = vunpack.c.l.b16 %v365
    %v1758 = vunpack.c.h.b16 %v365
    %v1759 = vunpack.c.l.b16 %v366
    %v1760 = vunpack.c.h.b16 %v366
    %v1761 = vunpack.c.l.b16 %v367
    %v1762 = vunpack.c.h.b16 %v367
    %v1763 = vunpack.c.l.b16 %v368
    %v1764 = vunpack.c.h.b16 %v368
    %v1765 = vunpack.c.l.b16 %v369
    %v1766 = vunpack.c.h.b16 %v369
    %v1767 = vunpack.c.l.b16 %v370
    %v1768 = vunpack.c.h.b16 %v370
    %v1769 = vunpack.c.l.b16 %v371
    %v1770 = vunpack.c.h.b16 %v371
    %v1771 = vunpack.c.l.b16 %v372
    %v1772 = vunpack.c.h.b16 %v372
    %v1773 = vunpack.c.l.b16 %v373
    %v1774 = vunpack.c.h.b16 %v373
    %v1775 = vunpack.c.l.b16 %v374
    %v1776 = vunpack.c.h.b16 %v374
    %v1777 = vunpack.c.l.b16 %v375
    %v1778 = vunpack.c.h.b16 %v375
    %v1779 = vunpack.c.l.b16 %v376
    %v1780 = vunpack.c.h.b16 %v376
    %v1781 = vunpack.c.l.b16 %v377
    %v1782 = vunpack.c.h.b16 %v377
    %v1783 = vunpack.c.l.b16 %v378
    %v1784 = vunpack.c.h.b16 %v378
    %v1785 = vunpack.c.l.b16 %v379
    %v1786 = vunpack.c.h.b16 %v379
    %v1787 = vunpack.c.l.b16 %v380
    %v1788 = vunpack.c.h.b16 %v380
    %v1789 = vunpack.c.l.b16 %v381
    %v1790 = vunpack.c.h.b16 %v381
    %v1791 = vunpack.c.l.b16 %v382
    %v1792 = vunpack.c.h.b16 %v382
    %v1793 = vunpack.c.l.b16 %v383
    %v1794 = vunpack.c.h.b16 %v383
    %v1795 = vunpack.c.l.b16 %v384
    %v1796 = vunpack.c.h.b16 %v384
    %v1797 = vunpack.c.l.b16 %v385
    %v1798 = vunpack.c.h.b16 %v385
    %v1799 = vunpack.c.l.b16 %v386
    %v1800 = vunpack.c.h.b16 %v386
    %v1801 = vunpack.c.l.b16 %v387
    %v1802 = vunpack.c.h.b16 %v387
    %v1803 = vunpack.c.l.b16 %v388
    %v1804 = vunpack.c.h.b16 %v388
    %v1805 = vunpack.c.l.b16 %v389
    %v1806 = vunpack.c.h.b16 %v389
    %v1807 = vunpack.c.l.b16 %v390
    %v1808 = vunpack.c.h.b16 %v390
    %v1809 = vunpack.c.l.b16 %v391
    %v1810 = vunpack.c.h.b16 %v391
    %v1811 = vunpack.c.l.b16 %v392
    %v1812 = vunpack.c.h.b16 %v392
    %v1813 = vunpack.c.l.b16 %v393
    %v1814 = vunpack.c.h.b16 %v393
    %v1815 = vunpack.c.l.b16 %v394
    %v1816 = vunpack.c.h.b16 %v394
    %v1817 = vunpack.c.l.b16 %v395
    %v1818 = vunpack.c.h.b16 %v395
    %v1819 = vunpack.c.l.b16 %v396
    %v1820 = vunpack.c.h.b16 %v396
    %v1821 = vunpack.c.l.b16 %v397
    %v1822 = vunpack.c.h.b16 %v397
    %v1823 = vunpack.c.l.b16 %v398
    %v1824 = vunpack.c.h.b16 %v398
    %v1825 = vunpack.c.l.b16 %v399
    %v1826 = vunpack.c.h.b16 %v399
    %v1827 = vunpack.c.l.b16 %v400
    %v1828 = vunpack.c.h.b16 %v400
    %v1829 = vunpack.c.l.b16 %v401
    %v1830 = vunpack.c.h.b16 %v401
    %v1831 = vunpack.c.l.b16 %v402
    %v1832 = vunpack.c.h.b16 %v402
    %v1833 = vunpack.c.l.b16 %v403
    %v1834 = vunpack.c.h.b16 %v403
    %v1835 = vunpack.c.l.b16 %v404
    %v1836 = vunpack.c.h.b16 %v404
    %v1837 = vunpack.c.l.b16 %v405
    %v1838 = vunpack.c.h.b16 %v405
    %v1839 = vunpack.c.l.b16 %v406
    %v1840 = vunpack.c.h.b16 %v406
    %v1841 = vunpack.c.l.b16 %v407
    %v1842 = vunpack.c.h.b16 %v407
    %v1843 = vunpack.c.l.b16 %v408
    %v1844 = vunpack.c.h.b16 %v408
    %v1845 = vunpack.c.l.b16 %v409
    %v1846 = vunpack.c.h.b16 %v409
    %v1847 = vunpack.c.l.b16 %v410
    %v1848 = vunpack.c.h.b16 %v410
    %v1849 = vunpack.c.l.b16 %v411
    %v1850 = vunpack.c.h.b16 %v411
    %v1851 = vunpack.c.l.b16 %v412
    %v1852 = vunpack.c.h.b16 %v412
    %v1853 = vunpack.c.l.b16 %v413
    %v1854 = vunpack.c.h.b16 %v413
    %v1855 = vunpack.c.l.b16 %v414
    %v1856 = vunpack.c.h.b16 %v414
    %v1857 = vunpack.c.l.b16 %v415
    %v1858 = vunpack.c.h.b16 %v415
    %v1859 = vunpack.c.l.b16 %v416
    %v1860 = vunpack.c.h.b16 %v416
    %v1861 = vunpack.c.l.b16 %v417
    %v1862 = vunpack.c.h.b16 %v417
    %v1863 = vunpack.c.l.b16 %v418
    %v1864 = vunpack.c.h.b16 %v418
    %v1865 = vunpack.c.l.b16 %v419
    %v1866 = vunpack.c.h.b16 %v419
    %v1867 = vunpack.c.l.b16 %v420
    %v1868 = vunpack.c.h.b16 %v420
    %v1869 = vunpack.c.l.b16 %v421
    %v1870 = vunpack.c.h.b16 %v421
    %v1871 = vunpack.c.l.b16 %v422
    %v1872 = vunpack.c.h.b16 %v422
    %v1873 = vunpack.c.l.b16 %v423
    %v1874 = vunpack.c.h.b16 %v423
    %v1875 = vunpack.c.l.b16 %v424
    %v1876 = vunpack.c.h.b16 %v424
    %v1877 = vunpack.c.l.b16 %v425
    %v1878 = vunpack.c.h.b16 %v425
    %v1879 = vunpack.c.l.b16 %v426
    %v1880 = vunpack.c.h.b16 %v426
    %v1881 = vunpack.c.l.b16 %v427
    %v1882 = vunpack.c.h.b16 %v427
    %v1883 = vunpack.c.l.b16 %v428
    %v1884 = vunpack.c.h.b16 %v428
    %v1885 = vunpack.c.l.b16 %v429
    %v1886 = vunpack.c.h.b16 %v429
    %v1887 = vunpack.c.l.b16 %v430
    %v1888 = vunpack.c.h.b16 %v430
    %v1889 = vunpack.c.l.b16 %v431
    %v1890 = vunpack.c.h.b16 %v431
    %v1891 = vunpack.c.l.b16 %v432
    %v1892 = vunpack.c.h.b16 %v432
    %v1893 = vunpack.c.l.b16 %v433
    %v1894 = vunpack.c.h.b16 %v433
    %v1895 = vunpack.c.l.b16 %v434
    %v1896 = vunpack.c.h.b16 %v434
    %v1897 = vunpack.c.l.b16 %v435
    %v1898 = vunpack.c.h.b16 %v435
    %v1899 = vunpack.c.l.b16 %v436
    %v1900 = vunpack.c.h.b16 %v436
    %v1901 = vunpack.c.l.b16 %v437
    %v1902 = vunpack.c.h.b16 %v437
    %v1903 = vunpack.c.l.b16 %v438
    %v1904 = vunpack.c.h.b16 %v438
    %v1905 = vunpack.c.l.b16 %v439
    %v1906 = vunpack.c.h.b16 %v439
    %v1907 = vunpack.c.l.b16 %v440
    %v1908 = vunpack.c.h.b16 %v440
    %v1909 = vunpack.c.l.b16 %v441
    %v1910 = vunpack.c.h.b16 %v441
    %v1911 = vunpack.c.l.b16 %v442
    %v1912 = vunpack.c.h.b16 %v442
    %v1913 = vunpack.c.l.b16 %v443
    %v1914 = vunpack.c.h.b16 %v443
    %v1915 = vunpack.c.l.b16 %v444
    %v1916 = vunpack.c.h.b16 %v444
    %v1917 = vunpack.c.l.b16 %v445
    %v1918 = vunpack.c.h.b16 %v445
    %v1919 = vunpack.c.l.b16 %v446
    %v1920 = vunpack.c.h.b16 %v446
    %v1921 = vunpack.c.l.b16 %v447
    %v1922 = vunpack.c.h.b16 %v447
    %v1923 = vunpack.c.l.b16 %v448
    %v1924 = vunpack.c.h.b16 %v448
    %v1925 = vunpack.c.l.b16 %v449
    %v1926 = vunpack.c.h.b16 %v449
    %v1927 = vunpack.c.l.b16 %v450
    %v1928 = vunpack.c.h.b16 %v450
    %v1929 = vunpack.c.l.b16 %v451
    %v1930 = vunpack.c.h.b16 %v451
    %v1931 = vunpack.c.l.b16 %v452
    %v1932 = vunpack.c.h.b16 %v452
    %v1933 = vunpack.c.l.b16 %v453
    %v1934 = vunpack.c.h.b16 %v453
    %v1935 = vunpack.c.l.b16 %v454
    %v1936 = vunpack.c.h.b16 %v454
    %v1937 = vunpack.c.l.b16 %v455
    %v1938 = vunpack.c.h.b16 %v455
    %v1939 = vunpack.c.l.b16 %v456
    %v1940 = vunpack.c.h.b16 %v456
    %v1941 = vunpack.c.l.b16 %v457
    %v1942 = vunpack.c.h.b16 %v457
    %v1943 = vunpack.c.l.b16 %v458
    %v1944 = vunpack.c.h.b16 %v458
    %v1945 = vunpack.c.l.b16 %v459
    %v1946 = vunpack.c.h.b16 %v459
    %v1947 = vunpack.c.l.b16 %v460
    %v1948 = vunpack.c.h.b16 %v460
    %v1949 = vunpack.c.l.b16 %v461
    %v1950 = vunpack.c.h.b16 %v461
    %v1951 = vunpack.c.l.b16 %v462
    %v1952 = vunpack.c.h.b16 %v462
    %v1953 = vunpack.c.l.b16 %v463
    %v1954 = vunpack.c.h.b16 %v463
    %v1955 = vunpack.c.l.b16 %v464
    %v1956 = vunpack.c.h.b16 %v464
    %v1957 = vunpack.c.l.b16 %v465
    %v1958 = vunpack.c.h.b16 %v465
    %v1959 = vunpack.c.l.b16 %v466
    %v1960 = vunpack.c.h.b16 %v466
    %v1961 = vunpack.c.l.b16 %v467
    %v1962 = vunpack.c.h.b16 %v467
    %v1963 = vunpack.c.l.b16 %v468
    %v1964 = vunpack.c.h.b16 %v468
    %v1965 = vunpack.c.l.b16 %v469
    %v1966 = vunpack.c.h.b16 %v469
    %v1967 = vunpack.c.l.b16 %v470
    %v1968 = vunpack.c.h.b16 %v470
    %v1969 = vunpack.c.l.b16 %v471
    %v1970 = vunpack.c.h.b16 %v471
    %v1971 = vunpack.c.l.b16 %v472
    %v1972 = vunpack.c.h.b16 %v472
    %v1973 = vunpack.c.l.b16 %v473
    %v1974 = vunpack.c.h.b16 %v473
    %v1975 = vunpack.c.l.b16 %v474
    %v1976 = vunpack.c.h.b16 %v474
    %v1977 = vunpack.c.l.b16 %v475
    %v1978 = vunpack.c.h.b16 %v475
    %v1979 = vunpack.c.l.b16 %v476
    %v1980 = vunpack.c.h.b16 %v476
    %v1981 = vunpack.c.l.b16 %v477
    %v1982 = vunpack.c.h.b16 %v477
    %v1983 = vunpack.c.l.b16 %v478
    %v1984 = vunpack.c.h.b16 %v478
    %v1985 = vunpack.c.l.b16 %v479
    %v1986 = vunpack.c.h.b16 %v479
    %v1987 = vunpack.c.l.b16 %v480
    %v1988 = vunpack.c.h.b16 %v480
    %v1989 = vunpack.c.l.b16 %v481
    %v1990 = vunpack.c.h.b16 %v481
    %v1991 = vunpack.c.l.b16 %v482
    %v1992 = vunpack.c.h.b16 %v482
    %v1993 = vunpack.c.l.b16 %v483
    %v1994 = vunpack.c.h.b16 %v483
    %v1995 = vunpack.c.l.b16 %v484
    %v1996 = vunpack.c.h.b16 %v484
    %v1997 = vunpack.c.l.b16 %v485
    %v1998 = vunpack.c.h.b16 %v485
    %v1999 = vunpack.c.l.b16 %v486
    %v2000 = vunpack.c.h.b16 %v486
    %v2001 = vunpack.c.l.b16 %v487
    %v2002 = vunpack.c.h.b16 %v487
    %v2003 = vunpack.c.l.b16 %v488
    %v2004 = vunpack.c.h.b16 %v488
    %v2005 = vunpack.c.l.b16 %v489
    %v2006 = vunpack.c.h.b16 %v489
    %v2007 = vunpack.c.l.b16 %v490
    %v2008 = vunpack.c.h.b16 %v490
    %v2009 = vunpack.c.l.b16 %v491
    %v2010 = vunpack.c.h.b16 %v491
    %v2011 = vunpack.c.l.b16 %v492
    %v2012 = vunpack.c.h.b16 %v492
    %v2013 = vunpack.c.l.b16 %v493
    %v2014 = vunpack.c.h.b16 %v493
    %v2015 = vunpack.c.l.b16 %v494
    %v2016 = vunpack.c.h.b16 %v494
    %v2017 = vunpack.c.l.b16 %v495
    %v2018 = vunpack.c.h.b16 %v495
    %v2019 = vunpack.c.l.b16 %v496
    %v2020 = vunpack.c.h.b16 %v496
    %v2021 = vunpack.c.l.b16 %v497
    %v2022 = vunpack.c.h.b16 %v497
    %v2023 = vunpack.c.l.b16 %v498
    %v2024 = vunpack.c.h.b16 %v498
    %v2025 = vunpack.c.l.b16 %v499
    %v2026 = vunpack.c.h.b16 %v499
    %v2027 = vunpack.c.l.b16 %v500
    %v2028 = vunpack.c.h.b16 %v500
    %v2029 = vunpack.c.l.b16 %v501
    %v2030 = vunpack.c.h.b16 %v501
    %v2031 = vunpack.c.l.b16 %v502
    %v2032 = vunpack.c.h.b16 %v502
    %v2033 = vunpack.c.l.b16 %v503
    %v2034 = vunpack.c.h.b16 %v503
    %v2035 = vunpack.c.l.b16 %v504
    %v2036 = vunpack.c.h.b16 %v504
    %v2037 = vunpack.c.l.b16 %v505
    %v2038 = vunpack.c.h.b16 %v505
    %v2039 = vunpack.c.l.b16 %v506
    %v2040 = vunpack.c.h.b16 %v506
    %v2041 = vunpack.c.l.b16 %v507
    %v2042 = vunpack.c.h.b16 %v507
    %v2043 = vunpack.c.l.b16 %v508
    %v2044 = vunpack.c.h.b16 %v508
    %v2045 = vunpack.c.l.b16 %v509
    %v2046 = vunpack.c.h.b16 %v509
    %v2047 = vunpack.c.l.b16 %v510
    %v2048 = vunpack.c.h.b16 %v510
    %v2049 = vunpack.c.l.b16 %v511
    %v2050 = vunpack.c.h.b16 %v511
    %v2051 = vunpack.c.l.b16 %v512
    %v2052 = vunpack.c.h.b16 %v512
    %v2053 = vunpack.c.l.b16 %v513
    %v2054 = vunpack.c.h.b16 %v513
    %v2055 = vunpack.c.l.b16 %v514
    %v2056 = vunpack.c.h.b16 %v514
    %v2057 = vunpack.c.l.b16 %v515
    %v2058 = vunpack.c.h.b16 %v515
    %v2059 = vunpack.c.l.b16 %v516
    %v2060 = vunpack.c.h.b16 %v516
    %v2061 = vunpack.c.l.b16 %v517
    %v2062 = vunpack.c.h.b16 %v517
    %v2063 = vunpack.c.l.b16 %v518
    %v2064 = vunpack.c.h.b16 %v518
    %v2065 = vunpack.c.l.b16 %v519
    %v2066 = vunpack.c.h.b16 %v519
    %v2067 = vunpack.c.l.b16 %v520
    %v2068 = vunpack.c.h.b16 %v520
    %v2069 = vunpack.c.l.b16 %v521
    %v2070 = vunpack.c.h.b16 %v521
    %v2071 = vunpack.c.l.b16 %v522
    %v2072 = vunpack.c.h.b16 %v522
    %v2073 = vunpack.c.l.b16 %v523
    %v2074 = vunpack.c.h.b16 %v523
    %v2075 = vunpack.c.l.b16 %v524
    %v2076 = vunpack.c.h.b16 %v524
    %v2077 = vunpack.c.l.b16 %v525
    %v2078 = vunpack.c.h.b16 %v525
    %v2079 = vunpack.c.l.b16 %v526
    %v2080 = vunpack.c.h.b16 %v526
    %v2081 = vunpack.c.l.b16 %v527
    %v2082 = vunpack.c.h.b16 %v527
    %v2083 = vunpack.c.l.b16 %v528
    %v2084 = vunpack.c.h.b16 %v528
    %v2085 = vunpack.c.l.b16 %v529
    %v2086 = vunpack.c.h.b16 %v529
    %v2087 = vunpack.c.l.b16 %v530
    %v2088 = vunpack.c.h.b16 %v530
    %v2089 = vunpack.c.l.b16 %v531
    %v2090 = vunpack.c.h.b16 %v531
    %v2091 = vunpack.c.l.b16 %v532
    %v2092 = vunpack.c.h.b16 %v532
    %v2093 = vunpack.c.l.b16 %v533
    %v2094 = vunpack.c.h.b16 %v533
    %v2095 = vunpack.c.l.b16 %v534
    %v2096 = vunpack.c.h.b16 %v534
    %v2097 = vunpack.c.l.b16 %v535
    %v2098 = vunpack.c.h.b16 %v535
    %v2099 = vunpack.c.l.b16 %v536
    %v2100 = vunpack.c.h.b16 %v536
    %v2101 = vunpack.c.l.b16 %v537
    %v2102 = vunpack.c.h.b16 %v537
    %v2103 = vunpack.c.l.b16 %v538
    %v2104 = vunpack.c.h.b16 %v538
    %v2105 = vunpack.c.l.b16 %v539
    %v2106 = vunpack.c.h.b16 %v539
    %v2107 = vunpack.c.l.b16 %v540
    %v2108 = vunpack.c.h.b16 %v540
    %v2109 = vunpack.c.l.b16 %v541
    %v2110 = vunpack.c.h.b16 %v541
    %v2111 = vunpack.c.l.b16 %v542
    %v2112 = vunpack.c.h.b16 %v542
    %v2113 = vunpack.c.l.b16 %v543
    %v2114 = vunpack.c.h.b16 %v543
    %v2115 = vunpack.c.l.b16 %v544
    %v2116 = vunpack.c.h.b16 %v544
    %v2117 = vpack.c.b16 %v1109, %v1093
    %v2118 = vpack.c.b16 %v1110, %v1094
    %v2119 = vpack.c.b16 %v1111, %v1095
    %v2120 = vpack.c.b16 %v1112, %v1096
    %v2121 = vpack.c.b16 %v1113, %v1097
    %v2122 = vpack.c.b16 %v1114, %v1098
    %v2123 = vpack.c.b16 %v1115, %v1099
    %v2124 = vpack.c.b16 %v1116, %v1100
    %v2125 = vpack.c.b16 %v1117, %v1101
    %v2126 = vpack.c.b16 %v1118, %v1102
    %v2127 = vpack.c.b16 %v1119, %v1103
    %v2128 = vpack.c.b16 %v1120, %v1104
    %v2129 = vpack.c.b16 %v1121, %v1105
    %v2130 = vpack.c.b16 %v1122, %v1106
    %v2131 = vpack.c.b16 %v1123, %v1107
    %v2132 = vpack.c.b16 %v1124, %v1108
    %v2133 = vpack.c.b16 %v1141, %v1125
    %v2134 = vpack.c.b16 %v1142, %v1126
    %v2135 = vpack.c.b16 %v1143, %v1127
    %v2136 = vpack.c.b16 %v1144, %v1128
    %v2137 = vpack.c.b16 %v1145, %v1129
    %v2138 = vpack.c.b16 %v1146, %v1130
    %v2139 = vpack.c.b16 %v1147, %v1131
    %v2140 = vpack.c.b16 %v1148, %v1132
    %v2141 = vpack.c.b16 %v1149, %v1133
    %v2142 = vpack.c.b16 %v1150, %v1134
    %v2143 = vpack.c.b16 %v1151, %v1135
    %v2144 = vpack.c.b16 %v1152, %v1136
    %v2145 = vpack.c.b16 %v1153, %v1137
    %v2146 = vpack.c.b16 %v1154, %v1138
    %v2147 = vpack.c.b16 %v1155, %v1139
    %v2148 = vpack.c.b16 %v1156, %v1140
    %v2149 = vpack.c.b16 %v1173, %v1157
    %v2150 = vpack.c.b16 %v1174, %v1158
    %v2151 = vpack.c.b16 %v1175, %v1159
    %v2152 = vpack.c.b16 %v1176, %v1160
    %v2153 = vpack.c.b16 %v1177, %v1161
    %v2154 = vpack.c.b16 %v1178, %v1162
    %v2155 = vpack.c.b16 %v1179, %v1163
    %v2156 = vpack.c.b16 %v1180, %v1164
    %v2157 = vpack.c.b16 %v1181, %v1165
    %v2158 = vpack.c.b16 %v1182, %v1166
    %v2159 = vpack.c.b16 %v1183, %v1167
    %v2160 = vpack.c.b16 %v1184, %v1168
    %v2161 = vpack.c.b16 %v1185, %v1169
    %v2162 = vpack.c.b16 %v1186, %v1170
    %v2163 = vpack.c.b16 %v1187, %v1171
    %v2164 = vpack.c.b16 %v1188, %v1172
    %v2165 = vpack.c.b16 %v1205, %v1189
    %v2166 = vpack.c.b16 %v1206, %v1190
    %v2167 = vpack.c.b16 %v1207, %v1191
    %v2168 = vpack.c.b16 %v1208, %v1192
    %v2169 = vpack.c.b16 %v1209, %v1193
    %v2170 = vpack.c.b16 %v1210, %v1194
    %v2171 = vpack.c.b16 %v1211, %v1195
    %v2172 = vpack.c.b16 %v1212, %v1196
    %v2173 = vpack.c.b16 %v1213, %v1197
    %v2174 = vpack.c.b16 %v1214, %v1198
    %v2175 = vpack.c.b16 %v1215, %v1199
    %v2176 = vpack.c.b16 %v1216, %v1200
    %v2177 = vpack.c.b16 %v1217, %v1201
    %v2178 = vpack.c.b16 %v1218, %v1202
    %v2179 = vpack.c.b16 %v1219, %v1203
    %v2180 = vpack.c.b16 %v1220, %v1204
    %v2181 = vpack.c.b16 %v1237, %v1221
    %v2182 = vpack.c.b16 %v1238, %v1222
    %v2183 = vpack.c.b16 %v1239, %v1223
    %v2184 = vpack.c.b16 %v1240, %v1224
    %v2185 = vpack.c.b16 %v1241, %v1225
    %v2186 = vpack.c.b16 %v1242, %v1226
    %v2187 = vpack.c.b16 %v1243, %v1227
    %v2188 = vpack.c.b16 %v1244, %v1228
    %v2189 = vpack.c.b16 %v1245, %v1229
    %v2190 = vpack.c.b16 %v1246, %v1230
    %v2191 = vpack.c.b16 %v1247, %v1231
    %v2192 = vpack.c.b16 %v1248, %v1232
    %v2193 = vpack.c.b16 %v1249, %v1233
    %v2194 = vpack.c.b16 %v1250, %v1234
    %v2195 = vpack.c.b16 %v1251, %v1235
    %v2196 = vpack.c.b16 %v1252, %v1236
    %v2197 = vpack.c.b16 %v1269, %v1253
    %v2198 = vpack.c.b16 %v1270, %v1254
    %v2199 = vpack.c.b16 %v1271, %v1255
    %v2200 = vpack.c.b16 %v1272, %v1256
    %v2201 = vpack.c.b16 %v1273, %v1257
    %v2202 = vpack.c.b16 %v1274, %v1258
    %v2203 = vpack.c.b16 %v1275, %v1259
    %v2204 = vpack.c.b16 %v1276, %v1260
    %v2205 = vpack.c.b16 %v1277, %v1261
    %v2206 = vpack.c.b16 %v1278, %v1262
    %v2207 = vpack.c.b16 %v1279, %v1263
    %v2208 = vpack.c.b16 %v1280, %v1264
    %v2209 = vpack.c.b16 %v1281, %v1265
    %v2210 = vpack.c.b16 %v1282, %v1266
    %v2211 = vpack.c.b16 %v1283, %v1267
    %v2212 = vpack.c.b16 %v1284, %v1268
    %v2213 = vpack.c.b16 %v1301, %v1285
    %v2214 = vpack.c.b16 %v1302, %v1286
    %v2215 = vpack.c.b16 %v1303, %v1287
    %v2216 = vpack.c.b16 %v1304, %v1288
    %v2217 = vpack.c.b16 %v1305, %v1289
    %v2218 = vpack.c.b16 %v1306, %v1290
    %v2219 = vpack.c.b16 %v1307, %v1291
    %v2220 = vpack.c.b16 %v1308, %v1292
    %v2221 = vpack.c.b16 %v1309, %v1293
    %v2222 = vpack.c.b16 %v1310, %v1294
    %v2223 = vpack.c.b16 %v1311, %v1295
    %v2224 = vpack.c.b16 %v1312, %v1296
    %v2225 = vpack.c.b16 %v1313, %v1297
    %v2226 = vpack.c.b16 %v1314, %v1298
    %v2227 = vpack.c.b16 %v1315, %v1299
    %v2228 = vpack.c.b16 %v1316, %v1300
    %v2229 = vpack.c.b16 %v1333, %v1317
    %v2230 = vpack.c.b16 %v1334, %v1318
    %v2231 = vpack.c.b16 %v1335, %v1319
    %v2232 = vpack.c.b16 %v1336, %v1320
    %v2233 = vpack.c.b16 %v1337, %v1321
    %v2234 = vpack.c.b16 %v1338, %v1322
    %v2235 = vpack.c.b16 %v1339, %v1323
    %v2236 = vpack.c.b16 %v1340, %v1324
    %v2237 = vpack.c.b16 %v1341, %v1325
    %v2238 = vpack.c.b16 %v1342, %v1326
    %v2239 = vpack.c.b16 %v1343, %v1327
    %v2240 = vpack.c.b16 %v1344, %v1328
    %v2241 = vpack.c.b16 %v1345, %v1329
    %v2242 = vpack.c.b16 %v1346, %v1330
    %v2243 = vpack.c.b16 %v1347, %v1331
    %v2244 = vpack.c.b16 %v1348, %v1332
    %v2245 = vpack.c.b16 %v1365, %v1349
    %v2246 = vpack.c.b16 %v1366, %v1350
    %v2247 = vpack.c.b16 %v1367, %v1351
    %v2248 = vpack.c.b16 %v1368, %v1352
    %v2249 = vpack.c.b16 %v1369, %v1353
    %v2250 = vpack.c.b16 %v1370, %v1354
    %v2251 = vpack.c.b16 %v1371, %v1355
    %v2252 = vpack.c.b16 %v1372, %v1356
    %v2253 = vpack.c.b16 %v1373, %v1357
    %v2254 = vpack.c.b16 %v1374, %v1358
    %v2255 = vpack.c.b16 %v1375, %v1359
    %v2256 = vpack.c.b16 %v1376, %v1360
    %v2257 = vpack.c.b16 %v1377, %v1361
    %v2258 = vpack.c.b16 %v1378, %v1362
    %v2259 = vpack.c.b16 %v1379, %v1363
    %v2260 = vpack.c.b16 %v1380, %v1364
    %v2261 = vpack.c.b16 %v1397, %v1381
    %v2262 = vpack.c.b16 %v1398, %v1382
    %v2263 = vpack.c.b16 %v1399, %v1383
    %v2264 = vpack.c.b16 %v1400, %v1384
    %v2265 = vpack.c.b16 %v1401, %v1385
    %v2266 = vpack.c.b16 %v1402, %v1386
    %v2267 = vpack.c.b16 %v1403, %v1387
    %v2268 = vpack.c.b16 %v1404, %v1388
    %v2269 = vpack.c.b16 %v1405, %v1389
    %v2270 = vpack.c.b16 %v1406, %v1390
    %v2271 = vpack.c.b16 %v1407, %v1391
    %v2272 = vpack.c.b16 %v1408, %v1392
    %v2273 = vpack.c.b16 %v1409, %v1393
    %v2274 = vpack.c.b16 %v1410, %v1394
    %v2275 = vpack.c.b16 %v1411, %v1395
    %v2276 = vpack.c.b16 %v1412, %v1396
    %v2277 = vpack.c.b16 %v1429, %v1413
    %v2278 = vpack.c.b16 %v1430, %v1414
    %v2279 = vpack.c.b16 %v1431, %v1415
    %v2280 = vpack.c.b16 %v1432, %v1416
    %v2281 = vpack.c.b16 %v1433, %v1417
    %v2282 = vpack.c.b16 %v1434, %v1418
    %v2283 = vpack.c.b16 %v1435, %v1419
    %v2284 = vpack.c.b16 %v1436, %v1420
    %v2285 = vpack.c.b16 %v1437, %v1421
    %v2286 = vpack.c.b16 %v1438, %v1422
    %v2287 = vpack.c.b16 %v1439, %v1423
    %v2288 = vpack.c.b16 %v1440, %v1424
    %v2289 = vpack.c.b16 %v1441, %v1425
    %v2290 = vpack.c.b16 %v1442, %v1426
    %v2291 = vpack.c.b16 %v1443, %v1427
    %v2292 = vpack.c.b16 %v1444, %v1428
    %v2293 = vpack.c.b16 %v1461, %v1445
    %v2294 = vpack.c.b16 %v1462, %v1446
    %v2295 = vpack.c.b16 %v1463, %v1447
    %v2296 = vpack.c.b16 %v1464, %v1448
    %v2297 = vpack.c.b16 %v1465, %v1449
    %v2298 = vpack.c.b16 %v1466, %v1450
    %v2299 = vpack.c.b16 %v1467, %v1451
    %v2300 = vpack.c.b16 %v1468, %v1452
    %v2301 = vpack.c.b16 %v1469, %v1453
    %v2302 = vpack.c.b16 %v1470, %v1454
    %v2303 = vpack.c.b16 %v1471, %v1455
    %v2304 = vpack.c.b16 %v1472, %v1456
    %v2305 = vpack.c.b16 %v1473, %v1457
    %v2306 = vpack.c.b16 %v1474, %v1458
    %v2307 = vpack.c.b16 %v1475, %v1459
    %v2308 = vpack.c.b16 %v1476, %v1460
    %v2309 = vpack.c.b16 %v1493, %v1477
    %v2310 = vpack.c.b16 %v1494, %v1478
    %v2311 = vpack.c.b16 %v1495, %v1479
    %v2312 = vpack.c.b16 %v1496, %v1480
    %v2313 = vpack.c.b16 %v1497, %v1481
    %v2314 = vpack.c.b16 %v1498, %v1482
    %v2315 = vpack.c.b16 %v1499, %v1483
    %v2316 = vpack.c.b16 %v1500, %v1484
    %v2317 = vpack.c.b16 %v1501, %v1485
    %v2318 = vpack.c.b16 %v1502, %v1486
    %v2319 = vpack.c.b16 %v1503, %v1487
    %v2320 = vpack.c.b16 %v1504, %v1488
    %v2321 = vpack.c.b16 %v1505, %v1489
    %v2322 = vpack.c.b16 %v1506, %v1490
    %v2323 = vpack.c.b16 %v1507, %v1491
    %v2324 = vpack.c.b16 %v1508, %v1492
    %v2325 = vpack.c.b16 %v1525, %v1509
    %v2326 = vpack.c.b16 %v1526, %v1510
    %v2327 = vpack.c.b16 %v1527, %v1511
    %v2328 = vpack.c.b16 %v1528, %v1512
    %v2329 = vpack.c.b16 %v1529, %v1513
    %v2330 = vpack.c.b16 %v1530, %v1514
    %v2331 = vpack.c.b16 %v1531, %v1515
    %v2332 = vpack.c.b16 %v1532, %v1516
    %v2333 = vpack.c.b16 %v1533, %v1517
    %v2334 = vpack.c.b16 %v1534, %v1518
    %v2335 = vpack.c.b16 %v1535, %v1519
    %v2336 = vpack.c.b16 %v1536, %v1520
    %v2337 = vpack.c.b16 %v1537, %v1521
    %v2338 = vpack.c.b16 %v1538, %v1522
    %v2339 = vpack.c.b16 %v1539, %v1523
    %v2340 = vpack.c.b16 %v1540, %v1524
    %v2341 = vpack.c.b16 %v1557, %v1541
    %v2342 = vpack.c.b16 %v1558, %v1542
    %v2343 = vpack.c.b16 %v1559, %v1543
    %v2344 = vpack.c.b16 %v1560, %v1544
    %v2345 = vpack.c.b16 %v1561, %v1545
    %v2346 = vpack.c.b16 %v1562, %v1546
    %v2347 = vpack.c.b16 %v1563, %v1547
    %v2348 = vpack.c.b16 %v1564, %v1548
    %v2349 = vpack.c.b16 %v1565, %v1549
    %v2350 = vpack.c.b16 %v1566, %v1550
    %v2351 = vpack.c.b16 %v1567, %v1551
    %v2352 = vpack.c.b16 %v1568, %v1552
    %v2353 = vpack.c.b16 %v1569, %v1553
    %v2354 = vpack.c.b16 %v1570, %v1554
    %v2355 = vpack.c.b16 %v1571, %v1555
    %v2356 = vpack.c.b16 %v1572, %v1556
    %v2357 = vpack.c.b16 %v1589, %v1573
    %v2358 = vpack.c.b16 %v1590, %v1574
    %v2359 = vpack.c.b16 %v1591, %v1575
    %v2360 = vpack.c.b16 %v1592, %v1576
    %v2361 = vpack.c.b16 %v1593, %v1577
    %v2362 = vpack.c.b16 %v1594, %v1578
    %v2363 = vpack.c.b16 %v1595, %v1579
    %v2364 = vpack.c.b16 %v1596, %v1580
    %v2365 = vpack.c.b16 %v1597, %v1581
    %v2366 = vpack.c.b16 %v1598, %v1582
    %v2367 = vpack.c.b16 %v1599, %v1583
    %v2368 = vpack.c.b16 %v1600, %v1584
    %v2369 = vpack.c.b16 %v1601, %v1585
    %v2370 = vpack.c.b16 %v1602, %v1586
    %v2371 = vpack.c.b16 %v1603, %v1587
    %v2372 = vpack.c.b16 %v1604, %v1588
    %v2373 = vpack.c.b16 %v1621, %v1605
    %v2374 = vpack.c.b16 %v1622, %v1606
    %v2375 = vpack.c.b16 %v1623, %v1607
    %v2376 = vpack.c.b16 %v1624, %v1608
    %v2377 = vpack.c.b16 %v1625, %v1609
    %v2378 = vpack.c.b16 %v1626, %v1610
    %v2379 = vpack.c.b16 %v1627, %v1611
    %v2380 = vpack.c.b16 %v1628, %v1612
    %v2381 = vpack.c.b16 %v1629, %v1613
    %v2382 = vpack.c.b16 %v1630, %v1614
    %v2383 = vpack.c.b16 %v1631, %v1615
    %v2384 = vpack.c.b16 %v1632, %v1616
    %v2385 = vpack.c.b16 %v1633, %v1617
    %v2386 = vpack.c.b16 %v1634, %v1618
    %v2387 = vpack.c.b16 %v1635, %v1619
    %v2388 = vpack.c.b16 %v1636, %v1620
    %v2389 = vpack.c.b16 %v1653, %v1637
    %v2390 = vpack.c.b16 %v1654, %v1638
    %v2391 = vpack.c.b16 %v1655, %v1639
    %v2392 = vpack.c.b16 %v1656, %v1640
    %v2393 = vpack.c.b16 %v1657, %v1641
    %v2394 = vpack.c.b16 %v1658, %v1642
    %v2395 = vpack.c.b16 %v1659, %v1643
    %v2396 = vpack.c.b16 %v1660, %v1644
    %v2397 = vpack.c.b16 %v1661, %v1645
    %v2398 = vpack.c.b16 %v1662, %v1646
    %v2399 = vpack.c.b16 %v1663, %v1647
    %v2400 = vpack.c.b16 %v1664, %v1648
    %v2401 = vpack.c.b16 %v1665, %v1649
    %v2402 = vpack.c.b16 %v1666, %v1650
    %v2403 = vpack.c.b16 %v1667, %v1651
    %v2404 = vpack.c.b16 %v1668, %v1652
    %v2405 = vpack.c.b16 %v1685, %v1669
    %v2406 = vpack.c.b16 %v1686, %v1670
    %v2407 = vpack.c.b16 %v1687, %v1671
    %v2408 = vpack.c.b16 %v1688, %v1672
    %v2409 = vpack.c.b16 %v1689, %v1673
    %v2410 = vpack.c.b16 %v1690, %v1674
    %v2411 = vpack.c.b16 %v1691, %v1675
    %v2412 = vpack.c.b16 %v1692, %v1676
    %v2413 = vpack.c.b16 %v1693, %v1677
    %v2414 = vpack.c.b16 %v1694, %v1678
    %v2415 = vpack.c.b16 %v1695, %v1679
    %v2416 = vpack.c.b16 %v1696, %v1680
    %v2417 = vpack.c.b16 %v1697, %v1681
    %v2418 = vpack.c.b16 %v1698, %v1682
    %v2419 = vpack.c.b16 %v1699, %v1683
    %v2420 = vpack.c.b16 %v1700, %v1684
    %v2421 = vpack.c.b16 %v1717, %v1701
    %v2422 = vpack.c.b16 %v1718, %v1702
    %v2423 = vpack.c.b16 %v1719, %v1703
    %v2424 = vpack.c.b16 %v1720, %v1704
    %v2425 = vpack.c.b16 %v1721, %v1705
    %v2426 = vpack.c.b16 %v1722, %v1706
    %v2427 = vpack.c.b16 %v1723, %v1707
    %v2428 = vpack.c.b16 %v1724, %v1708
    %v2429 = vpack.c.b16 %v1725, %v1709
    %v2430 = vpack.c.b16 %v1726, %v1710
    %v2431 = vpack.c.b16 %v1727, %v1711
    %v2432 = vpack.c.b16 %v1728, %v1712
    %v2433 = vpack.c.b16 %v1729, %v1713
    %v2434 = vpack.c.b16 %v1730, %v1714
    %v2435 = vpack.c.b16 %v1731, %v1715
    %v2436 = vpack.c.b16 %v1732, %v1716
    %v2437 = vpack.c.b16 %v1749, %v1733
    %v2438 = vpack.c.b16 %v1750, %v1734
    %v2439 = vpack.c.b16 %v1751, %v1735
    %v2440 = vpack.c.b16 %v1752, %v1736
    %v2441 = vpack.c.b16 %v1753, %v1737
    %v2442 = vpack.c.b16 %v1754, %v1738
    %v2443 = vpack.c.b16 %v1755, %v1739
    %v2444 = vpack.c.b16 %v1756, %v1740
    %v2445 = vpack.c.b16 %v1757, %v1741
    %v2446 = vpack.c.b16 %v1758, %v1742
    %v2447 = vpack.c.b16 %v1759, %v1743
    %v2448 = vpack.c.b16 %v1760, %v1744
    %v2449 = vpack.c.b16 %v1761, %v1745
    %v2450 = vpack.c.b16 %v1762, %v1746
    %v2451 = vpack.c.b16 %v1763, %v1747
    %v2452 = vpack.c.b16 %v1764, %v1748
    %v2453 = vpack.c.b16 %v1781, %v1765
    %v2454 = vpack.c.b16 %v1782, %v1766
    %v2455 = vpack.c.b16 %v1783, %v1767
    %v2456 = vpack.c.b16 %v1784, %v1768
    %v2457 = vpack.c.b16 %v1785, %v1769
    %v2458 = vpack.c.b16 %v1786, %v1770
    %v2459 = vpack.c.b16 %v1787, %v1771
    %v2460 = vpack.c.b16 %v1788, %v1772
    %v2461 = vpack.c.b16 %v1789, %v1773
    %v2462 = vpack.c.b16 %v1790, %v1774
    %v2463 = vpack.c.b16 %v1791, %v1775
    %v2464 = vpack.c.b16 %v1792, %v1776
    %v2465 = vpack.c.b16 %v1793, %v1777
    %v2466 = vpack.c.b16 %v1794, %v1778
    %v2467 = vpack.c.b16 %v1795, %v1779
    %v2468 = vpack.c.b16 %v1796, %v1780
    %v2469 = vpack.c.b16 %v1813, %v1797
    %v2470 = vpack.c.b16 %v1814, %v1798
    %v2471 = vpack.c.b16 %v1815, %v1799
    %v2472 = vpack.c.b16 %v1816, %v1800
    %v2473 = vpack.c.b16 %v1817, %v1801
    %v2474 = vpack.c.b16 %v1818, %v1802
    %v2475 = vpack.c.b16 %v1819, %v1803
    %v2476 = vpack.c.b16 %v1820, %v1804
    %v2477 = vpack.c.b16 %v1821, %v1805
    %v2478 = vpack.c.b16 %v1822, %v1806
    %v2479 = vpack.c.b16 %v1823, %v1807
    %v2480 = vpack.c.b16 %v1824, %v1808
    %v2481 = vpack.c.b16 %v1825, %v1809
    %v2482 = vpack.c.b16 %v1826, %v1810
    %v2483 = vpack.c.b16 %v1827, %v1811
    %v2484 = vpack.c.b16 %v1828, %v1812
    %v2485 = vpack.c.b16 %v1845, %v1829
    %v2486 = vpack.c.b16 %v1846, %v1830
    %v2487 = vpack.c.b16 %v1847, %v1831
    %v2488 = vpack.c.b16 %v1848, %v1832
    %v2489 = vpack.c.b16 %v1849, %v1833
    %v2490 = vpack.c.b16 %v1850, %v1834
    %v2491 = vpack.c.b16 %v1851, %v1835
    %v2492 = vpack.c.b16 %v1852, %v1836
    %v2493 = vpack.c.b16 %v1853, %v1837
    %v2494 = vpack.c.b16 %v1854, %v1838
    %v2495 = vpack.c.b16 %v1855, %v1839
    %v2496 = vpack.c.b16 %v1856, %v1840
    %v2497 = vpack.c.b16 %v1857, %v1841
    %v2498 = vpack.c.b16 %v1858, %v1842
    %v2499 = vpack.c.b16 %v1859, %v1843
    %v2500 = vpack.c.b16 %v1860, %v1844
    %v2501 = vpack.c.b16 %v1877, %v1861
    %v2502 = vpack.c.b16 %v1878, %v1862
    %v2503 = vpack.c.b16 %v1879, %v1863
    %v2504 = vpack.c.b16 %v1880, %v1864
    %v2505 = vpack.c.b16 %v1881, %v1865
    %v2506 = vpack.c.b16 %v1882, %v1866
    %v2507 = vpack.c.b16 %v1883, %v1867
    %v2508 = vpack.c.b16 %v1884, %v1868
    %v2509 = vpack.c.b16 %v1885, %v1869
    %v2510 = vpack.c.b16 %v1886, %v1870
    %v2511 = vpack.c.b16 %v1887, %v1871
    %v2512 = vpack.c.b16 %v1888, %v1872
    %v2513 = vpack.c.b16 %v1889, %v1873
    %v2514 = vpack.c.b16 %v1890, %v1874
    %v2515 = vpack.c.b16 %v1891, %v1875
    %v2516 = vpack.c.b16 %v1892, %v1876
    %v2517 = vpack.c.b16 %v1909, %v1893
    %v2518 = vpack.c.b16 %v1910, %v1894
    %v2519 = vpack.c.b16 %v1911, %v1895
    %v2520 = vpack.c.b16 %v1912, %v1896
    %v2521 = vpack.c.b16 %v1913, %v1897
    %v2522 = vpack.c.b16 %v1914, %v1898
    %v2523 = vpack.c.b16 %v1915, %v1899
    %v2524 = vpack.c.b16 %v1916, %v1900
    %v2525 = vpack.c.b16 %v1917, %v1901
    %v2526 = vpack.c.b16 %v1918, %v1902
    %v2527 = vpack.c.b16 %v1919, %v1903
    %v2528 = vpack.c.b16 %v1920, %v1904
    %v2529 = vpack.c.b16 %v1921, %v1905
    %v2530 = vpack.c.b16 %v1922, %v1906
    %v2531 = vpack.c.b16 %v1923, %v1907
    %v2532 = vpack.c.b16 %v1924, %v1908
    %v2533 = vpack.c.b16 %v1941, %v1925
    %v2534 = vpack.c.b16 %v1942, %v1926
    %v2535 = vpack.c.b16 %v1943, %v1927
    %v2536 = vpack.c.b16 %v1944, %v1928
    %v2537 = vpack.c.b16 %v1945, %v1929
    %v2538 = vpack.c.b16 %v1946, %v1930
    %v2539 = vpack.c.b16 %v1947, %v1931
    %v2540 = vpack.c.b16 %v1948, %v1932
    %v2541 = vpack.c.b16 %v1949, %v1933
    %v2542 = vpack.c.b16 %v1950, %v1934
    %v2543 = vpack.c.b16 %v1951, %v1935
    %v2544 = vpack.c.b16 %v1952, %v1936
    %v2545 = vpack.c.b16 %v1953, %v1937
    %v2546 = vpack.c.b16 %v1954, %v1938
    %v2547 = vpack.c.b16 %v1955, %v1939
    %v2548 = vpack.c.b16 %v1956, %v1940
    %v2549 = vpack.c.b16 %v1973, %v1957
    %v2550 = vpack.c.b16 %v1974, %v1958
    %v2551 = vpack.c.b16 %v1975, %v1959
    %v2552 = vpack.c.b16 %v1976, %v1960
    %v2553 = vpack.c.b16 %v1977, %v1961
    %v2554 = vpack.c.b16 %v1978, %v1962
    %v2555 = vpack.c.b16 %v1979, %v1963
    %v2556 = vpack.c.b16 %v1980, %v1964
    %v2557 = vpack.c.b16 %v1981, %v1965
    %v2558 = vpack.c.b16 %v1982, %v1966
    %v2559 = vpack.c.b16 %v1983, %v1967
    %v2560 = vpack.c.b16 %v1984, %v1968
    %v2561 = vpack.c.b16 %v1985, %v1969
    %v2562 = vpack.c.b16 %v1986, %v1970
    %v2563 = vpack.c.b16 %v1987, %v1971
    %v2564 = vpack.c.b16 %v1988, %v1972
    %v2565 = vpack.c.b16 %v2005, %v1989
    %v2566 = vpack.c.b16 %v2006, %v1990
    %v2567 = vpack.c.b16 %v2007, %v1991
    %v2568 = vpack.c.b16 %v2008, %v1992
    %v2569 = vpack.c.b16 %v2009, %v1993
    %v2570 = vpack.c.b16 %v2010, %v1994
    %v2571 = vpack.c.b16 %v2011, %v1995
    %v2572 = vpack.c.b16 %v2012, %v1996
    %v2573 = vpack.c.b16 %v2013, %v1997
    %v2574 = vpack.c.b16 %v2014, %v1998
    %v2575 = vpack.c.b16 %v2015, %v1999
    %v2576 = vpack.c.b16 %v2016, %v2000
    %v2577 = vpack.c.b16 %v2017, %v2001
    %v2578 = vpack.c.b16 %v2018, %v2002
    %v2579 = vpack.c.b16 %v2019, %v2003
    %v2580 = vpack.c.b16 %v2020, %v2004
    %v2581 = vpack.c.b16 %v2037, %v2021
    %v2582 = vpack.c.b16 %v2038, %v2022
    %v2583 = vpack.c.b16 %v2039, %v2023
    %v2584 = vpack.c.b16 %v2040, %v2024
    %v2585 = vpack.c.b16 %v2041, %v2025
    %v2586 = vpack.c.b16 %v2042, %v2026
    %v2587 = vpack.c.b16 %v2043, %v2027
    %v2588 = vpack.c.b16 %v2044, %v2028
    %v2589 = vpack.c.b16 %v2045, %v2029
    %v2590 = vpack.c.b16 %v2046, %v2030
    %v2591 = vpack.c.b16 %v2047, %v2031
    %v2592 = vpack.c.b16 %v2048, %v2032
    %v2593 = vpack.c.b16 %v2049, %v2033
    %v2594 = vpack.c.b16 %v2050, %v2034
    %v2595 = vpack.c.b16 %v2051, %v2035
    %v2596 = vpack.c.b16 %v2052, %v2036
    %v2597 = vpack.c.b16 %v2069, %v2053
    %v2598 = vpack.c.b16 %v2070, %v2054
    %v2599 = vpack.c.b16 %v2071, %v2055
    %v2600 = vpack.c.b16 %v2072, %v2056
    %v2601 = vpack.c.b16 %v2073, %v2057
    %v2602 = vpack.c.b16 %v2074, %v2058
    %v2603 = vpack.c.b16 %v2075, %v2059
    %v2604 = vpack.c.b16 %v2076, %v2060
    %v2605 = vpack.c.b16 %v2077, %v2061
    %v2606 = vpack.c.b16 %v2078, %v2062
    %v2607 = vpack.c.b16 %v2079, %v2063
    %v2608 = vpack.c.b16 %v2080, %v2064
    %v2609 = vpack.c.b16 %v2081, %v2065
    %v2610 = vpack.c.b16 %v2082, %v2066
    %v2611 = vpack.c.b16 %v2083, %v2067
    %v2612 = vpack.c.b16 %v2084, %v2068
    %v2613 = vpack.c.b16 %v2101, %v2085
    %v2614 = vpack.c.b16 %v2102, %v2086
    %v2615 = vpack.c.b16 %v2103, %v2087
    %v2616 = vpack.c.b16 %v2104, %v2088
    %v2617 = vpack.c.b16 %v2105, %v2089
    %v2618 = vpack.c.b16 %v2106, %v2090
    %v2619 = vpack.c.b16 %v2107, %v2091
    %v2620 = vpack.c.b16 %v2108, %v2092
    %v2621 = vpack.c.b16 %v2109, %v2093
    %v2622 = vpack.c.b16 %v2110, %v2094
    %v2623 = vpack.c.b16 %v2111, %v2095
    %v2624 = vpack.c.b16 %v2112, %v2096
    %v2625 = vpack.c.b16 %v2113, %v2097
    %v2626 = vpack.c.b16 %v2114, %v2098
    %v2627 = vpack.c.b16 %v2115, %v2099
    %v2628 = vpack.c.b16 %v2116, %v2100
    %3141 = vmatpush.bf16.msra.mxu0 %v2229
    %3142 = vmatpush.bf16.msra.mxu0 %v2213
    %3143 = vmatpush.bf16.msra.mxu0 %v2197
    %3144 = vmatpush.bf16.msra.mxu0 %v2181
    %3145 = vmatpush.bf16.msra.mxu0 %v2165
    %3146 = vmatpush.bf16.msra.mxu0 %v2149
    %3147 = vmatpush.bf16.msra.mxu0 %v2133
    %3148 = vmatpush.bf16.msra.mxu0 %v2117
    %3149 = vmatmul.bf16.gmra.mxu0 %v29
    %v3150 = vpop.f32.mrf.mxu0
    %v3151 = vadd.f32 %v549, %v3150
    %v3152 = vpop.f32.mrf.mxu0
    %v3153 = vadd.f32 %v549, %v3152
    %3154 = vdwg.mxu0
    %3155 = vmatpush.bf16.msra.mxu0 %v2357
    %3156 = vmatpush.bf16.msra.mxu0 %v2341
    %3157 = vmatpush.bf16.msra.mxu0 %v2325
    %3158 = vmatpush.bf16.msra.mxu0 %v2309
    %3159 = vmatpush.bf16.msra.mxu0 %v2293
    %3160 = vmatpush.bf16.msra.mxu0 %v2277
    %3161 = vmatpush.bf16.msra.mxu0 %v2261
    %3162 = vmatpush.bf16.msra.mxu0 %v2245
    %3163 = vmatmul.bf16.gmra.mxu0 %v30
    %v3164 = vpop.f32.mrf.mxu0
    %v3165 = vadd.f32 %v3151, %v3164
    %v3166 = vpop.f32.mrf.mxu0
    %v3167 = vadd.f32 %v3153, %v3166
    %3168 = vdwg.mxu0
    %3169 = vmatpush.bf16.msra.mxu0 %v2485
    %3170 = vmatpush.bf16.msra.mxu0 %v2469
    %3171 = vmatpush.bf16.msra.mxu0 %v2453
    %3172 = vmatpush.bf16.msra.mxu0 %v2437
    %3173 = vmatpush.bf16.msra.mxu0 %v2421
    %3174 = vmatpush.bf16.msra.mxu0 %v2405
    %3175 = vmatpush.bf16.msra.mxu0 %v2389
    %3176 = vmatpush.bf16.msra.mxu0 %v2373
    %3177 = vmatmul.bf16.gmra.mxu0 %v31
    %v3178 = vpop.f32.mrf.mxu0
    %v3179 = vadd.f32 %v3165, %v3178
    %v3180 = vpop.f32.mrf.mxu0
    %v3181 = vadd.f32 %v3167, %v3180
    %3182 = vdwg.mxu0
    %3183 = vmatpush.bf16.msra.mxu0 %v2613
    %3184 = vmatpush.bf16.msra.mxu0 %v2597
    %3185 = vmatpush.bf16.msra.mxu0 %v2581
    %3186 = vmatpush.bf16.msra.mxu0 %v2565
    %3187 = vmatpush.bf16.msra.mxu0 %v2549
    %3188 = vmatpush.bf16.msra.mxu0 %v2533
    %3189 = vmatpush.bf16.msra.mxu0 %v2517
    %3190 = vmatpush.bf16.msra.mxu0 %v2501
    %3191 = vmatmul.bf16.gmra.mxu0 %v32
    %v3192 = vpop.f32.mrf.mxu0
    %v3193 = vadd.f32 %v3179, %v3192
    %v3194 = vpop.f32.mrf.mxu0
    %v3195 = vadd.f32 %v3181, %v3194
    %3196 = vdwg.mxu0
    %3197 = vmatpush.bf16.msra.mxu0 %v2230
    %3198 = vmatpush.bf16.msra.mxu0 %v2214
    %3199 = vmatpush.bf16.msra.mxu0 %v2198
    %3200 = vmatpush.bf16.msra.mxu0 %v2182
    %3201 = vmatpush.bf16.msra.mxu0 %v2166
    %3202 = vmatpush.bf16.msra.mxu0 %v2150
    %3203 = vmatpush.bf16.msra.mxu0 %v2134
    %3204 = vmatpush.bf16.msra.mxu0 %v2118
    %3205 = vmatmul.bf16.gmra.mxu0 %v29
    %v3206 = vpop.f32.mrf.mxu0
    %v3207 = vadd.f32 %v550, %v3206
    %v3208 = vpop.f32.mrf.mxu0
    %v3209 = vadd.f32 %v550, %v3208
    %3210 = vdwg.mxu0
    %3211 = vmatpush.bf16.msra.mxu0 %v2358
    %3212 = vmatpush.bf16.msra.mxu0 %v2342
    %3213 = vmatpush.bf16.msra.mxu0 %v2326
    %3214 = vmatpush.bf16.msra.mxu0 %v2310
    %3215 = vmatpush.bf16.msra.mxu0 %v2294
    %3216 = vmatpush.bf16.msra.mxu0 %v2278
    %3217 = vmatpush.bf16.msra.mxu0 %v2262
    %3218 = vmatpush.bf16.msra.mxu0 %v2246
    %3219 = vmatmul.bf16.gmra.mxu0 %v30
    %v3220 = vpop.f32.mrf.mxu0
    %v3221 = vadd.f32 %v3207, %v3220
    %v3222 = vpop.f32.mrf.mxu0
    %v3223 = vadd.f32 %v3209, %v3222
    %3224 = vdwg.mxu0
    %3225 = vmatpush.bf16.msra.mxu0 %v2486
    %3226 = vmatpush.bf16.msra.mxu0 %v2470
    %3227 = vmatpush.bf16.msra.mxu0 %v2454
    %3228 = vmatpush.bf16.msra.mxu0 %v2438
    %3229 = vmatpush.bf16.msra.mxu0 %v2422
    %3230 = vmatpush.bf16.msra.mxu0 %v2406
    %3231 = vmatpush.bf16.msra.mxu0 %v2390
    %3232 = vmatpush.bf16.msra.mxu0 %v2374
    %3233 = vmatmul.bf16.gmra.mxu0 %v31
    %v3234 = vpop.f32.mrf.mxu0
    %v3235 = vadd.f32 %v3221, %v3234
    %v3236 = vpop.f32.mrf.mxu0
    %v3237 = vadd.f32 %v3223, %v3236
    %3238 = vdwg.mxu0
    %3239 = vmatpush.bf16.msra.mxu0 %v2614
    %3240 = vmatpush.bf16.msra.mxu0 %v2598
    %3241 = vmatpush.bf16.msra.mxu0 %v2582
    %3242 = vmatpush.bf16.msra.mxu0 %v2566
    %3243 = vmatpush.bf16.msra.mxu0 %v2550
    %3244 = vmatpush.bf16.msra.mxu0 %v2534
    %3245 = vmatpush.bf16.msra.mxu0 %v2518
    %3246 = vmatpush.bf16.msra.mxu0 %v2502
    %3247 = vmatmul.bf16.gmra.mxu0 %v32
    %v3248 = vpop.f32.mrf.mxu0
    %v3249 = vadd.f32 %v3235, %v3248
    %v3250 = vpop.f32.mrf.mxu0
    %v3251 = vadd.f32 %v3237, %v3250
    %3252 = vdwg.mxu0
    %3253 = vmatpush.bf16.msra.mxu0 %v2231
    %3254 = vmatpush.bf16.msra.mxu0 %v2215
    %3255 = vmatpush.bf16.msra.mxu0 %v2199
    %3256 = vmatpush.bf16.msra.mxu0 %v2183
    %3257 = vmatpush.bf16.msra.mxu0 %v2167
    %3258 = vmatpush.bf16.msra.mxu0 %v2151
    %3259 = vmatpush.bf16.msra.mxu0 %v2135
    %3260 = vmatpush.bf16.msra.mxu0 %v2119
    %3261 = vmatmul.bf16.gmra.mxu0 %v29
    %v3262 = vpop.f32.mrf.mxu0
    %v3263 = vadd.f32 %v551, %v3262
    %v3264 = vpop.f32.mrf.mxu0
    %v3265 = vadd.f32 %v551, %v3264
    %3266 = vdwg.mxu0
    %3267 = vmatpush.bf16.msra.mxu0 %v2359
    %3268 = vmatpush.bf16.msra.mxu0 %v2343
    %3269 = vmatpush.bf16.msra.mxu0 %v2327
    %3270 = vmatpush.bf16.msra.mxu0 %v2311
    %3271 = vmatpush.bf16.msra.mxu0 %v2295
    %3272 = vmatpush.bf16.msra.mxu0 %v2279
    %3273 = vmatpush.bf16.msra.mxu0 %v2263
    %3274 = vmatpush.bf16.msra.mxu0 %v2247
    %3275 = vmatmul.bf16.gmra.mxu0 %v30
    %v3276 = vpop.f32.mrf.mxu0
    %v3277 = vadd.f32 %v3263, %v3276
    %v3278 = vpop.f32.mrf.mxu0
    %v3279 = vadd.f32 %v3265, %v3278
    %3280 = vdwg.mxu0
    %3281 = vmatpush.bf16.msra.mxu0 %v2487
    %3282 = vmatpush.bf16.msra.mxu0 %v2471
    %3283 = vmatpush.bf16.msra.mxu0 %v2455
    %3284 = vmatpush.bf16.msra.mxu0 %v2439
    %3285 = vmatpush.bf16.msra.mxu0 %v2423
    %3286 = vmatpush.bf16.msra.mxu0 %v2407
    %3287 = vmatpush.bf16.msra.mxu0 %v2391
    %3288 = vmatpush.bf16.msra.mxu0 %v2375
    %3289 = vmatmul.bf16.gmra.mxu0 %v31
    %v3290 = vpop.f32.mrf.mxu0
    %v3291 = vadd.f32 %v3277, %v3290
    %v3292 = vpop.f32.mrf.mxu0
    %v3293 = vadd.f32 %v3279, %v3292
    %3294 = vdwg.mxu0
    %3295 = vmatpush.bf16.msra.mxu0 %v2615
    %3296 = vmatpush.bf16.msra.mxu0 %v2599
    %3297 = vmatpush.bf16.msra.mxu0 %v2583
    %3298 = vmatpush.bf16.msra.mxu0 %v2567
    %3299 = vmatpush.bf16.msra.mxu0 %v2551
    %3300 = vmatpush.bf16.msra.mxu0 %v2535
    %3301 = vmatpush.bf16.msra.mxu0 %v2519
    %3302 = vmatpush.bf16.msra.mxu0 %v2503
    %3303 = vmatmul.bf16.gmra.mxu0 %v32
    %v3304 = vpop.f32.mrf.mxu0
    %v3305 = vadd.f32 %v3291, %v3304
    %v3306 = vpop.f32.mrf.mxu0
    %v3307 = vadd.f32 %v3293, %v3306
    %3308 = vdwg.mxu0
    %3309 = vmatpush.bf16.msra.mxu0 %v2232
    %3310 = vmatpush.bf16.msra.mxu0 %v2216
    %3311 = vmatpush.bf16.msra.mxu0 %v2200
    %3312 = vmatpush.bf16.msra.mxu0 %v2184
    %3313 = vmatpush.bf16.msra.mxu0 %v2168
    %3314 = vmatpush.bf16.msra.mxu0 %v2152
    %3315 = vmatpush.bf16.msra.mxu0 %v2136
    %3316 = vmatpush.bf16.msra.mxu0 %v2120
    %3317 = vmatmul.bf16.gmra.mxu0 %v29
    %v3318 = vpop.f32.mrf.mxu0
    %v3319 = vadd.f32 %v552, %v3318
    %v3320 = vpop.f32.mrf.mxu0
    %v3321 = vadd.f32 %v552, %v3320
    %3322 = vdwg.mxu0
    %3323 = vmatpush.bf16.msra.mxu0 %v2360
    %3324 = vmatpush.bf16.msra.mxu0 %v2344
    %3325 = vmatpush.bf16.msra.mxu0 %v2328
    %3326 = vmatpush.bf16.msra.mxu0 %v2312
    %3327 = vmatpush.bf16.msra.mxu0 %v2296
    %3328 = vmatpush.bf16.msra.mxu0 %v2280
    %3329 = vmatpush.bf16.msra.mxu0 %v2264
    %3330 = vmatpush.bf16.msra.mxu0 %v2248
    %3331 = vmatmul.bf16.gmra.mxu0 %v30
    %v3332 = vpop.f32.mrf.mxu0
    %v3333 = vadd.f32 %v3319, %v3332
    %v3334 = vpop.f32.mrf.mxu0
    %v3335 = vadd.f32 %v3321, %v3334
    %3336 = vdwg.mxu0
    %3337 = vmatpush.bf16.msra.mxu0 %v2488
    %3338 = vmatpush.bf16.msra.mxu0 %v2472
    %3339 = vmatpush.bf16.msra.mxu0 %v2456
    %3340 = vmatpush.bf16.msra.mxu0 %v2440
    %3341 = vmatpush.bf16.msra.mxu0 %v2424
    %3342 = vmatpush.bf16.msra.mxu0 %v2408
    %3343 = vmatpush.bf16.msra.mxu0 %v2392
    %3344 = vmatpush.bf16.msra.mxu0 %v2376
    %3345 = vmatmul.bf16.gmra.mxu0 %v31
    %v3346 = vpop.f32.mrf.mxu0
    %v3347 = vadd.f32 %v3333, %v3346
    %v3348 = vpop.f32.mrf.mxu0
    %v3349 = vadd.f32 %v3335, %v3348
    %3350 = vdwg.mxu0
    %3351 = vmatpush.bf16.msra.mxu0 %v2616
    %3352 = vmatpush.bf16.msra.mxu0 %v2600
    %3353 = vmatpush.bf16.msra.mxu0 %v2584
    %3354 = vmatpush.bf16.msra.mxu0 %v2568
    %3355 = vmatpush.bf16.msra.mxu0 %v2552
    %3356 = vmatpush.bf16.msra.mxu0 %v2536
    %3357 = vmatpush.bf16.msra.mxu0 %v2520
    %3358 = vmatpush.bf16.msra.mxu0 %v2504
    %3359 = vmatmul.bf16.gmra.mxu0 %v32
    %v3360 = vpop.f32.mrf.mxu0
    %v3361 = vadd.f32 %v3347, %v3360
    %v3362 = vpop.f32.mrf.mxu0
    %v3363 = vadd.f32 %v3349, %v3362
    %3364 = vdwg.mxu0
    %3365 = vmatpush.bf16.msra.mxu0 %v2233
    %3366 = vmatpush.bf16.msra.mxu0 %v2217
    %3367 = vmatpush.bf16.msra.mxu0 %v2201
    %3368 = vmatpush.bf16.msra.mxu0 %v2185
    %3369 = vmatpush.bf16.msra.mxu0 %v2169
    %3370 = vmatpush.bf16.msra.mxu0 %v2153
    %3371 = vmatpush.bf16.msra.mxu0 %v2137
    %3372 = vmatpush.bf16.msra.mxu0 %v2121
    %3373 = vmatmul.bf16.gmra.mxu0 %v29
    %v3374 = vpop.f32.mrf.mxu0
    %v3375 = vadd.f32 %v553, %v3374
    %v3376 = vpop.f32.mrf.mxu0
    %v3377 = vadd.f32 %v553, %v3376
    %3378 = vdwg.mxu0
    %3379 = vmatpush.bf16.msra.mxu0 %v2361
    %3380 = vmatpush.bf16.msra.mxu0 %v2345
    %3381 = vmatpush.bf16.msra.mxu0 %v2329
    %3382 = vmatpush.bf16.msra.mxu0 %v2313
    %3383 = vmatpush.bf16.msra.mxu0 %v2297
    %3384 = vmatpush.bf16.msra.mxu0 %v2281
    %3385 = vmatpush.bf16.msra.mxu0 %v2265
    %3386 = vmatpush.bf16.msra.mxu0 %v2249
    %3387 = vmatmul.bf16.gmra.mxu0 %v30
    %v3388 = vpop.f32.mrf.mxu0
    %v3389 = vadd.f32 %v3375, %v3388
    %v3390 = vpop.f32.mrf.mxu0
    %v3391 = vadd.f32 %v3377, %v3390
    %3392 = vdwg.mxu0
    %3393 = vmatpush.bf16.msra.mxu0 %v2489
    %3394 = vmatpush.bf16.msra.mxu0 %v2473
    %3395 = vmatpush.bf16.msra.mxu0 %v2457
    %3396 = vmatpush.bf16.msra.mxu0 %v2441
    %3397 = vmatpush.bf16.msra.mxu0 %v2425
    %3398 = vmatpush.bf16.msra.mxu0 %v2409
    %3399 = vmatpush.bf16.msra.mxu0 %v2393
    %3400 = vmatpush.bf16.msra.mxu0 %v2377
    %3401 = vmatmul.bf16.gmra.mxu0 %v31
    %v3402 = vpop.f32.mrf.mxu0
    %v3403 = vadd.f32 %v3389, %v3402
    %v3404 = vpop.f32.mrf.mxu0
    %v3405 = vadd.f32 %v3391, %v3404
    %3406 = vdwg.mxu0
    %3407 = vmatpush.bf16.msra.mxu0 %v2617
    %3408 = vmatpush.bf16.msra.mxu0 %v2601
    %3409 = vmatpush.bf16.msra.mxu0 %v2585
    %3410 = vmatpush.bf16.msra.mxu0 %v2569
    %3411 = vmatpush.bf16.msra.mxu0 %v2553
    %3412 = vmatpush.bf16.msra.mxu0 %v2537
    %3413 = vmatpush.bf16.msra.mxu0 %v2521
    %3414 = vmatpush.bf16.msra.mxu0 %v2505
    %3415 = vmatmul.bf16.gmra.mxu0 %v32
    %v3416 = vpop.f32.mrf.mxu0
    %v3417 = vadd.f32 %v3403, %v3416
    %v3418 = vpop.f32.mrf.mxu0
    %v3419 = vadd.f32 %v3405, %v3418
    %3420 = vdwg.mxu0
    %3421 = vmatpush.bf16.msra.mxu0 %v2234
    %3422 = vmatpush.bf16.msra.mxu0 %v2218
    %3423 = vmatpush.bf16.msra.mxu0 %v2202
    %3424 = vmatpush.bf16.msra.mxu0 %v2186
    %3425 = vmatpush.bf16.msra.mxu0 %v2170
    %3426 = vmatpush.bf16.msra.mxu0 %v2154
    %3427 = vmatpush.bf16.msra.mxu0 %v2138
    %3428 = vmatpush.bf16.msra.mxu0 %v2122
    %3429 = vmatmul.bf16.gmra.mxu0 %v29
    %v3430 = vpop.f32.mrf.mxu0
    %v3431 = vadd.f32 %v554, %v3430
    %v3432 = vpop.f32.mrf.mxu0
    %v3433 = vadd.f32 %v554, %v3432
    %3434 = vdwg.mxu0
    %3435 = vmatpush.bf16.msra.mxu0 %v2362
    %3436 = vmatpush.bf16.msra.mxu0 %v2346
    %3437 = vmatpush.bf16.msra.mxu0 %v2330
    %3438 = vmatpush.bf16.msra.mxu0 %v2314
    %3439 = vmatpush.bf16.msra.mxu0 %v2298
    %3440 = vmatpush.bf16.msra.mxu0 %v2282
    %3441 = vmatpush.bf16.msra.mxu0 %v2266
    %3442 = vmatpush.bf16.msra.mxu0 %v2250
    %3443 = vmatmul.bf16.gmra.mxu0 %v30
    %v3444 = vpop.f32.mrf.mxu0
    %v3445 = vadd.f32 %v3431, %v3444
    %v3446 = vpop.f32.mrf.mxu0
    %v3447 = vadd.f32 %v3433, %v3446
    %3448 = vdwg.mxu0
    %3449 = vmatpush.bf16.msra.mxu0 %v2490
    %3450 = vmatpush.bf16.msra.mxu0 %v2474
    %3451 = vmatpush.bf16.msra.mxu0 %v2458
    %3452 = vmatpush.bf16.msra.mxu0 %v2442
    %3453 = vmatpush.bf16.msra.mxu0 %v2426
    %3454 = vmatpush.bf16.msra.mxu0 %v2410
    %3455 = vmatpush.bf16.msra.mxu0 %v2394
    %3456 = vmatpush.bf16.msra.mxu0 %v2378
    %3457 = vmatmul.bf16.gmra.mxu0 %v31
    %v3458 = vpop.f32.mrf.mxu0
    %v3459 = vadd.f32 %v3445, %v3458
    %v3460 = vpop.f32.mrf.mxu0
    %v3461 = vadd.f32 %v3447, %v3460
    %3462 = vdwg.mxu0
    %3463 = vmatpush.bf16.msra.mxu0 %v2618
    %3464 = vmatpush.bf16.msra.mxu0 %v2602
    %3465 = vmatpush.bf16.msra.mxu0 %v2586
    %3466 = vmatpush.bf16.msra.mxu0 %v2570
    %3467 = vmatpush.bf16.msra.mxu0 %v2554
    %3468 = vmatpush.bf16.msra.mxu0 %v2538
    %3469 = vmatpush.bf16.msra.mxu0 %v2522
    %3470 = vmatpush.bf16.msra.mxu0 %v2506
    %3471 = vmatmul.bf16.gmra.mxu0 %v32
    %v3472 = vpop.f32.mrf.mxu0
    %v3473 = vadd.f32 %v3459, %v3472
    %v3474 = vpop.f32.mrf.mxu0
    %v3475 = vadd.f32 %v3461, %v3474
    %3476 = vdwg.mxu0
    %3477 = vmatpush.bf16.msra.mxu0 %v2235
    %3478 = vmatpush.bf16.msra.mxu0 %v2219
    %3479 = vmatpush.bf16.msra.mxu0 %v2203
    %3480 = vmatpush.bf16.msra.mxu0 %v2187
    %3481 = vmatpush.bf16.msra.mxu0 %v2171
    %3482 = vmatpush.bf16.msra.mxu0 %v2155
    %3483 = vmatpush.bf16.msra.mxu0 %v2139
    %3484 = vmatpush.bf16.msra.mxu0 %v2123
    %3485 = vmatmul.bf16.gmra.mxu0 %v29
    %v3486 = vpop.f32.mrf.mxu0
    %v3487 = vadd.f32 %v555, %v3486
    %v3488 = vpop.f32.mrf.mxu0
    %v3489 = vadd.f32 %v555, %v3488
    %3490 = vdwg.mxu0
    %3491 = vmatpush.bf16.msra.mxu0 %v2363
    %3492 = vmatpush.bf16.msra.mxu0 %v2347
    %3493 = vmatpush.bf16.msra.mxu0 %v2331
    %3494 = vmatpush.bf16.msra.mxu0 %v2315
    %3495 = vmatpush.bf16.msra.mxu0 %v2299
    %3496 = vmatpush.bf16.msra.mxu0 %v2283
    %3497 = vmatpush.bf16.msra.mxu0 %v2267
    %3498 = vmatpush.bf16.msra.mxu0 %v2251
    %3499 = vmatmul.bf16.gmra.mxu0 %v30
    %v3500 = vpop.f32.mrf.mxu0
    %v3501 = vadd.f32 %v3487, %v3500
    %v3502 = vpop.f32.mrf.mxu0
    %v3503 = vadd.f32 %v3489, %v3502
    %3504 = vdwg.mxu0
    %3505 = vmatpush.bf16.msra.mxu0 %v2491
    %3506 = vmatpush.bf16.msra.mxu0 %v2475
    %3507 = vmatpush.bf16.msra.mxu0 %v2459
    %3508 = vmatpush.bf16.msra.mxu0 %v2443
    %3509 = vmatpush.bf16.msra.mxu0 %v2427
    %3510 = vmatpush.bf16.msra.mxu0 %v2411
    %3511 = vmatpush.bf16.msra.mxu0 %v2395
    %3512 = vmatpush.bf16.msra.mxu0 %v2379
    %3513 = vmatmul.bf16.gmra.mxu0 %v31
    %v3514 = vpop.f32.mrf.mxu0
    %v3515 = vadd.f32 %v3501, %v3514
    %v3516 = vpop.f32.mrf.mxu0
    %v3517 = vadd.f32 %v3503, %v3516
    %3518 = vdwg.mxu0
    %3519 = vmatpush.bf16.msra.mxu0 %v2619
    %3520 = vmatpush.bf16.msra.mxu0 %v2603
    %3521 = vmatpush.bf16.msra.mxu0 %v2587
    %3522 = vmatpush.bf16.msra.mxu0 %v2571
    %3523 = vmatpush.bf16.msra.mxu0 %v2555
    %3524 = vmatpush.bf16.msra.mxu0 %v2539
    %3525 = vmatpush.bf16.msra.mxu0 %v2523
    %3526 = vmatpush.bf16.msra.mxu0 %v2507
    %3527 = vmatmul.bf16.gmra.mxu0 %v32
    %v3528 = vpop.f32.mrf.mxu0
    %v3529 = vadd.f32 %v3515, %v3528
    %v3530 = vpop.f32.mrf.mxu0
    %v3531 = vadd.f32 %v3517, %v3530
    %3532 = vdwg.mxu0
    %3533 = vmatpush.bf16.msra.mxu0 %v2236
    %3534 = vmatpush.bf16.msra.mxu0 %v2220
    %3535 = vmatpush.bf16.msra.mxu0 %v2204
    %3536 = vmatpush.bf16.msra.mxu0 %v2188
    %3537 = vmatpush.bf16.msra.mxu0 %v2172
    %3538 = vmatpush.bf16.msra.mxu0 %v2156
    %3539 = vmatpush.bf16.msra.mxu0 %v2140
    %3540 = vmatpush.bf16.msra.mxu0 %v2124
    %3541 = vmatmul.bf16.gmra.mxu0 %v29
    %v3542 = vpop.f32.mrf.mxu0
    %v3543 = vadd.f32 %v556, %v3542
    %v3544 = vpop.f32.mrf.mxu0
    %v3545 = vadd.f32 %v556, %v3544
    %3546 = vdwg.mxu0
    %3547 = vmatpush.bf16.msra.mxu0 %v2364
    %3548 = vmatpush.bf16.msra.mxu0 %v2348
    %3549 = vmatpush.bf16.msra.mxu0 %v2332
    %3550 = vmatpush.bf16.msra.mxu0 %v2316
    %3551 = vmatpush.bf16.msra.mxu0 %v2300
    %3552 = vmatpush.bf16.msra.mxu0 %v2284
    %3553 = vmatpush.bf16.msra.mxu0 %v2268
    %3554 = vmatpush.bf16.msra.mxu0 %v2252
    %3555 = vmatmul.bf16.gmra.mxu0 %v30
    %v3556 = vpop.f32.mrf.mxu0
    %v3557 = vadd.f32 %v3543, %v3556
    %v3558 = vpop.f32.mrf.mxu0
    %v3559 = vadd.f32 %v3545, %v3558
    %3560 = vdwg.mxu0
    %3561 = vmatpush.bf16.msra.mxu0 %v2492
    %3562 = vmatpush.bf16.msra.mxu0 %v2476
    %3563 = vmatpush.bf16.msra.mxu0 %v2460
    %3564 = vmatpush.bf16.msra.mxu0 %v2444
    %3565 = vmatpush.bf16.msra.mxu0 %v2428
    %3566 = vmatpush.bf16.msra.mxu0 %v2412
    %3567 = vmatpush.bf16.msra.mxu0 %v2396
    %3568 = vmatpush.bf16.msra.mxu0 %v2380
    %3569 = vmatmul.bf16.gmra.mxu0 %v31
    %v3570 = vpop.f32.mrf.mxu0
    %v3571 = vadd.f32 %v3557, %v3570
    %v3572 = vpop.f32.mrf.mxu0
    %v3573 = vadd.f32 %v3559, %v3572
    %3574 = vdwg.mxu0
    %3575 = vmatpush.bf16.msra.mxu0 %v2620
    %3576 = vmatpush.bf16.msra.mxu0 %v2604
    %3577 = vmatpush.bf16.msra.mxu0 %v2588
    %3578 = vmatpush.bf16.msra.mxu0 %v2572
    %3579 = vmatpush.bf16.msra.mxu0 %v2556
    %3580 = vmatpush.bf16.msra.mxu0 %v2540
    %3581 = vmatpush.bf16.msra.mxu0 %v2524
    %3582 = vmatpush.bf16.msra.mxu0 %v2508
    %3583 = vmatmul.bf16.gmra.mxu0 %v32
    %v3584 = vpop.f32.mrf.mxu0
    %v3585 = vadd.f32 %v3571, %v3584
    %v3586 = vpop.f32.mrf.mxu0
    %v3587 = vadd.f32 %v3573, %v3586
    %3588 = vdwg.mxu0
    %3589 = vmatpush.bf16.msra.mxu0 %v2237
    %3590 = vmatpush.bf16.msra.mxu0 %v2221
    %3591 = vmatpush.bf16.msra.mxu0 %v2205
    %3592 = vmatpush.bf16.msra.mxu0 %v2189
    %3593 = vmatpush.bf16.msra.mxu0 %v2173
    %3594 = vmatpush.bf16.msra.mxu0 %v2157
    %3595 = vmatpush.bf16.msra.mxu0 %v2141
    %3596 = vmatpush.bf16.msra.mxu0 %v2125
    %3597 = vmatmul.bf16.gmra.mxu0 %v29
    %v3598 = vpop.f32.mrf.mxu0
    %v3599 = vadd.f32 %v557, %v3598
    %v3600 = vpop.f32.mrf.mxu0
    %v3601 = vadd.f32 %v557, %v3600
    %3602 = vdwg.mxu0
    %3603 = vmatpush.bf16.msra.mxu0 %v2365
    %3604 = vmatpush.bf16.msra.mxu0 %v2349
    %3605 = vmatpush.bf16.msra.mxu0 %v2333
    %3606 = vmatpush.bf16.msra.mxu0 %v2317
    %3607 = vmatpush.bf16.msra.mxu0 %v2301
    %3608 = vmatpush.bf16.msra.mxu0 %v2285
    %3609 = vmatpush.bf16.msra.mxu0 %v2269
    %3610 = vmatpush.bf16.msra.mxu0 %v2253
    %3611 = vmatmul.bf16.gmra.mxu0 %v30
    %v3612 = vpop.f32.mrf.mxu0
    %v3613 = vadd.f32 %v3599, %v3612
    %v3614 = vpop.f32.mrf.mxu0
    %v3615 = vadd.f32 %v3601, %v3614
    %3616 = vdwg.mxu0
    %3617 = vmatpush.bf16.msra.mxu0 %v2493
    %3618 = vmatpush.bf16.msra.mxu0 %v2477
    %3619 = vmatpush.bf16.msra.mxu0 %v2461
    %3620 = vmatpush.bf16.msra.mxu0 %v2445
    %3621 = vmatpush.bf16.msra.mxu0 %v2429
    %3622 = vmatpush.bf16.msra.mxu0 %v2413
    %3623 = vmatpush.bf16.msra.mxu0 %v2397
    %3624 = vmatpush.bf16.msra.mxu0 %v2381
    %3625 = vmatmul.bf16.gmra.mxu0 %v31
    %v3626 = vpop.f32.mrf.mxu0
    %v3627 = vadd.f32 %v3613, %v3626
    %v3628 = vpop.f32.mrf.mxu0
    %v3629 = vadd.f32 %v3615, %v3628
    %3630 = vdwg.mxu0
    %3631 = vmatpush.bf16.msra.mxu0 %v2621
    %3632 = vmatpush.bf16.msra.mxu0 %v2605
    %3633 = vmatpush.bf16.msra.mxu0 %v2589
    %3634 = vmatpush.bf16.msra.mxu0 %v2573
    %3635 = vmatpush.bf16.msra.mxu0 %v2557
    %3636 = vmatpush.bf16.msra.mxu0 %v2541
    %3637 = vmatpush.bf16.msra.mxu0 %v2525
    %3638 = vmatpush.bf16.msra.mxu0 %v2509
    %3639 = vmatmul.bf16.gmra.mxu0 %v32
    %v3640 = vpop.f32.mrf.mxu0
    %v3641 = vadd.f32 %v3627, %v3640
    %v3642 = vpop.f32.mrf.mxu0
    %v3643 = vadd.f32 %v3629, %v3642
    %3644 = vdwg.mxu0
    %3645 = vmatpush.bf16.msra.mxu0 %v2238
    %3646 = vmatpush.bf16.msra.mxu0 %v2222
    %3647 = vmatpush.bf16.msra.mxu0 %v2206
    %3648 = vmatpush.bf16.msra.mxu0 %v2190
    %3649 = vmatpush.bf16.msra.mxu0 %v2174
    %3650 = vmatpush.bf16.msra.mxu0 %v2158
    %3651 = vmatpush.bf16.msra.mxu0 %v2142
    %3652 = vmatpush.bf16.msra.mxu0 %v2126
    %3653 = vmatmul.bf16.gmra.mxu0 %v29
    %v3654 = vpop.f32.mrf.mxu0
    %v3655 = vadd.f32 %v558, %v3654
    %v3656 = vpop.f32.mrf.mxu0
    %v3657 = vadd.f32 %v558, %v3656
    %3658 = vdwg.mxu0
    %3659 = vmatpush.bf16.msra.mxu0 %v2366
    %3660 = vmatpush.bf16.msra.mxu0 %v2350
    %3661 = vmatpush.bf16.msra.mxu0 %v2334
    %3662 = vmatpush.bf16.msra.mxu0 %v2318
    %3663 = vmatpush.bf16.msra.mxu0 %v2302
    %3664 = vmatpush.bf16.msra.mxu0 %v2286
    %3665 = vmatpush.bf16.msra.mxu0 %v2270
    %3666 = vmatpush.bf16.msra.mxu0 %v2254
    %3667 = vmatmul.bf16.gmra.mxu0 %v30
    %v3668 = vpop.f32.mrf.mxu0
    %v3669 = vadd.f32 %v3655, %v3668
    %v3670 = vpop.f32.mrf.mxu0
    %v3671 = vadd.f32 %v3657, %v3670
    %3672 = vdwg.mxu0
    %3673 = vmatpush.bf16.msra.mxu0 %v2494
    %3674 = vmatpush.bf16.msra.mxu0 %v2478
    %3675 = vmatpush.bf16.msra.mxu0 %v2462
    %3676 = vmatpush.bf16.msra.mxu0 %v2446
    %3677 = vmatpush.bf16.msra.mxu0 %v2430
    %3678 = vmatpush.bf16.msra.mxu0 %v2414
    %3679 = vmatpush.bf16.msra.mxu0 %v2398
    %3680 = vmatpush.bf16.msra.mxu0 %v2382
    %3681 = vmatmul.bf16.gmra.mxu0 %v31
    %v3682 = vpop.f32.mrf.mxu0
    %v3683 = vadd.f32 %v3669, %v3682
    %v3684 = vpop.f32.mrf.mxu0
    %v3685 = vadd.f32 %v3671, %v3684
    %3686 = vdwg.mxu0
    %3687 = vmatpush.bf16.msra.mxu0 %v2622
    %3688 = vmatpush.bf16.msra.mxu0 %v2606
    %3689 = vmatpush.bf16.msra.mxu0 %v2590
    %3690 = vmatpush.bf16.msra.mxu0 %v2574
    %3691 = vmatpush.bf16.msra.mxu0 %v2558
    %3692 = vmatpush.bf16.msra.mxu0 %v2542
    %3693 = vmatpush.bf16.msra.mxu0 %v2526
    %3694 = vmatpush.bf16.msra.mxu0 %v2510
    %3695 = vmatmul.bf16.gmra.mxu0 %v32
    %v3696 = vpop.f32.mrf.mxu0
    %v3697 = vadd.f32 %v3683, %v3696
    %v3698 = vpop.f32.mrf.mxu0
    %v3699 = vadd.f32 %v3685, %v3698
    %3700 = vdwg.mxu0
    %3701 = vmatpush.bf16.msra.mxu0 %v2239
    %3702 = vmatpush.bf16.msra.mxu0 %v2223
    %3703 = vmatpush.bf16.msra.mxu0 %v2207
    %3704 = vmatpush.bf16.msra.mxu0 %v2191
    %3705 = vmatpush.bf16.msra.mxu0 %v2175
    %3706 = vmatpush.bf16.msra.mxu0 %v2159
    %3707 = vmatpush.bf16.msra.mxu0 %v2143
    %3708 = vmatpush.bf16.msra.mxu0 %v2127
    %3709 = vmatmul.bf16.gmra.mxu0 %v29
    %v3710 = vpop.f32.mrf.mxu0
    %v3711 = vadd.f32 %v559, %v3710
    %v3712 = vpop.f32.mrf.mxu0
    %v3713 = vadd.f32 %v559, %v3712
    %3714 = vdwg.mxu0
    %3715 = vmatpush.bf16.msra.mxu0 %v2367
    %3716 = vmatpush.bf16.msra.mxu0 %v2351
    %3717 = vmatpush.bf16.msra.mxu0 %v2335
    %3718 = vmatpush.bf16.msra.mxu0 %v2319
    %3719 = vmatpush.bf16.msra.mxu0 %v2303
    %3720 = vmatpush.bf16.msra.mxu0 %v2287
    %3721 = vmatpush.bf16.msra.mxu0 %v2271
    %3722 = vmatpush.bf16.msra.mxu0 %v2255
    %3723 = vmatmul.bf16.gmra.mxu0 %v30
    %v3724 = vpop.f32.mrf.mxu0
    %v3725 = vadd.f32 %v3711, %v3724
    %v3726 = vpop.f32.mrf.mxu0
    %v3727 = vadd.f32 %v3713, %v3726
    %3728 = vdwg.mxu0
    %3729 = vmatpush.bf16.msra.mxu0 %v2495
    %3730 = vmatpush.bf16.msra.mxu0 %v2479
    %3731 = vmatpush.bf16.msra.mxu0 %v2463
    %3732 = vmatpush.bf16.msra.mxu0 %v2447
    %3733 = vmatpush.bf16.msra.mxu0 %v2431
    %3734 = vmatpush.bf16.msra.mxu0 %v2415
    %3735 = vmatpush.bf16.msra.mxu0 %v2399
    %3736 = vmatpush.bf16.msra.mxu0 %v2383
    %3737 = vmatmul.bf16.gmra.mxu0 %v31
    %v3738 = vpop.f32.mrf.mxu0
    %v3739 = vadd.f32 %v3725, %v3738
    %v3740 = vpop.f32.mrf.mxu0
    %v3741 = vadd.f32 %v3727, %v3740
    %3742 = vdwg.mxu0
    %3743 = vmatpush.bf16.msra.mxu0 %v2623
    %3744 = vmatpush.bf16.msra.mxu0 %v2607
    %3745 = vmatpush.bf16.msra.mxu0 %v2591
    %3746 = vmatpush.bf16.msra.mxu0 %v2575
    %3747 = vmatpush.bf16.msra.mxu0 %v2559
    %3748 = vmatpush.bf16.msra.mxu0 %v2543
    %3749 = vmatpush.bf16.msra.mxu0 %v2527
    %3750 = vmatpush.bf16.msra.mxu0 %v2511
    %3751 = vmatmul.bf16.gmra.mxu0 %v32
    %v3752 = vpop.f32.mrf.mxu0
    %v3753 = vadd.f32 %v3739, %v3752
    %v3754 = vpop.f32.mrf.mxu0
    %v3755 = vadd.f32 %v3741, %v3754
    %3756 = vdwg.mxu0
    %3757 = vmatpush.bf16.msra.mxu0 %v2240
    %3758 = vmatpush.bf16.msra.mxu0 %v2224
    %3759 = vmatpush.bf16.msra.mxu0 %v2208
    %3760 = vmatpush.bf16.msra.mxu0 %v2192
    %3761 = vmatpush.bf16.msra.mxu0 %v2176
    %3762 = vmatpush.bf16.msra.mxu0 %v2160
    %3763 = vmatpush.bf16.msra.mxu0 %v2144
    %3764 = vmatpush.bf16.msra.mxu0 %v2128
    %3765 = vmatmul.bf16.gmra.mxu0 %v29
    %v3766 = vpop.f32.mrf.mxu0
    %v3767 = vadd.f32 %v560, %v3766
    %v3768 = vpop.f32.mrf.mxu0
    %v3769 = vadd.f32 %v560, %v3768
    %3770 = vdwg.mxu0
    %3771 = vmatpush.bf16.msra.mxu0 %v2368
    %3772 = vmatpush.bf16.msra.mxu0 %v2352
    %3773 = vmatpush.bf16.msra.mxu0 %v2336
    %3774 = vmatpush.bf16.msra.mxu0 %v2320
    %3775 = vmatpush.bf16.msra.mxu0 %v2304
    %3776 = vmatpush.bf16.msra.mxu0 %v2288
    %3777 = vmatpush.bf16.msra.mxu0 %v2272
    %3778 = vmatpush.bf16.msra.mxu0 %v2256
    %3779 = vmatmul.bf16.gmra.mxu0 %v30
    %v3780 = vpop.f32.mrf.mxu0
    %v3781 = vadd.f32 %v3767, %v3780
    %v3782 = vpop.f32.mrf.mxu0
    %v3783 = vadd.f32 %v3769, %v3782
    %3784 = vdwg.mxu0
    %3785 = vmatpush.bf16.msra.mxu0 %v2496
    %3786 = vmatpush.bf16.msra.mxu0 %v2480
    %3787 = vmatpush.bf16.msra.mxu0 %v2464
    %3788 = vmatpush.bf16.msra.mxu0 %v2448
    %3789 = vmatpush.bf16.msra.mxu0 %v2432
    %3790 = vmatpush.bf16.msra.mxu0 %v2416
    %3791 = vmatpush.bf16.msra.mxu0 %v2400
    %3792 = vmatpush.bf16.msra.mxu0 %v2384
    %3793 = vmatmul.bf16.gmra.mxu0 %v31
    %v3794 = vpop.f32.mrf.mxu0
    %v3795 = vadd.f32 %v3781, %v3794
    %v3796 = vpop.f32.mrf.mxu0
    %v3797 = vadd.f32 %v3783, %v3796
    %3798 = vdwg.mxu0
    %3799 = vmatpush.bf16.msra.mxu0 %v2624
    %3800 = vmatpush.bf16.msra.mxu0 %v2608
    %3801 = vmatpush.bf16.msra.mxu0 %v2592
    %3802 = vmatpush.bf16.msra.mxu0 %v2576
    %3803 = vmatpush.bf16.msra.mxu0 %v2560
    %3804 = vmatpush.bf16.msra.mxu0 %v2544
    %3805 = vmatpush.bf16.msra.mxu0 %v2528
    %3806 = vmatpush.bf16.msra.mxu0 %v2512
    %3807 = vmatmul.bf16.gmra.mxu0 %v32
    %v3808 = vpop.f32.mrf.mxu0
    %v3809 = vadd.f32 %v3795, %v3808
    %v3810 = vpop.f32.mrf.mxu0
    %v3811 = vadd.f32 %v3797, %v3810
    %3812 = vdwg.mxu0
    %3813 = vmatpush.bf16.msra.mxu0 %v2241
    %3814 = vmatpush.bf16.msra.mxu0 %v2225
    %3815 = vmatpush.bf16.msra.mxu0 %v2209
    %3816 = vmatpush.bf16.msra.mxu0 %v2193
    %3817 = vmatpush.bf16.msra.mxu0 %v2177
    %3818 = vmatpush.bf16.msra.mxu0 %v2161
    %3819 = vmatpush.bf16.msra.mxu0 %v2145
    %3820 = vmatpush.bf16.msra.mxu0 %v2129
    %3821 = vmatmul.bf16.gmra.mxu0 %v29
    %v3822 = vpop.f32.mrf.mxu0
    %v3823 = vadd.f32 %v561, %v3822
    %v3824 = vpop.f32.mrf.mxu0
    %v3825 = vadd.f32 %v561, %v3824
    %3826 = vdwg.mxu0
    %3827 = vmatpush.bf16.msra.mxu0 %v2369
    %3828 = vmatpush.bf16.msra.mxu0 %v2353
    %3829 = vmatpush.bf16.msra.mxu0 %v2337
    %3830 = vmatpush.bf16.msra.mxu0 %v2321
    %3831 = vmatpush.bf16.msra.mxu0 %v2305
    %3832 = vmatpush.bf16.msra.mxu0 %v2289
    %3833 = vmatpush.bf16.msra.mxu0 %v2273
    %3834 = vmatpush.bf16.msra.mxu0 %v2257
    %3835 = vmatmul.bf16.gmra.mxu0 %v30
    %v3836 = vpop.f32.mrf.mxu0
    %v3837 = vadd.f32 %v3823, %v3836
    %v3838 = vpop.f32.mrf.mxu0
    %v3839 = vadd.f32 %v3825, %v3838
    %3840 = vdwg.mxu0
    %3841 = vmatpush.bf16.msra.mxu0 %v2497
    %3842 = vmatpush.bf16.msra.mxu0 %v2481
    %3843 = vmatpush.bf16.msra.mxu0 %v2465
    %3844 = vmatpush.bf16.msra.mxu0 %v2449
    %3845 = vmatpush.bf16.msra.mxu0 %v2433
    %3846 = vmatpush.bf16.msra.mxu0 %v2417
    %3847 = vmatpush.bf16.msra.mxu0 %v2401
    %3848 = vmatpush.bf16.msra.mxu0 %v2385
    %3849 = vmatmul.bf16.gmra.mxu0 %v31
    %v3850 = vpop.f32.mrf.mxu0
    %v3851 = vadd.f32 %v3837, %v3850
    %v3852 = vpop.f32.mrf.mxu0
    %v3853 = vadd.f32 %v3839, %v3852
    %3854 = vdwg.mxu0
    %3855 = vmatpush.bf16.msra.mxu0 %v2625
    %3856 = vmatpush.bf16.msra.mxu0 %v2609
    %3857 = vmatpush.bf16.msra.mxu0 %v2593
    %3858 = vmatpush.bf16.msra.mxu0 %v2577
    %3859 = vmatpush.bf16.msra.mxu0 %v2561
    %3860 = vmatpush.bf16.msra.mxu0 %v2545
    %3861 = vmatpush.bf16.msra.mxu0 %v2529
    %3862 = vmatpush.bf16.msra.mxu0 %v2513
    %3863 = vmatmul.bf16.gmra.mxu0 %v32
    %v3864 = vpop.f32.mrf.mxu0
    %v3865 = vadd.f32 %v3851, %v3864
    %v3866 = vpop.f32.mrf.mxu0
    %v3867 = vadd.f32 %v3853, %v3866
    %3868 = vdwg.mxu0
    %3869 = vmatpush.bf16.msra.mxu0 %v2242
    %3870 = vmatpush.bf16.msra.mxu0 %v2226
    %3871 = vmatpush.bf16.msra.mxu0 %v2210
    %3872 = vmatpush.bf16.msra.mxu0 %v2194
    %3873 = vmatpush.bf16.msra.mxu0 %v2178
    %3874 = vmatpush.bf16.msra.mxu0 %v2162
    %3875 = vmatpush.bf16.msra.mxu0 %v2146
    %3876 = vmatpush.bf16.msra.mxu0 %v2130
    %3877 = vmatmul.bf16.gmra.mxu0 %v29
    %v3878 = vpop.f32.mrf.mxu0
    %v3879 = vadd.f32 %v562, %v3878
    %v3880 = vpop.f32.mrf.mxu0
    %v3881 = vadd.f32 %v562, %v3880
    %3882 = vdwg.mxu0
    %3883 = vmatpush.bf16.msra.mxu0 %v2370
    %3884 = vmatpush.bf16.msra.mxu0 %v2354
    %3885 = vmatpush.bf16.msra.mxu0 %v2338
    %3886 = vmatpush.bf16.msra.mxu0 %v2322
    %3887 = vmatpush.bf16.msra.mxu0 %v2306
    %3888 = vmatpush.bf16.msra.mxu0 %v2290
    %3889 = vmatpush.bf16.msra.mxu0 %v2274
    %3890 = vmatpush.bf16.msra.mxu0 %v2258
    %3891 = vmatmul.bf16.gmra.mxu0 %v30
    %v3892 = vpop.f32.mrf.mxu0
    %v3893 = vadd.f32 %v3879, %v3892
    %v3894 = vpop.f32.mrf.mxu0
    %v3895 = vadd.f32 %v3881, %v3894
    %3896 = vdwg.mxu0
    %3897 = vmatpush.bf16.msra.mxu0 %v2498
    %3898 = vmatpush.bf16.msra.mxu0 %v2482
    %3899 = vmatpush.bf16.msra.mxu0 %v2466
    %3900 = vmatpush.bf16.msra.mxu0 %v2450
    %3901 = vmatpush.bf16.msra.mxu0 %v2434
    %3902 = vmatpush.bf16.msra.mxu0 %v2418
    %3903 = vmatpush.bf16.msra.mxu0 %v2402
    %3904 = vmatpush.bf16.msra.mxu0 %v2386
    %3905 = vmatmul.bf16.gmra.mxu0 %v31
    %v3906 = vpop.f32.mrf.mxu0
    %v3907 = vadd.f32 %v3893, %v3906
    %v3908 = vpop.f32.mrf.mxu0
    %v3909 = vadd.f32 %v3895, %v3908
    %3910 = vdwg.mxu0
    %3911 = vmatpush.bf16.msra.mxu0 %v2626
    %3912 = vmatpush.bf16.msra.mxu0 %v2610
    %3913 = vmatpush.bf16.msra.mxu0 %v2594
    %3914 = vmatpush.bf16.msra.mxu0 %v2578
    %3915 = vmatpush.bf16.msra.mxu0 %v2562
    %3916 = vmatpush.bf16.msra.mxu0 %v2546
    %3917 = vmatpush.bf16.msra.mxu0 %v2530
    %3918 = vmatpush.bf16.msra.mxu0 %v2514
    %3919 = vmatmul.bf16.gmra.mxu0 %v32
    %v3920 = vpop.f32.mrf.mxu0
    %v3921 = vadd.f32 %v3907, %v3920
    %v3922 = vpop.f32.mrf.mxu0
    %v3923 = vadd.f32 %v3909, %v3922
    %3924 = vdwg.mxu0
    %3925 = vmatpush.bf16.msra.mxu0 %v2243
    %3926 = vmatpush.bf16.msra.mxu0 %v2227
    %3927 = vmatpush.bf16.msra.mxu0 %v2211
    %3928 = vmatpush.bf16.msra.mxu0 %v2195
    %3929 = vmatpush.bf16.msra.mxu0 %v2179
    %3930 = vmatpush.bf16.msra.mxu0 %v2163
    %3931 = vmatpush.bf16.msra.mxu0 %v2147
    %3932 = vmatpush.bf16.msra.mxu0 %v2131
    %3933 = vmatmul.bf16.gmra.mxu0 %v29
    %v3934 = vpop.f32.mrf.mxu0
    %v3935 = vadd.f32 %v563, %v3934
    %v3936 = vpop.f32.mrf.mxu0
    %v3937 = vadd.f32 %v563, %v3936
    %3938 = vdwg.mxu0
    %3939 = vmatpush.bf16.msra.mxu0 %v2371
    %3940 = vmatpush.bf16.msra.mxu0 %v2355
    %3941 = vmatpush.bf16.msra.mxu0 %v2339
    %3942 = vmatpush.bf16.msra.mxu0 %v2323
    %3943 = vmatpush.bf16.msra.mxu0 %v2307
    %3944 = vmatpush.bf16.msra.mxu0 %v2291
    %3945 = vmatpush.bf16.msra.mxu0 %v2275
    %3946 = vmatpush.bf16.msra.mxu0 %v2259
    %3947 = vmatmul.bf16.gmra.mxu0 %v30
    %v3948 = vpop.f32.mrf.mxu0
    %v3949 = vadd.f32 %v3935, %v3948
    %v3950 = vpop.f32.mrf.mxu0
    %v3951 = vadd.f32 %v3937, %v3950
    %3952 = vdwg.mxu0
    %3953 = vmatpush.bf16.msra.mxu0 %v2499
    %3954 = vmatpush.bf16.msra.mxu0 %v2483
    %3955 = vmatpush.bf16.msra.mxu0 %v2467
    %3956 = vmatpush.bf16.msra.mxu0 %v2451
    %3957 = vmatpush.bf16.msra.mxu0 %v2435
    %3958 = vmatpush.bf16.msra.mxu0 %v2419
    %3959 = vmatpush.bf16.msra.mxu0 %v2403
    %3960 = vmatpush.bf16.msra.mxu0 %v2387
    %3961 = vmatmul.bf16.gmra.mxu0 %v31
    %v3962 = vpop.f32.mrf.mxu0
    %v3963 = vadd.f32 %v3949, %v3962
    %v3964 = vpop.f32.mrf.mxu0
    %v3965 = vadd.f32 %v3951, %v3964
    %3966 = vdwg.mxu0
    %3967 = vmatpush.bf16.msra.mxu0 %v2627
    %3968 = vmatpush.bf16.msra.mxu0 %v2611
    %3969 = vmatpush.bf16.msra.mxu0 %v2595
    %3970 = vmatpush.bf16.msra.mxu0 %v2579
    %3971 = vmatpush.bf16.msra.mxu0 %v2563
    %3972 = vmatpush.bf16.msra.mxu0 %v2547
    %3973 = vmatpush.bf16.msra.mxu0 %v2531
    %3974 = vmatpush.bf16.msra.mxu0 %v2515
    %3975 = vmatmul.bf16.gmra.mxu0 %v32
    %v3976 = vpop.f32.mrf.mxu0
    %v3977 = vadd.f32 %v3963, %v3976
    %v3978 = vpop.f32.mrf.mxu0
    %v3979 = vadd.f32 %v3965, %v3978
    %3980 = vdwg.mxu0
    %3981 = vmatpush.bf16.msra.mxu0 %v2244
    %3982 = vmatpush.bf16.msra.mxu0 %v2228
    %3983 = vmatpush.bf16.msra.mxu0 %v2212
    %3984 = vmatpush.bf16.msra.mxu0 %v2196
    %3985 = vmatpush.bf16.msra.mxu0 %v2180
    %3986 = vmatpush.bf16.msra.mxu0 %v2164
    %3987 = vmatpush.bf16.msra.mxu0 %v2148
    %3988 = vmatpush.bf16.msra.mxu0 %v2132
    %3989 = vmatmul.bf16.gmra.mxu0 %v29
    %v3990 = vpop.f32.mrf.mxu0
    %v3991 = vadd.f32 %v564, %v3990
    %v3992 = vpop.f32.mrf.mxu0
    %v3993 = vadd.f32 %v564, %v3992
    %3994 = vdwg.mxu0
    %3995 = vmatpush.bf16.msra.mxu0 %v2372
    %3996 = vmatpush.bf16.msra.mxu0 %v2356
    %3997 = vmatpush.bf16.msra.mxu0 %v2340
    %3998 = vmatpush.bf16.msra.mxu0 %v2324
    %3999 = vmatpush.bf16.msra.mxu0 %v2308
    %4000 = vmatpush.bf16.msra.mxu0 %v2292
    %4001 = vmatpush.bf16.msra.mxu0 %v2276
    %4002 = vmatpush.bf16.msra.mxu0 %v2260
    %4003 = vmatmul.bf16.gmra.mxu0 %v30
    %v4004 = vpop.f32.mrf.mxu0
    %v4005 = vadd.f32 %v3991, %v4004
    %v4006 = vpop.f32.mrf.mxu0
    %v4007 = vadd.f32 %v3993, %v4006
    %4008 = vdwg.mxu0
    %4009 = vmatpush.bf16.msra.mxu0 %v2500
    %4010 = vmatpush.bf16.msra.mxu0 %v2484
    %4011 = vmatpush.bf16.msra.mxu0 %v2468
    %4012 = vmatpush.bf16.msra.mxu0 %v2452
    %4013 = vmatpush.bf16.msra.mxu0 %v2436
    %4014 = vmatpush.bf16.msra.mxu0 %v2420
    %4015 = vmatpush.bf16.msra.mxu0 %v2404
    %4016 = vmatpush.bf16.msra.mxu0 %v2388
    %4017 = vmatmul.bf16.gmra.mxu0 %v31
    %v4018 = vpop.f32.mrf.mxu0
    %v4019 = vadd.f32 %v4005, %v4018
    %v4020 = vpop.f32.mrf.mxu0
    %v4021 = vadd.f32 %v4007, %v4020
    %4022 = vdwg.mxu0
    %4023 = vmatpush.bf16.msra.mxu0 %v2628
    %4024 = vmatpush.bf16.msra.mxu0 %v2612
    %4025 = vmatpush.bf16.msra.mxu0 %v2596
    %4026 = vmatpush.bf16.msra.mxu0 %v2580
    %4027 = vmatpush.bf16.msra.mxu0 %v2564
    %4028 = vmatpush.bf16.msra.mxu0 %v2548
    %4029 = vmatpush.bf16.msra.mxu0 %v2532
    %4030 = vmatpush.bf16.msra.mxu0 %v2516
    %4031 = vmatmul.bf16.gmra.mxu0 %v32
    %v4032 = vpop.f32.mrf.mxu0
    %v4033 = vadd.f32 %v4019, %v4032
    %v4034 = vpop.f32.mrf.mxu0
    %v4035 = vadd.f32 %v4021, %v4034
    %4036 = vdwg.mxu0
    %v4037 = vmax.f32 %v3193, 0.0
    %v4038 = vmax.f32 %v3249, 0.0
    %v4039 = vmax.f32 %v3305, 0.0
    %v4040 = vmax.f32 %v3361, 0.0
    %v4041 = vmax.f32 %v3417, 0.0
    %v4042 = vmax.f32 %v3473, 0.0
    %v4043 = vmax.f32 %v3529, 0.0
    %v4044 = vmax.f32 %v3585, 0.0
    %v4045 = vmax.f32 %v3641, 0.0
    %v4046 = vmax.f32 %v3697, 0.0
    %v4047 = vmax.f32 %v3753, 0.0
    %v4048 = vmax.f32 %v3809, 0.0
    %v4049 = vmax.f32 %v3865, 0.0
    %v4050 = vmax.f32 %v3921, 0.0
    %v4051 = vmax.f32 %v3977, 0.0
    %v4052 = vmax.f32 %v4033, 0.0
    %v4053 = vmax.f32 %v3195, 0.0
    %v4054 = vmax.f32 %v3251, 0.0
    %v4055 = vmax.f32 %v3307, 0.0
    %v4056 = vmax.f32 %v3363, 0.0
    %v4057 = vmax.f32 %v3419, 0.0
    %v4058 = vmax.f32 %v3475, 0.0
    %v4059 = vmax.f32 %v3531, 0.0
    %v4060 = vmax.f32 %v3587, 0.0
    %v4061 = vmax.f32 %v3643, 0.0
    %v4062 = vmax.f32 %v3699, 0.0
    %v4063 = vmax.f32 %v3755, 0.0
    %v4064 = vmax.f32 %v3811, 0.0
    %v4065 = vmax.f32 %v3867, 0.0
    %v4066 = vmax.f32 %v3923, 0.0
    %v4067 = vmax.f32 %v3979, 0.0
    %v4068 = vmax.f32 %v4035, 0.0
    %v4069 = vpack.c.bf16 %v4053, %v4037
    %v4070 = vpack.c.bf16 %v4054, %v4038
    %v4071 = vpack.c.bf16 %v4055, %v4039
    %v4072 = vpack.c.bf16 %v4056, %v4040
    %v4073 = vpack.c.bf16 %v4057, %v4041
    %v4074 = vpack.c.bf16 %v4058, %v4042
    %v4075 = vpack.c.bf16 %v4059, %v4043
    %v4076 = vpack.c.bf16 %v4060, %v4044
    %v4077 = vpack.c.bf16 %v4061, %v4045
    %v4078 = vpack.c.bf16 %v4062, %v4046
    %v4079 = vpack.c.bf16 %v4063, %v4047
    %v4080 = vpack.c.bf16 %v4064, %v4048
    %v4081 = vpack.c.bf16 %v4065, %v4049
    %v4082 = vpack.c.bf16 %v4066, %v4050
    %v4083 = vpack.c.bf16 %v4067, %v4051
    %v4084 = vpack.c.bf16 %v4068, %v4052
    %v4085 = vld [vmem:[%s3] sm:$0xff]
    %v4086 = vld [vmem:[%s3 + $0x8] sm:$0xff]
    %v4087 = vld [vmem:[%s3 + $0x10] sm:$0xff]
    %v4088 = vld [vmem:[%s3 + $0x18] sm:$0xff]
    %v4089 = vld [vmem:[%s3 + $0x20] sm:$0xff]
    %v4090 = vld [vmem:[%s3 + $0x28] sm:$0xff]
    %v4091 = vld [vmem:[%s3 + $0x30] sm:$0xff]
    %v4092 = vld [vmem:[%s3 + $0x38] sm:$0xff]
    %v4093 = vld [vmem:[%s3 + $0x40] sm:$0xff]
    %v4094 = vld [vmem:[%s3 + $0x48] sm:$0xff]
    %v4095 = vld [vmem:[%s3 + $0x50] sm:$0xff]
    %v4096 = vld [vmem:[%s3 + $0x58] sm:$0xff]
    %v4097 = vld [vmem:[%s3 + $0x60] sm:$0xff]
    %v4098 = vld [vmem:[%s3 + $0x68] sm:$0xff]
    %v4099 = vld [vmem:[%s3 + $0x70] sm:$0xff]
    %v4100 = vld [vmem:[%s3 + $0x78] sm:$0xff]
    %v4101 = vld [vmem:[%s3 + $0x80] sm:$0xff]
    %v4102 = vld [vmem:[%s3 + $0x88] sm:$0xff]
    %v4103 = vld [vmem:[%s3 + $0x90] sm:$0xff]
    %v4104 = vld [vmem:[%s3 + $0x98] sm:$0xff]
    %v4105 = vld [vmem:[%s3 + $0xa0] sm:$0xff]
    %v4106 = vld [vmem:[%s3 + $0xa8] sm:$0xff]
    %v4107 = vld [vmem:[%s3 + $0xb0] sm:$0xff]
    %v4108 = vld [vmem:[%s3 + $0xb8] sm:$0xff]
    %v4109 = vld [vmem:[%s3 + $0xc0] sm:$0xff]
    %v4110 = vld [vmem:[%s3 + $0xc8] sm:$0xff]
    %v4111 = vld [vmem:[%s3 + $0xd0] sm:$0xff]
    %v4112 = vld [vmem:[%s3 + $0xd8] sm:$0xff]
    %v4113 = vld [vmem:[%s3 + $0xe0] sm:$0xff]
    %v4114 = vld [vmem:[%s3 + $0xe8] sm:$0xff]
    %v4115 = vld [vmem:[%s3 + $0xf0] sm:$0xff]
    %v4116 = vld [vmem:[%s3 + $0xf8] sm:$0xff]
    %v4117 = vld [vmem:[%s3 + $0x100] sm:$0xff]
    %v4118 = vld [vmem:[%s3 + $0x108] sm:$0xff]
    %v4119 = vld [vmem:[%s3 + $0x110] sm:$0xff]
    %v4120 = vld [vmem:[%s3 + $0x118] sm:$0xff]
    %v4121 = vld [vmem:[%s3 + $0x120] sm:$0xff]
    %v4122 = vld [vmem:[%s3 + $0x128] sm:$0xff]
    %v4123 = vld [vmem:[%s3 + $0x130] sm:$0xff]
    %v4124 = vld [vmem:[%s3 + $0x138] sm:$0xff]
    %v4125 = vld [vmem:[%s3 + $0x140] sm:$0xff]
    %v4126 = vld [vmem:[%s3 + $0x148] sm:$0xff]
    %v4127 = vld [vmem:[%s3 + $0x150] sm:$0xff]
    %v4128 = vld [vmem:[%s3 + $0x158] sm:$0xff]
    %v4129 = vld [vmem:[%s3 + $0x160] sm:$0xff]
    %v4130 = vld [vmem:[%s3 + $0x168] sm:$0xff]
    %v4131 = vld [vmem:[%s3 + $0x170] sm:$0xff]
    %v4132 = vld [vmem:[%s3 + $0x178] sm:$0xff]
    %v4133 = vld [vmem:[%s3 + $0x180] sm:$0xff]
    %v4134 = vld [vmem:[%s3 + $0x188] sm:$0xff]
    %v4135 = vld [vmem:[%s3 + $0x190] sm:$0xff]
    %v4136 = vld [vmem:[%s3 + $0x198] sm:$0xff]
    %v4137 = vld [vmem:[%s3 + $0x1a0] sm:$0xff]
    %v4138 = vld [vmem:[%s3 + $0x1a8] sm:$0xff]
    %v4139 = vld [vmem:[%s3 + $0x1b0] sm:$0xff]
    %v4140 = vld [vmem:[%s3 + $0x1b8] sm:$0xff]
    %v4141 = vld [vmem:[%s3 + $0x1c0] sm:$0xff]
    %v4142 = vld [vmem:[%s3 + $0x1c8] sm:$0xff]
    %v4143 = vld [vmem:[%s3 + $0x1d0] sm:$0xff]
    %v4144 = vld [vmem:[%s3 + $0x1d8] sm:$0xff]
    %v4145 = vld [vmem:[%s3 + $0x1e0] sm:$0xff]
    %v4146 = vld [vmem:[%s3 + $0x1e8] sm:$0xff]
    %v4147 = vld [vmem:[%s3 + $0x1f0] sm:$0xff]
    %v4148 = vld [vmem:[%s3 + $0x1f8] sm:$0xff]
    %v4149 = vld [vmem:[%s3 + $0x200] sm:$0xff]
    %v4150 = vld [vmem:[%s3 + $0x208] sm:$0xff]
    %v4151 = vld [vmem:[%s3 + $0x210] sm:$0xff]
    %v4152 = vld [vmem:[%s3 + $0x218] sm:$0xff]
    %v4153 = vld [vmem:[%s3 + $0x220] sm:$0xff]
    %v4154 = vld [vmem:[%s3 + $0x228] sm:$0xff]
    %v4155 = vld [vmem:[%s3 + $0x230] sm:$0xff]
    %v4156 = vld [vmem:[%s3 + $0x238] sm:$0xff]
    %v4157 = vld [vmem:[%s3 + $0x240] sm:$0xff]
    %v4158 = vld [vmem:[%s3 + $0x248] sm:$0xff]
    %v4159 = vld [vmem:[%s3 + $0x250] sm:$0xff]
    %v4160 = vld [vmem:[%s3 + $0x258] sm:$0xff]
    %v4161 = vld [vmem:[%s3 + $0x260] sm:$0xff]
    %v4162 = vld [vmem:[%s3 + $0x268] sm:$0xff]
    %v4163 = vld [vmem:[%s3 + $0x270] sm:$0xff]
    %v4164 = vld [vmem:[%s3 + $0x278] sm:$0xff]
    %v4165 = vld [vmem:[%s3 + $0x280] sm:$0xff]
    %v4166 = vld [vmem:[%s3 + $0x288] sm:$0xff]
    %v4167 = vld [vmem:[%s3 + $0x290] sm:$0xff]
    %v4168 = vld [vmem:[%s3 + $0x298] sm:$0xff]
    %v4169 = vld [vmem:[%s3 + $0x2a0] sm:$0xff]
    %v4170 = vld [vmem:[%s3 + $0x2a8] sm:$0xff]
    %v4171 = vld [vmem:[%s3 + $0x2b0] sm:$0xff]
    %v4172 = vld [vmem:[%s3 + $0x2b8] sm:$0xff]
    %v4173 = vld [vmem:[%s3 + $0x2c0] sm:$0xff]
    %v4174 = vld [vmem:[%s3 + $0x2c8] sm:$0xff]
    %v4175 = vld [vmem:[%s3 + $0x2d0] sm:$0xff]
    %v4176 = vld [vmem:[%s3 + $0x2d8] sm:$0xff]
    %v4177 = vld [vmem:[%s3 + $0x2e0] sm:$0xff]
    %v4178 = vld [vmem:[%s3 + $0x2e8] sm:$0xff]
    %v4179 = vld [vmem:[%s3 + $0x2f0] sm:$0xff]
    %v4180 = vld [vmem:[%s3 + $0x2f8] sm:$0xff]
    %v4181 = vld [vmem:[%s3 + $0x300] sm:$0xff]
    %v4182 = vld [vmem:[%s3 + $0x308] sm:$0xff]
    %v4183 = vld [vmem:[%s3 + $0x310] sm:$0xff]
    %v4184 = vld [vmem:[%s3 + $0x318] sm:$0xff]
    %v4185 = vld [vmem:[%s3 + $0x320] sm:$0xff]
    %v4186 = vld [vmem:[%s3 + $0x328] sm:$0xff]
    %v4187 = vld [vmem:[%s3 + $0x330] sm:$0xff]
    %v4188 = vld [vmem:[%s3 + $0x338] sm:$0xff]
    %v4189 = vld [vmem:[%s3 + $0x340] sm:$0xff]
    %v4190 = vld [vmem:[%s3 + $0x348] sm:$0xff]
    %v4191 = vld [vmem:[%s3 + $0x350] sm:$0xff]
    %v4192 = vld [vmem:[%s3 + $0x358] sm:$0xff]
    %v4193 = vld [vmem:[%s3 + $0x360] sm:$0xff]
    %v4194 = vld [vmem:[%s3 + $0x368] sm:$0xff]
    %v4195 = vld [vmem:[%s3 + $0x370] sm:$0xff]
    %v4196 = vld [vmem:[%s3 + $0x378] sm:$0xff]
    %v4197 = vld [vmem:[%s3 + $0x380] sm:$0xff]
    %v4198 = vld [vmem:[%s3 + $0x388] sm:$0xff]
    %v4199 = vld [vmem:[%s3 + $0x390] sm:$0xff]
    %v4200 = vld [vmem:[%s3 + $0x398] sm:$0xff]
    %v4201 = vld [vmem:[%s3 + $0x3a0] sm:$0xff]
    %v4202 = vld [vmem:[%s3 + $0x3a8] sm:$0xff]
    %v4203 = vld [vmem:[%s3 + $0x3b0] sm:$0xff]
    %v4204 = vld [vmem:[%s3 + $0x3b8] sm:$0xff]
    %v4205 = vld [vmem:[%s3 + $0x3c0] sm:$0xff]
    %v4206 = vld [vmem:[%s3 + $0x3c8] sm:$0xff]
    %v4207 = vld [vmem:[%s3 + $0x3d0] sm:$0xff]
    %v4208 = vld [vmem:[%s3 + $0x3d8] sm:$0xff]
    %v4209 = vld [vmem:[%s3 + $0x3e0] sm:$0xff]
    %v4210 = vld [vmem:[%s3 + $0x3e8] sm:$0xff]
    %v4211 = vld [vmem:[%s3 + $0x3f0] sm:$0xff]
    %v4212 = vld [vmem:[%s3 + $0x3f8] sm:$0xff]
    %v4213 = vld [vmem:[%s3 + $0x400] sm:$0xff]
    %v4214 = vld [vmem:[%s3 + $0x408] sm:$0xff]
    %v4215 = vld [vmem:[%s3 + $0x410] sm:$0xff]
    %v4216 = vld [vmem:[%s3 + $0x418] sm:$0xff]
    %v4217 = vld [vmem:[%s3 + $0x420] sm:$0xff]
    %v4218 = vld [vmem:[%s3 + $0x428] sm:$0xff]
    %v4219 = vld [vmem:[%s3 + $0x430] sm:$0xff]
    %v4220 = vld [vmem:[%s3 + $0x438] sm:$0xff]
    %v4221 = vld [vmem:[%s3 + $0x440] sm:$0xff]
    %v4222 = vld [vmem:[%s3 + $0x448] sm:$0xff]
    %v4223 = vld [vmem:[%s3 + $0x450] sm:$0xff]
    %v4224 = vld [vmem:[%s3 + $0x458] sm:$0xff]
    %v4225 = vld [vmem:[%s3 + $0x460] sm:$0xff]
    %v4226 = vld [vmem:[%s3 + $0x468] sm:$0xff]
    %v4227 = vld [vmem:[%s3 + $0x470] sm:$0xff]
    %v4228 = vld [vmem:[%s3 + $0x478] sm:$0xff]
    %v4229 = vld [vmem:[%s3 + $0x480] sm:$0xff]
    %v4230 = vld [vmem:[%s3 + $0x488] sm:$0xff]
    %v4231 = vld [vmem:[%s3 + $0x490] sm:$0xff]
    %v4232 = vld [vmem:[%s3 + $0x498] sm:$0xff]
    %v4233 = vld [vmem:[%s3 + $0x4a0] sm:$0xff]
    %v4234 = vld [vmem:[%s3 + $0x4a8] sm:$0xff]
    %v4235 = vld [vmem:[%s3 + $0x4b0] sm:$0xff]
    %v4236 = vld [vmem:[%s3 + $0x4b8] sm:$0xff]
    %v4237 = vld [vmem:[%s3 + $0x4c0] sm:$0xff]
    %v4238 = vld [vmem:[%s3 + $0x4c8] sm:$0xff]
    %v4239 = vld [vmem:[%s3 + $0x4d0] sm:$0xff]
    %v4240 = vld [vmem:[%s3 + $0x4d8] sm:$0xff]
    %v4241 = vld [vmem:[%s3 + $0x4e0] sm:$0xff]
    %v4242 = vld [vmem:[%s3 + $0x4e8] sm:$0xff]
    %v4243 = vld [vmem:[%s3 + $0x4f0] sm:$0xff]
    %v4244 = vld [vmem:[%s3 + $0x4f8] sm:$0xff]
    %v4245 = vld [vmem:[%s3 + $0x500] sm:$0xff]
    %v4246 = vld [vmem:[%s3 + $0x508] sm:$0xff]
    %v4247 = vld [vmem:[%s3 + $0x510] sm:$0xff]
    %v4248 = vld [vmem:[%s3 + $0x518] sm:$0xff]
    %v4249 = vld [vmem:[%s3 + $0x520] sm:$0xff]
    %v4250 = vld [vmem:[%s3 + $0x528] sm:$0xff]
    %v4251 = vld [vmem:[%s3 + $0x530] sm:$0xff]
    %v4252 = vld [vmem:[%s3 + $0x538] sm:$0xff]
    %v4253 = vld [vmem:[%s3 + $0x540] sm:$0xff]
    %v4254 = vld [vmem:[%s3 + $0x548] sm:$0xff]
    %v4255 = vld [vmem:[%s3 + $0x550] sm:$0xff]
    %v4256 = vld [vmem:[%s3 + $0x558] sm:$0xff]
    %v4257 = vld [vmem:[%s3 + $0x560] sm:$0xff]
    %v4258 = vld [vmem:[%s3 + $0x568] sm:$0xff]
    %v4259 = vld [vmem:[%s3 + $0x570] sm:$0xff]
    %v4260 = vld [vmem:[%s3 + $0x578] sm:$0xff]
    %v4261 = vld [vmem:[%s3 + $0x580] sm:$0xff]
    %v4262 = vld [vmem:[%s3 + $0x588] sm:$0xff]
    %v4263 = vld [vmem:[%s3 + $0x590] sm:$0xff]
    %v4264 = vld [vmem:[%s3 + $0x598] sm:$0xff]
    %v4265 = vld [vmem:[%s3 + $0x5a0] sm:$0xff]
    %v4266 = vld [vmem:[%s3 + $0x5a8] sm:$0xff]
    %v4267 = vld [vmem:[%s3 + $0x5b0] sm:$0xff]
    %v4268 = vld [vmem:[%s3 + $0x5b8] sm:$0xff]
    %v4269 = vld [vmem:[%s3 + $0x5c0] sm:$0xff]
    %v4270 = vld [vmem:[%s3 + $0x5c8] sm:$0xff]
    %v4271 = vld [vmem:[%s3 + $0x5d0] sm:$0xff]
    %v4272 = vld [vmem:[%s3 + $0x5d8] sm:$0xff]
    %v4273 = vld [vmem:[%s3 + $0x5e0] sm:$0xff]
    %v4274 = vld [vmem:[%s3 + $0x5e8] sm:$0xff]
    %v4275 = vld [vmem:[%s3 + $0x5f0] sm:$0xff]
    %v4276 = vld [vmem:[%s3 + $0x5f8] sm:$0xff]
    %v4277 = vld [vmem:[%s3 + $0x600] sm:$0xff]
    %v4278 = vld [vmem:[%s3 + $0x608] sm:$0xff]
    %v4279 = vld [vmem:[%s3 + $0x610] sm:$0xff]
    %v4280 = vld [vmem:[%s3 + $0x618] sm:$0xff]
    %v4281 = vld [vmem:[%s3 + $0x620] sm:$0xff]
    %v4282 = vld [vmem:[%s3 + $0x628] sm:$0xff]
    %v4283 = vld [vmem:[%s3 + $0x630] sm:$0xff]
    %v4284 = vld [vmem:[%s3 + $0x638] sm:$0xff]
    %v4285 = vld [vmem:[%s3 + $0x640] sm:$0xff]
    %v4286 = vld [vmem:[%s3 + $0x648] sm:$0xff]
    %v4287 = vld [vmem:[%s3 + $0x650] sm:$0xff]
    %v4288 = vld [vmem:[%s3 + $0x658] sm:$0xff]
    %v4289 = vld [vmem:[%s3 + $0x660] sm:$0xff]
    %v4290 = vld [vmem:[%s3 + $0x668] sm:$0xff]
    %v4291 = vld [vmem:[%s3 + $0x670] sm:$0xff]
    %v4292 = vld [vmem:[%s3 + $0x678] sm:$0xff]
    %v4293 = vld [vmem:[%s3 + $0x680] sm:$0xff]
    %v4294 = vld [vmem:[%s3 + $0x688] sm:$0xff]
    %v4295 = vld [vmem:[%s3 + $0x690] sm:$0xff]
    %v4296 = vld [vmem:[%s3 + $0x698] sm:$0xff]
    %v4297 = vld [vmem:[%s3 + $0x6a0] sm:$0xff]
    %v4298 = vld [vmem:[%s3 + $0x6a8] sm:$0xff]
    %v4299 = vld [vmem:[%s3 + $0x6b0] sm:$0xff]
    %v4300 = vld [vmem:[%s3 + $0x6b8] sm:$0xff]
    %v4301 = vld [vmem:[%s3 + $0x6c0] sm:$0xff]
    %v4302 = vld [vmem:[%s3 + $0x6c8] sm:$0xff]
    %v4303 = vld [vmem:[%s3 + $0x6d0] sm:$0xff]
    %v4304 = vld [vmem:[%s3 + $0x6d8] sm:$0xff]
    %v4305 = vld [vmem:[%s3 + $0x6e0] sm:$0xff]
    %v4306 = vld [vmem:[%s3 + $0x6e8] sm:$0xff]
    %v4307 = vld [vmem:[%s3 + $0x6f0] sm:$0xff]
    %v4308 = vld [vmem:[%s3 + $0x6f8] sm:$0xff]
    %v4309 = vld [vmem:[%s3 + $0x700] sm:$0xff]
    %v4310 = vld [vmem:[%s3 + $0x708] sm:$0xff]
    %v4311 = vld [vmem:[%s3 + $0x710] sm:$0xff]
    %v4312 = vld [vmem:[%s3 + $0x718] sm:$0xff]
    %v4313 = vld [vmem:[%s3 + $0x720] sm:$0xff]
    %v4314 = vld [vmem:[%s3 + $0x728] sm:$0xff]
    %v4315 = vld [vmem:[%s3 + $0x730] sm:$0xff]
    %v4316 = vld [vmem:[%s3 + $0x738] sm:$0xff]
    %v4317 = vld [vmem:[%s3 + $0x740] sm:$0xff]
    %v4318 = vld [vmem:[%s3 + $0x748] sm:$0xff]
    %v4319 = vld [vmem:[%s3 + $0x750] sm:$0xff]
    %v4320 = vld [vmem:[%s3 + $0x758] sm:$0xff]
    %v4321 = vld [vmem:[%s3 + $0x760] sm:$0xff]
    %v4322 = vld [vmem:[%s3 + $0x768] sm:$0xff]
    %v4323 = vld [vmem:[%s3 + $0x770] sm:$0xff]
    %v4324 = vld [vmem:[%s3 + $0x778] sm:$0xff]
    %v4325 = vld [vmem:[%s3 + $0x780] sm:$0xff]
    %v4326 = vld [vmem:[%s3 + $0x788] sm:$0xff]
    %v4327 = vld [vmem:[%s3 + $0x790] sm:$0xff]
    %v4328 = vld [vmem:[%s3 + $0x798] sm:$0xff]
    %v4329 = vld [vmem:[%s3 + $0x7a0] sm:$0xff]
    %v4330 = vld [vmem:[%s3 + $0x7a8] sm:$0xff]
    %v4331 = vld [vmem:[%s3 + $0x7b0] sm:$0xff]
    %v4332 = vld [vmem:[%s3 + $0x7b8] sm:$0xff]
    %v4333 = vld [vmem:[%s3 + $0x7c0] sm:$0xff]
    %v4334 = vld [vmem:[%s3 + $0x7c8] sm:$0xff]
    %v4335 = vld [vmem:[%s3 + $0x7d0] sm:$0xff]
    %v4336 = vld [vmem:[%s3 + $0x7d8] sm:$0xff]
    %v4337 = vld [vmem:[%s3 + $0x7e0] sm:$0xff]
    %v4338 = vld [vmem:[%s3 + $0x7e8] sm:$0xff]
    %v4339 = vld [vmem:[%s3 + $0x7f0] sm:$0xff]
    %v4340 = vld [vmem:[%s3 + $0x7f8] sm:$0xff]
    %v4341 = vld [vmem:[%s3 + $0x800] sm:$0xff]
    %v4342 = vld [vmem:[%s3 + $0x808] sm:$0xff]
    %v4343 = vld [vmem:[%s3 + $0x810] sm:$0xff]
    %v4344 = vld [vmem:[%s3 + $0x818] sm:$0xff]
    %v4345 = vld [vmem:[%s3 + $0x820] sm:$0xff]
    %v4346 = vld [vmem:[%s3 + $0x828] sm:$0xff]
    %v4347 = vld [vmem:[%s3 + $0x830] sm:$0xff]
    %v4348 = vld [vmem:[%s3 + $0x838] sm:$0xff]
    %v4349 = vld [vmem:[%s3 + $0x840] sm:$0xff]
    %v4350 = vld [vmem:[%s3 + $0x848] sm:$0xff]
    %v4351 = vld [vmem:[%s3 + $0x850] sm:$0xff]
    %v4352 = vld [vmem:[%s3 + $0x858] sm:$0xff]
    %v4353 = vld [vmem:[%s3 + $0x860] sm:$0xff]
    %v4354 = vld [vmem:[%s3 + $0x868] sm:$0xff]
    %v4355 = vld [vmem:[%s3 + $0x870] sm:$0xff]
    %v4356 = vld [vmem:[%s3 + $0x878] sm:$0xff]
    %v4357 = vld [vmem:[%s3 + $0x880] sm:$0xff]
    %v4358 = vld [vmem:[%s3 + $0x888] sm:$0xff]
    %v4359 = vld [vmem:[%s3 + $0x890] sm:$0xff]
    %v4360 = vld [vmem:[%s3 + $0x898] sm:$0xff]
    %v4361 = vld [vmem:[%s3 + $0x8a0] sm:$0xff]
    %v4362 = vld [vmem:[%s3 + $0x8a8] sm:$0xff]
    %v4363 = vld [vmem:[%s3 + $0x8b0] sm:$0xff]
    %v4364 = vld [vmem:[%s3 + $0x8b8] sm:$0xff]
    %v4365 = vld [vmem:[%s3 + $0x8c0] sm:$0xff]
    %v4366 = vld [vmem:[%s3 + $0x8c8] sm:$0xff]
    %v4367 = vld [vmem:[%s3 + $0x8d0] sm:$0xff]
    %v4368 = vld [vmem:[%s3 + $0x8d8] sm:$0xff]
    %v4369 = vld [vmem:[%s3 + $0x8e0] sm:$0xff]
    %v4370 = vld [vmem:[%s3 + $0x8e8] sm:$0xff]
    %v4371 = vld [vmem:[%s3 + $0x8f0] sm:$0xff]
    %v4372 = vld [vmem:[%s3 + $0x8f8] sm:$0xff]
    %v4373 = vld [vmem:[%s3 + $0x900] sm:$0xff]
    %v4374 = vld [vmem:[%s3 + $0x908] sm:$0xff]
    %v4375 = vld [vmem:[%s3 + $0x910] sm:$0xff]
    %v4376 = vld [vmem:[%s3 + $0x918] sm:$0xff]
    %v4377 = vld [vmem:[%s3 + $0x920] sm:$0xff]
    %v4378 = vld [vmem:[%s3 + $0x928] sm:$0xff]
    %v4379 = vld [vmem:[%s3 + $0x930] sm:$0xff]
    %v4380 = vld [vmem:[%s3 + $0x938] sm:$0xff]
    %v4381 = vld [vmem:[%s3 + $0x940] sm:$0xff]
    %v4382 = vld [vmem:[%s3 + $0x948] sm:$0xff]
    %v4383 = vld [vmem:[%s3 + $0x950] sm:$0xff]
    %v4384 = vld [vmem:[%s3 + $0x958] sm:$0xff]
    %v4385 = vld [vmem:[%s3 + $0x960] sm:$0xff]
    %v4386 = vld [vmem:[%s3 + $0x968] sm:$0xff]
    %v4387 = vld [vmem:[%s3 + $0x970] sm:$0xff]
    %v4388 = vld [vmem:[%s3 + $0x978] sm:$0xff]
    %v4389 = vld [vmem:[%s3 + $0x980] sm:$0xff]
    %v4390 = vld [vmem:[%s3 + $0x988] sm:$0xff]
    %v4391 = vld [vmem:[%s3 + $0x990] sm:$0xff]
    %v4392 = vld [vmem:[%s3 + $0x998] sm:$0xff]
    %v4393 = vld [vmem:[%s3 + $0x9a0] sm:$0xff]
    %v4394 = vld [vmem:[%s3 + $0x9a8] sm:$0xff]
    %v4395 = vld [vmem:[%s3 + $0x9b0] sm:$0xff]
    %v4396 = vld [vmem:[%s3 + $0x9b8] sm:$0xff]
    %v4397 = vld [vmem:[%s3 + $0x9c0] sm:$0xff]
    %v4398 = vld [vmem:[%s3 + $0x9c8] sm:$0xff]
    %v4399 = vld [vmem:[%s3 + $0x9d0] sm:$0xff]
    %v4400 = vld [vmem:[%s3 + $0x9d8] sm:$0xff]
    %v4401 = vld [vmem:[%s3 + $0x9e0] sm:$0xff]
    %v4402 = vld [vmem:[%s3 + $0x9e8] sm:$0xff]
    %v4403 = vld [vmem:[%s3 + $0x9f0] sm:$0xff]
    %v4404 = vld [vmem:[%s3 + $0x9f8] sm:$0xff]
    %v4405 = vld [vmem:[%s3 + $0xa00] sm:$0xff]
    %v4406 = vld [vmem:[%s3 + $0xa08] sm:$0xff]
    %v4407 = vld [vmem:[%s3 + $0xa10] sm:$0xff]
    %v4408 = vld [vmem:[%s3 + $0xa18] sm:$0xff]
    %v4409 = vld [vmem:[%s3 + $0xa20] sm:$0xff]
    %v4410 = vld [vmem:[%s3 + $0xa28] sm:$0xff]
    %v4411 = vld [vmem:[%s3 + $0xa30] sm:$0xff]
    %v4412 = vld [vmem:[%s3 + $0xa38] sm:$0xff]
    %v4413 = vld [vmem:[%s3 + $0xa40] sm:$0xff]
    %v4414 = vld [vmem:[%s3 + $0xa48] sm:$0xff]
    %v4415 = vld [vmem:[%s3 + $0xa50] sm:$0xff]
    %v4416 = vld [vmem:[%s3 + $0xa58] sm:$0xff]
    %v4417 = vld [vmem:[%s3 + $0xa60] sm:$0xff]
    %v4418 = vld [vmem:[%s3 + $0xa68] sm:$0xff]
    %v4419 = vld [vmem:[%s3 + $0xa70] sm:$0xff]
    %v4420 = vld [vmem:[%s3 + $0xa78] sm:$0xff]
    %v4421 = vld [vmem:[%s3 + $0xa80] sm:$0xff]
    %v4422 = vld [vmem:[%s3 + $0xa88] sm:$0xff]
    %v4423 = vld [vmem:[%s3 + $0xa90] sm:$0xff]
    %v4424 = vld [vmem:[%s3 + $0xa98] sm:$0xff]
    %v4425 = vld [vmem:[%s3 + $0xaa0] sm:$0xff]
    %v4426 = vld [vmem:[%s3 + $0xaa8] sm:$0xff]
    %v4427 = vld [vmem:[%s3 + $0xab0] sm:$0xff]
    %v4428 = vld [vmem:[%s3 + $0xab8] sm:$0xff]
    %v4429 = vld [vmem:[%s3 + $0xac0] sm:$0xff]
    %v4430 = vld [vmem:[%s3 + $0xac8] sm:$0xff]
    %v4431 = vld [vmem:[%s3 + $0xad0] sm:$0xff]
    %v4432 = vld [vmem:[%s3 + $0xad8] sm:$0xff]
    %v4433 = vld [vmem:[%s3 + $0xae0] sm:$0xff]
    %v4434 = vld [vmem:[%s3 + $0xae8] sm:$0xff]
    %v4435 = vld [vmem:[%s3 + $0xaf0] sm:$0xff]
    %v4436 = vld [vmem:[%s3 + $0xaf8] sm:$0xff]
    %v4437 = vld [vmem:[%s3 + $0xb00] sm:$0xff]
    %v4438 = vld [vmem:[%s3 + $0xb08] sm:$0xff]
    %v4439 = vld [vmem:[%s3 + $0xb10] sm:$0xff]
    %v4440 = vld [vmem:[%s3 + $0xb18] sm:$0xff]
    %v4441 = vld [vmem:[%s3 + $0xb20] sm:$0xff]
    %v4442 = vld [vmem:[%s3 + $0xb28] sm:$0xff]
    %v4443 = vld [vmem:[%s3 + $0xb30] sm:$0xff]
    %v4444 = vld [vmem:[%s3 + $0xb38] sm:$0xff]
    %v4445 = vld [vmem:[%s3 + $0xb40] sm:$0xff]
    %v4446 = vld [vmem:[%s3 + $0xb48] sm:$0xff]
    %v4447 = vld [vmem:[%s3 + $0xb50] sm:$0xff]
    %v4448 = vld [vmem:[%s3 + $0xb58] sm:$0xff]
    %v4449 = vld [vmem:[%s3 + $0xb60] sm:$0xff]
    %v4450 = vld [vmem:[%s3 + $0xb68] sm:$0xff]
    %v4451 = vld [vmem:[%s3 + $0xb70] sm:$0xff]
    %v4452 = vld [vmem:[%s3 + $0xb78] sm:$0xff]
    %v4453 = vld [vmem:[%s3 + $0xb80] sm:$0xff]
    %v4454 = vld [vmem:[%s3 + $0xb88] sm:$0xff]
    %v4455 = vld [vmem:[%s3 + $0xb90] sm:$0xff]
    %v4456 = vld [vmem:[%s3 + $0xb98] sm:$0xff]
    %v4457 = vld [vmem:[%s3 + $0xba0] sm:$0xff]
    %v4458 = vld [vmem:[%s3 + $0xba8] sm:$0xff]
    %v4459 = vld [vmem:[%s3 + $0xbb0] sm:$0xff]
    %v4460 = vld [vmem:[%s3 + $0xbb8] sm:$0xff]
    %v4461 = vld [vmem:[%s3 + $0xbc0] sm:$0xff]
    %v4462 = vld [vmem:[%s3 + $0xbc8] sm:$0xff]
    %v4463 = vld [vmem:[%s3 + $0xbd0] sm:$0xff]
    %v4464 = vld [vmem:[%s3 + $0xbd8] sm:$0xff]
    %v4465 = vld [vmem:[%s3 + $0xbe0] sm:$0xff]
    %v4466 = vld [vmem:[%s3 + $0xbe8] sm:$0xff]
    %v4467 = vld [vmem:[%s3 + $0xbf0] sm:$0xff]
    %v4468 = vld [vmem:[%s3 + $0xbf8] sm:$0xff]
    %v4469 = vld [vmem:[%s3 + $0xc00] sm:$0xff]
    %v4470 = vld [vmem:[%s3 + $0xc08] sm:$0xff]
    %v4471 = vld [vmem:[%s3 + $0xc10] sm:$0xff]
    %v4472 = vld [vmem:[%s3 + $0xc18] sm:$0xff]
    %v4473 = vld [vmem:[%s3 + $0xc20] sm:$0xff]
    %v4474 = vld [vmem:[%s3 + $0xc28] sm:$0xff]
    %v4475 = vld [vmem:[%s3 + $0xc30] sm:$0xff]
    %v4476 = vld [vmem:[%s3 + $0xc38] sm:$0xff]
    %v4477 = vld [vmem:[%s3 + $0xc40] sm:$0xff]
    %v4478 = vld [vmem:[%s3 + $0xc48] sm:$0xff]
    %v4479 = vld [vmem:[%s3 + $0xc50] sm:$0xff]
    %v4480 = vld [vmem:[%s3 + $0xc58] sm:$0xff]
    %v4481 = vld [vmem:[%s3 + $0xc60] sm:$0xff]
    %v4482 = vld [vmem:[%s3 + $0xc68] sm:$0xff]
    %v4483 = vld [vmem:[%s3 + $0xc70] sm:$0xff]
    %v4484 = vld [vmem:[%s3 + $0xc78] sm:$0xff]
    %v4485 = vld [vmem:[%s3 + $0xc80] sm:$0xff]
    %v4486 = vld [vmem:[%s3 + $0xc88] sm:$0xff]
    %v4487 = vld [vmem:[%s3 + $0xc90] sm:$0xff]
    %v4488 = vld [vmem:[%s3 + $0xc98] sm:$0xff]
    %v4489 = vld [vmem:[%s3 + $0xca0] sm:$0xff]
    %v4490 = vld [vmem:[%s3 + $0xca8] sm:$0xff]
    %v4491 = vld [vmem:[%s3 + $0xcb0] sm:$0xff]
    %v4492 = vld [vmem:[%s3 + $0xcb8] sm:$0xff]
    %v4493 = vld [vmem:[%s3 + $0xcc0] sm:$0xff]
    %v4494 = vld [vmem:[%s3 + $0xcc8] sm:$0xff]
    %v4495 = vld [vmem:[%s3 + $0xcd0] sm:$0xff]
    %v4496 = vld [vmem:[%s3 + $0xcd8] sm:$0xff]
    %v4497 = vld [vmem:[%s3 + $0xce0] sm:$0xff]
    %v4498 = vld [vmem:[%s3 + $0xce8] sm:$0xff]
    %v4499 = vld [vmem:[%s3 + $0xcf0] sm:$0xff]
    %v4500 = vld [vmem:[%s3 + $0xcf8] sm:$0xff]
    %v4501 = vld [vmem:[%s3 + $0xd00] sm:$0xff]
    %v4502 = vld [vmem:[%s3 + $0xd08] sm:$0xff]
    %v4503 = vld [vmem:[%s3 + $0xd10] sm:$0xff]
    %v4504 = vld [vmem:[%s3 + $0xd18] sm:$0xff]
    %v4505 = vld [vmem:[%s3 + $0xd20] sm:$0xff]
    %v4506 = vld [vmem:[%s3 + $0xd28] sm:$0xff]
    %v4507 = vld [vmem:[%s3 + $0xd30] sm:$0xff]
    %v4508 = vld [vmem:[%s3 + $0xd38] sm:$0xff]
    %v4509 = vld [vmem:[%s3 + $0xd40] sm:$0xff]
    %v4510 = vld [vmem:[%s3 + $0xd48] sm:$0xff]
    %v4511 = vld [vmem:[%s3 + $0xd50] sm:$0xff]
    %v4512 = vld [vmem:[%s3 + $0xd58] sm:$0xff]
    %v4513 = vld [vmem:[%s3 + $0xd60] sm:$0xff]
    %v4514 = vld [vmem:[%s3 + $0xd68] sm:$0xff]
    %v4515 = vld [vmem:[%s3 + $0xd70] sm:$0xff]
    %v4516 = vld [vmem:[%s3 + $0xd78] sm:$0xff]
    %v4517 = vld [vmem:[%s3 + $0xd80] sm:$0xff]
    %v4518 = vld [vmem:[%s3 + $0xd88] sm:$0xff]
    %v4519 = vld [vmem:[%s3 + $0xd90] sm:$0xff]
    %v4520 = vld [vmem:[%s3 + $0xd98] sm:$0xff]
    %v4521 = vld [vmem:[%s3 + $0xda0] sm:$0xff]
    %v4522 = vld [vmem:[%s3 + $0xda8] sm:$0xff]
    %v4523 = vld [vmem:[%s3 + $0xdb0] sm:$0xff]
    %v4524 = vld [vmem:[%s3 + $0xdb8] sm:$0xff]
    %v4525 = vld [vmem:[%s3 + $0xdc0] sm:$0xff]
    %v4526 = vld [vmem:[%s3 + $0xdc8] sm:$0xff]
    %v4527 = vld [vmem:[%s3 + $0xdd0] sm:$0xff]
    %v4528 = vld [vmem:[%s3 + $0xdd8] sm:$0xff]
    %v4529 = vld [vmem:[%s3 + $0xde0] sm:$0xff]
    %v4530 = vld [vmem:[%s3 + $0xde8] sm:$0xff]
    %v4531 = vld [vmem:[%s3 + $0xdf0] sm:$0xff]
    %v4532 = vld [vmem:[%s3 + $0xdf8] sm:$0xff]
    %v4533 = vld [vmem:[%s3 + $0xe00] sm:$0xff]
    %v4534 = vld [vmem:[%s3 + $0xe08] sm:$0xff]
    %v4535 = vld [vmem:[%s3 + $0xe10] sm:$0xff]
    %v4536 = vld [vmem:[%s3 + $0xe18] sm:$0xff]
    %v4537 = vld [vmem:[%s3 + $0xe20] sm:$0xff]
    %v4538 = vld [vmem:[%s3 + $0xe28] sm:$0xff]
    %v4539 = vld [vmem:[%s3 + $0xe30] sm:$0xff]
    %v4540 = vld [vmem:[%s3 + $0xe38] sm:$0xff]
    %v4541 = vld [vmem:[%s3 + $0xe40] sm:$0xff]
    %v4542 = vld [vmem:[%s3 + $0xe48] sm:$0xff]
    %v4543 = vld [vmem:[%s3 + $0xe50] sm:$0xff]
    %v4544 = vld [vmem:[%s3 + $0xe58] sm:$0xff]
    %v4545 = vld [vmem:[%s3 + $0xe60] sm:$0xff]
    %v4546 = vld [vmem:[%s3 + $0xe68] sm:$0xff]
    %v4547 = vld [vmem:[%s3 + $0xe70] sm:$0xff]
    %v4548 = vld [vmem:[%s3 + $0xe78] sm:$0xff]
    %v4549 = vld [vmem:[%s3 + $0xe80] sm:$0xff]
    %v4550 = vld [vmem:[%s3 + $0xe88] sm:$0xff]
    %v4551 = vld [vmem:[%s3 + $0xe90] sm:$0xff]
    %v4552 = vld [vmem:[%s3 + $0xe98] sm:$0xff]
    %v4553 = vld [vmem:[%s3 + $0xea0] sm:$0xff]
    %v4554 = vld [vmem:[%s3 + $0xea8] sm:$0xff]
    %v4555 = vld [vmem:[%s3 + $0xeb0] sm:$0xff]
    %v4556 = vld [vmem:[%s3 + $0xeb8] sm:$0xff]
    %v4557 = vld [vmem:[%s3 + $0xec0] sm:$0xff]
    %v4558 = vld [vmem:[%s3 + $0xec8] sm:$0xff]
    %v4559 = vld [vmem:[%s3 + $0xed0] sm:$0xff]
    %v4560 = vld [vmem:[%s3 + $0xed8] sm:$0xff]
    %v4561 = vld [vmem:[%s3 + $0xee0] sm:$0xff]
    %v4562 = vld [vmem:[%s3 + $0xee8] sm:$0xff]
    %v4563 = vld [vmem:[%s3 + $0xef0] sm:$0xff]
    %v4564 = vld [vmem:[%s3 + $0xef8] sm:$0xff]
    %v4565 = vld [vmem:[%s3 + $0xf00] sm:$0xff]
    %v4566 = vld [vmem:[%s3 + $0xf08] sm:$0xff]
    %v4567 = vld [vmem:[%s3 + $0xf10] sm:$0xff]
    %v4568 = vld [vmem:[%s3 + $0xf18] sm:$0xff]
    %v4569 = vld [vmem:[%s3 + $0xf20] sm:$0xff]
    %v4570 = vld [vmem:[%s3 + $0xf28] sm:$0xff]
    %v4571 = vld [vmem:[%s3 + $0xf30] sm:$0xff]
    %v4572 = vld [vmem:[%s3 + $0xf38] sm:$0xff]
    %v4573 = vld [vmem:[%s3 + $0xf40] sm:$0xff]
    %v4574 = vld [vmem:[%s3 + $0xf48] sm:$0xff]
    %v4575 = vld [vmem:[%s3 + $0xf50] sm:$0xff]
    %v4576 = vld [vmem:[%s3 + $0xf58] sm:$0xff]
    %v4577 = vld [vmem:[%s3 + $0xf60] sm:$0xff]
    %v4578 = vld [vmem:[%s3 + $0xf68] sm:$0xff]
    %v4579 = vld [vmem:[%s3 + $0xf70] sm:$0xff]
    %v4580 = vld [vmem:[%s3 + $0xf78] sm:$0xff]
    %v4581 = vld [vmem:[%s3 + $0xf80] sm:$0xff]
    %v4582 = vld [vmem:[%s3 + $0xf88] sm:$0xff]
    %v4583 = vld [vmem:[%s3 + $0xf90] sm:$0xff]
    %v4584 = vld [vmem:[%s3 + $0xf98] sm:$0xff]
    %v4585 = vld [vmem:[%s3 + $0xfa0] sm:$0xff]
    %v4586 = vld [vmem:[%s3 + $0xfa8] sm:$0xff]
    %v4587 = vld [vmem:[%s3 + $0xfb0] sm:$0xff]
    %v4588 = vld [vmem:[%s3 + $0xfb8] sm:$0xff]
    %v4589 = vld [vmem:[%s3 + $0xfc0] sm:$0xff]
    %v4590 = vld [vmem:[%s3 + $0xfc8] sm:$0xff]
    %v4591 = vld [vmem:[%s3 + $0xfd0] sm:$0xff]
    %v4592 = vld [vmem:[%s3 + $0xfd8] sm:$0xff]
    %v4593 = vld [vmem:[%s3 + $0xfe0] sm:$0xff]
    %v4594 = vld [vmem:[%s3 + $0xfe8] sm:$0xff]
    %v4595 = vld [vmem:[%s3 + $0xff0] sm:$0xff]
    %v4596 = vld [vmem:[%s3 + $0xff8] sm:$0xff]
    %v4597 = vld [vmem:[%s4] sm:$0xf]
    %v4599 = vperm.slane %v4597, 0
    %v4600 = vperm.slane %v4597, 1
    %v4601 = vperm.slane %v4597, 2
    %v4602 = vperm.slane %v4597, 3
    %v5119 = vunpack.c.l.b16 %v4085
    %v5120 = vunpack.c.h.b16 %v4085
    %v5121 = vunpack.c.l.b16 %v4086
    %v5122 = vunpack.c.h.b16 %v4086
    %v5123 = vunpack.c.l.b16 %v4087
    %v5124 = vunpack.c.h.b16 %v4087
    %v5125 = vunpack.c.l.b16 %v4088
    %v5126 = vunpack.c.h.b16 %v4088
    %v5127 = vunpack.c.l.b16 %v4089
    %v5128 = vunpack.c.h.b16 %v4089
    %v5129 = vunpack.c.l.b16 %v4090
    %v5130 = vunpack.c.h.b16 %v4090
    %v5131 = vunpack.c.l.b16 %v4091
    %v5132 = vunpack.c.h.b16 %v4091
    %v5133 = vunpack.c.l.b16 %v4092
    %v5134 = vunpack.c.h.b16 %v4092
    %v5135 = vunpack.c.l.b16 %v4093
    %v5136 = vunpack.c.h.b16 %v4093
    %v5137 = vunpack.c.l.b16 %v4094
    %v5138 = vunpack.c.h.b16 %v4094
    %v5139 = vunpack.c.l.b16 %v4095
    %v5140 = vunpack.c.h.b16 %v4095
    %v5141 = vunpack.c.l.b16 %v4096
    %v5142 = vunpack.c.h.b16 %v4096
    %v5143 = vunpack.c.l.b16 %v4097
    %v5144 = vunpack.c.h.b16 %v4097
    %v5145 = vunpack.c.l.b16 %v4098
    %v5146 = vunpack.c.h.b16 %v4098
    %v5147 = vunpack.c.l.b16 %v4099
    %v5148 = vunpack.c.h.b16 %v4099
    %v5149 = vunpack.c.l.b16 %v4100
    %v5150 = vunpack.c.h.b16 %v4100
    %v5151 = vunpack.c.l.b16 %v4101
    %v5152 = vunpack.c.h.b16 %v4101
    %v5153 = vunpack.c.l.b16 %v4102
    %v5154 = vunpack.c.h.b16 %v4102
    %v5155 = vunpack.c.l.b16 %v4103
    %v5156 = vunpack.c.h.b16 %v4103
    %v5157 = vunpack.c.l.b16 %v4104
    %v5158 = vunpack.c.h.b16 %v4104
    %v5159 = vunpack.c.l.b16 %v4105
    %v5160 = vunpack.c.h.b16 %v4105
    %v5161 = vunpack.c.l.b16 %v4106
    %v5162 = vunpack.c.h.b16 %v4106
    %v5163 = vunpack.c.l.b16 %v4107
    %v5164 = vunpack.c.h.b16 %v4107
    %v5165 = vunpack.c.l.b16 %v4108
    %v5166 = vunpack.c.h.b16 %v4108
    %v5167 = vunpack.c.l.b16 %v4109
    %v5168 = vunpack.c.h.b16 %v4109
    %v5169 = vunpack.c.l.b16 %v4110
    %v5170 = vunpack.c.h.b16 %v4110
    %v5171 = vunpack.c.l.b16 %v4111
    %v5172 = vunpack.c.h.b16 %v4111
    %v5173 = vunpack.c.l.b16 %v4112
    %v5174 = vunpack.c.h.b16 %v4112
    %v5175 = vunpack.c.l.b16 %v4113
    %v5176 = vunpack.c.h.b16 %v4113
    %v5177 = vunpack.c.l.b16 %v4114
    %v5178 = vunpack.c.h.b16 %v4114
    %v5179 = vunpack.c.l.b16 %v4115
    %v5180 = vunpack.c.h.b16 %v4115
    %v5181 = vunpack.c.l.b16 %v4116
    %v5182 = vunpack.c.h.b16 %v4116
    %v5183 = vunpack.c.l.b16 %v4117
    %v5184 = vunpack.c.h.b16 %v4117
    %v5185 = vunpack.c.l.b16 %v4118
    %v5186 = vunpack.c.h.b16 %v4118
    %v5187 = vunpack.c.l.b16 %v4119
    %v5188 = vunpack.c.h.b16 %v4119
    %v5189 = vunpack.c.l.b16 %v4120
    %v5190 = vunpack.c.h.b16 %v4120
    %v5191 = vunpack.c.l.b16 %v4121
    %v5192 = vunpack.c.h.b16 %v4121
    %v5193 = vunpack.c.l.b16 %v4122
    %v5194 = vunpack.c.h.b16 %v4122
    %v5195 = vunpack.c.l.b16 %v4123
    %v5196 = vunpack.c.h.b16 %v4123
    %v5197 = vunpack.c.l.b16 %v4124
    %v5198 = vunpack.c.h.b16 %v4124
    %v5199 = vunpack.c.l.b16 %v4125
    %v5200 = vunpack.c.h.b16 %v4125
    %v5201 = vunpack.c.l.b16 %v4126
    %v5202 = vunpack.c.h.b16 %v4126
    %v5203 = vunpack.c.l.b16 %v4127
    %v5204 = vunpack.c.h.b16 %v4127
    %v5205 = vunpack.c.l.b16 %v4128
    %v5206 = vunpack.c.h.b16 %v4128
    %v5207 = vunpack.c.l.b16 %v4129
    %v5208 = vunpack.c.h.b16 %v4129
    %v5209 = vunpack.c.l.b16 %v4130
    %v5210 = vunpack.c.h.b16 %v4130
    %v5211 = vunpack.c.l.b16 %v4131
    %v5212 = vunpack.c.h.b16 %v4131
    %v5213 = vunpack.c.l.b16 %v4132
    %v5214 = vunpack.c.h.b16 %v4132
    %v5215 = vunpack.c.l.b16 %v4133
    %v5216 = vunpack.c.h.b16 %v4133
    %v5217 = vunpack.c.l.b16 %v4134
    %v5218 = vunpack.c.h.b16 %v4134
    %v5219 = vunpack.c.l.b16 %v4135
    %v5220 = vunpack.c.h.b16 %v4135
    %v5221 = vunpack.c.l.b16 %v4136
    %v5222 = vunpack.c.h.b16 %v4136
    %v5223 = vunpack.c.l.b16 %v4137
    %v5224 = vunpack.c.h.b16 %v4137
    %v5225 = vunpack.c.l.b16 %v4138
    %v5226 = vunpack.c.h.b16 %v4138
    %v5227 = vunpack.c.l.b16 %v4139
    %v5228 = vunpack.c.h.b16 %v4139
    %v5229 = vunpack.c.l.b16 %v4140
    %v5230 = vunpack.c.h.b16 %v4140
    %v5231 = vunpack.c.l.b16 %v4141
    %v5232 = vunpack.c.h.b16 %v4141
    %v5233 = vunpack.c.l.b16 %v4142
    %v5234 = vunpack.c.h.b16 %v4142
    %v5235 = vunpack.c.l.b16 %v4143
    %v5236 = vunpack.c.h.b16 %v4143
    %v5237 = vunpack.c.l.b16 %v4144
    %v5238 = vunpack.c.h.b16 %v4144
    %v5239 = vunpack.c.l.b16 %v4145
    %v5240 = vunpack.c.h.b16 %v4145
    %v5241 = vunpack.c.l.b16 %v4146
    %v5242 = vunpack.c.h.b16 %v4146
    %v5243 = vunpack.c.l.b16 %v4147
    %v5244 = vunpack.c.h.b16 %v4147
    %v5245 = vunpack.c.l.b16 %v4148
    %v5246 = vunpack.c.h.b16 %v4148
    %v5247 = vunpack.c.l.b16 %v4149
    %v5248 = vunpack.c.h.b16 %v4149
    %v5249 = vunpack.c.l.b16 %v4150
    %v5250 = vunpack.c.h.b16 %v4150
    %v5251 = vunpack.c.l.b16 %v4151
    %v5252 = vunpack.c.h.b16 %v4151
    %v5253 = vunpack.c.l.b16 %v4152
    %v5254 = vunpack.c.h.b16 %v4152
    %v5255 = vunpack.c.l.b16 %v4153
    %v5256 = vunpack.c.h.b16 %v4153
    %v5257 = vunpack.c.l.b16 %v4154
    %v5258 = vunpack.c.h.b16 %v4154
    %v5259 = vunpack.c.l.b16 %v4155
    %v5260 = vunpack.c.h.b16 %v4155
    %v5261 = vunpack.c.l.b16 %v4156
    %v5262 = vunpack.c.h.b16 %v4156
    %v5263 = vunpack.c.l.b16 %v4157
    %v5264 = vunpack.c.h.b16 %v4157
    %v5265 = vunpack.c.l.b16 %v4158
    %v5266 = vunpack.c.h.b16 %v4158
    %v5267 = vunpack.c.l.b16 %v4159
    %v5268 = vunpack.c.h.b16 %v4159
    %v5269 = vunpack.c.l.b16 %v4160
    %v5270 = vunpack.c.h.b16 %v4160
    %v5271 = vunpack.c.l.b16 %v4161
    %v5272 = vunpack.c.h.b16 %v4161
    %v5273 = vunpack.c.l.b16 %v4162
    %v5274 = vunpack.c.h.b16 %v4162
    %v5275 = vunpack.c.l.b16 %v4163
    %v5276 = vunpack.c.h.b16 %v4163
    %v5277 = vunpack.c.l.b16 %v4164
    %v5278 = vunpack.c.h.b16 %v4164
    %v5279 = vunpack.c.l.b16 %v4165
    %v5280 = vunpack.c.h.b16 %v4165
    %v5281 = vunpack.c.l.b16 %v4166
    %v5282 = vunpack.c.h.b16 %v4166
    %v5283 = vunpack.c.l.b16 %v4167
    %v5284 = vunpack.c.h.b16 %v4167
    %v5285 = vunpack.c.l.b16 %v4168
    %v5286 = vunpack.c.h.b16 %v4168
    %v5287 = vunpack.c.l.b16 %v4169
    %v5288 = vunpack.c.h.b16 %v4169
    %v5289 = vunpack.c.l.b16 %v4170
    %v5290 = vunpack.c.h.b16 %v4170
    %v5291 = vunpack.c.l.b16 %v4171
    %v5292 = vunpack.c.h.b16 %v4171
    %v5293 = vunpack.c.l.b16 %v4172
    %v5294 = vunpack.c.h.b16 %v4172
    %v5295 = vunpack.c.l.b16 %v4173
    %v5296 = vunpack.c.h.b16 %v4173
    %v5297 = vunpack.c.l.b16 %v4174
    %v5298 = vunpack.c.h.b16 %v4174
    %v5299 = vunpack.c.l.b16 %v4175
    %v5300 = vunpack.c.h.b16 %v4175
    %v5301 = vunpack.c.l.b16 %v4176
    %v5302 = vunpack.c.h.b16 %v4176
    %v5303 = vunpack.c.l.b16 %v4177
    %v5304 = vunpack.c.h.b16 %v4177
    %v5305 = vunpack.c.l.b16 %v4178
    %v5306 = vunpack.c.h.b16 %v4178
    %v5307 = vunpack.c.l.b16 %v4179
    %v5308 = vunpack.c.h.b16 %v4179
    %v5309 = vunpack.c.l.b16 %v4180
    %v5310 = vunpack.c.h.b16 %v4180
    %v5311 = vunpack.c.l.b16 %v4181
    %v5312 = vunpack.c.h.b16 %v4181
    %v5313 = vunpack.c.l.b16 %v4182
    %v5314 = vunpack.c.h.b16 %v4182
    %v5315 = vunpack.c.l.b16 %v4183
    %v5316 = vunpack.c.h.b16 %v4183
    %v5317 = vunpack.c.l.b16 %v4184
    %v5318 = vunpack.c.h.b16 %v4184
    %v5319 = vunpack.c.l.b16 %v4185
    %v5320 = vunpack.c.h.b16 %v4185
    %v5321 = vunpack.c.l.b16 %v4186
    %v5322 = vunpack.c.h.b16 %v4186
    %v5323 = vunpack.c.l.b16 %v4187
    %v5324 = vunpack.c.h.b16 %v4187
    %v5325 = vunpack.c.l.b16 %v4188
    %v5326 = vunpack.c.h.b16 %v4188
    %v5327 = vunpack.c.l.b16 %v4189
    %v5328 = vunpack.c.h.b16 %v4189
    %v5329 = vunpack.c.l.b16 %v4190
    %v5330 = vunpack.c.h.b16 %v4190
    %v5331 = vunpack.c.l.b16 %v4191
    %v5332 = vunpack.c.h.b16 %v4191
    %v5333 = vunpack.c.l.b16 %v4192
    %v5334 = vunpack.c.h.b16 %v4192
    %v5335 = vunpack.c.l.b16 %v4193
    %v5336 = vunpack.c.h.b16 %v4193
    %v5337 = vunpack.c.l.b16 %v4194
    %v5338 = vunpack.c.h.b16 %v4194
    %v5339 = vunpack.c.l.b16 %v4195
    %v5340 = vunpack.c.h.b16 %v4195
    %v5341 = vunpack.c.l.b16 %v4196
    %v5342 = vunpack.c.h.b16 %v4196
    %v5343 = vunpack.c.l.b16 %v4197
    %v5344 = vunpack.c.h.b16 %v4197
    %v5345 = vunpack.c.l.b16 %v4198
    %v5346 = vunpack.c.h.b16 %v4198
    %v5347 = vunpack.c.l.b16 %v4199
    %v5348 = vunpack.c.h.b16 %v4199
    %v5349 = vunpack.c.l.b16 %v4200
    %v5350 = vunpack.c.h.b16 %v4200
    %v5351 = vunpack.c.l.b16 %v4201
    %v5352 = vunpack.c.h.b16 %v4201
    %v5353 = vunpack.c.l.b16 %v4202
    %v5354 = vunpack.c.h.b16 %v4202
    %v5355 = vunpack.c.l.b16 %v4203
    %v5356 = vunpack.c.h.b16 %v4203
    %v5357 = vunpack.c.l.b16 %v4204
    %v5358 = vunpack.c.h.b16 %v4204
    %v5359 = vunpack.c.l.b16 %v4205
    %v5360 = vunpack.c.h.b16 %v4205
    %v5361 = vunpack.c.l.b16 %v4206
    %v5362 = vunpack.c.h.b16 %v4206
    %v5363 = vunpack.c.l.b16 %v4207
    %v5364 = vunpack.c.h.b16 %v4207
    %v5365 = vunpack.c.l.b16 %v4208
    %v5366 = vunpack.c.h.b16 %v4208
    %v5367 = vunpack.c.l.b16 %v4209
    %v5368 = vunpack.c.h.b16 %v4209
    %v5369 = vunpack.c.l.b16 %v4210
    %v5370 = vunpack.c.h.b16 %v4210
    %v5371 = vunpack.c.l.b16 %v4211
    %v5372 = vunpack.c.h.b16 %v4211
    %v5373 = vunpack.c.l.b16 %v4212
    %v5374 = vunpack.c.h.b16 %v4212
    %v5375 = vunpack.c.l.b16 %v4213
    %v5376 = vunpack.c.h.b16 %v4213
    %v5377 = vunpack.c.l.b16 %v4214
    %v5378 = vunpack.c.h.b16 %v4214
    %v5379 = vunpack.c.l.b16 %v4215
    %v5380 = vunpack.c.h.b16 %v4215
    %v5381 = vunpack.c.l.b16 %v4216
    %v5382 = vunpack.c.h.b16 %v4216
    %v5383 = vunpack.c.l.b16 %v4217
    %v5384 = vunpack.c.h.b16 %v4217
    %v5385 = vunpack.c.l.b16 %v4218
    %v5386 = vunpack.c.h.b16 %v4218
    %v5387 = vunpack.c.l.b16 %v4219
    %v5388 = vunpack.c.h.b16 %v4219
    %v5389 = vunpack.c.l.b16 %v4220
    %v5390 = vunpack.c.h.b16 %v4220
    %v5391 = vunpack.c.l.b16 %v4221
    %v5392 = vunpack.c.h.b16 %v4221
    %v5393 = vunpack.c.l.b16 %v4222
    %v5394 = vunpack.c.h.b16 %v4222
    %v5395 = vunpack.c.l.b16 %v4223
    %v5396 = vunpack.c.h.b16 %v4223
    %v5397 = vunpack.c.l.b16 %v4224
    %v5398 = vunpack.c.h.b16 %v4224
    %v5399 = vunpack.c.l.b16 %v4225
    %v5400 = vunpack.c.h.b16 %v4225
    %v5401 = vunpack.c.l.b16 %v4226
    %v5402 = vunpack.c.h.b16 %v4226
    %v5403 = vunpack.c.l.b16 %v4227
    %v5404 = vunpack.c.h.b16 %v4227
    %v5405 = vunpack.c.l.b16 %v4228
    %v5406 = vunpack.c.h.b16 %v4228
    %v5407 = vunpack.c.l.b16 %v4229
    %v5408 = vunpack.c.h.b16 %v4229
    %v5409 = vunpack.c.l.b16 %v4230
    %v5410 = vunpack.c.h.b16 %v4230
    %v5411 = vunpack.c.l.b16 %v4231
    %v5412 = vunpack.c.h.b16 %v4231
    %v5413 = vunpack.c.l.b16 %v4232
    %v5414 = vunpack.c.h.b16 %v4232
    %v5415 = vunpack.c.l.b16 %v4233
    %v5416 = vunpack.c.h.b16 %v4233
    %v5417 = vunpack.c.l.b16 %v4234
    %v5418 = vunpack.c.h.b16 %v4234
    %v5419 = vunpack.c.l.b16 %v4235
    %v5420 = vunpack.c.h.b16 %v4235
    %v5421 = vunpack.c.l.b16 %v4236
    %v5422 = vunpack.c.h.b16 %v4236
    %v5423 = vunpack.c.l.b16 %v4237
    %v5424 = vunpack.c.h.b16 %v4237
    %v5425 = vunpack.c.l.b16 %v4238
    %v5426 = vunpack.c.h.b16 %v4238
    %v5427 = vunpack.c.l.b16 %v4239
    %v5428 = vunpack.c.h.b16 %v4239
    %v5429 = vunpack.c.l.b16 %v4240
    %v5430 = vunpack.c.h.b16 %v4240
    %v5431 = vunpack.c.l.b16 %v4241
    %v5432 = vunpack.c.h.b16 %v4241
    %v5433 = vunpack.c.l.b16 %v4242
    %v5434 = vunpack.c.h.b16 %v4242
    %v5435 = vunpack.c.l.b16 %v4243
    %v5436 = vunpack.c.h.b16 %v4243
    %v5437 = vunpack.c.l.b16 %v4244
    %v5438 = vunpack.c.h.b16 %v4244
    %v5439 = vunpack.c.l.b16 %v4245
    %v5440 = vunpack.c.h.b16 %v4245
    %v5441 = vunpack.c.l.b16 %v4246
    %v5442 = vunpack.c.h.b16 %v4246
    %v5443 = vunpack.c.l.b16 %v4247
    %v5444 = vunpack.c.h.b16 %v4247
    %v5445 = vunpack.c.l.b16 %v4248
    %v5446 = vunpack.c.h.b16 %v4248
    %v5447 = vunpack.c.l.b16 %v4249
    %v5448 = vunpack.c.h.b16 %v4249
    %v5449 = vunpack.c.l.b16 %v4250
    %v5450 = vunpack.c.h.b16 %v4250
    %v5451 = vunpack.c.l.b16 %v4251
    %v5452 = vunpack.c.h.b16 %v4251
    %v5453 = vunpack.c.l.b16 %v4252
    %v5454 = vunpack.c.h.b16 %v4252
    %v5455 = vunpack.c.l.b16 %v4253
    %v5456 = vunpack.c.h.b16 %v4253
    %v5457 = vunpack.c.l.b16 %v4254
    %v5458 = vunpack.c.h.b16 %v4254
    %v5459 = vunpack.c.l.b16 %v4255
    %v5460 = vunpack.c.h.b16 %v4255
    %v5461 = vunpack.c.l.b16 %v4256
    %v5462 = vunpack.c.h.b16 %v4256
    %v5463 = vunpack.c.l.b16 %v4257
    %v5464 = vunpack.c.h.b16 %v4257
    %v5465 = vunpack.c.l.b16 %v4258
    %v5466 = vunpack.c.h.b16 %v4258
    %v5467 = vunpack.c.l.b16 %v4259
    %v5468 = vunpack.c.h.b16 %v4259
    %v5469 = vunpack.c.l.b16 %v4260
    %v5470 = vunpack.c.h.b16 %v4260
    %v5471 = vunpack.c.l.b16 %v4261
    %v5472 = vunpack.c.h.b16 %v4261
    %v5473 = vunpack.c.l.b16 %v4262
    %v5474 = vunpack.c.h.b16 %v4262
    %v5475 = vunpack.c.l.b16 %v4263
    %v5476 = vunpack.c.h.b16 %v4263
    %v5477 = vunpack.c.l.b16 %v4264
    %v5478 = vunpack.c.h.b16 %v4264
    %v5479 = vunpack.c.l.b16 %v4265
    %v5480 = vunpack.c.h.b16 %v4265
    %v5481 = vunpack.c.l.b16 %v4266
    %v5482 = vunpack.c.h.b16 %v4266
    %v5483 = vunpack.c.l.b16 %v4267
    %v5484 = vunpack.c.h.b16 %v4267
    %v5485 = vunpack.c.l.b16 %v4268
    %v5486 = vunpack.c.h.b16 %v4268
    %v5487 = vunpack.c.l.b16 %v4269
    %v5488 = vunpack.c.h.b16 %v4269
    %v5489 = vunpack.c.l.b16 %v4270
    %v5490 = vunpack.c.h.b16 %v4270
    %v5491 = vunpack.c.l.b16 %v4271
    %v5492 = vunpack.c.h.b16 %v4271
    %v5493 = vunpack.c.l.b16 %v4272
    %v5494 = vunpack.c.h.b16 %v4272
    %v5495 = vunpack.c.l.b16 %v4273
    %v5496 = vunpack.c.h.b16 %v4273
    %v5497 = vunpack.c.l.b16 %v4274
    %v5498 = vunpack.c.h.b16 %v4274
    %v5499 = vunpack.c.l.b16 %v4275
    %v5500 = vunpack.c.h.b16 %v4275
    %v5501 = vunpack.c.l.b16 %v4276
    %v5502 = vunpack.c.h.b16 %v4276
    %v5503 = vunpack.c.l.b16 %v4277
    %v5504 = vunpack.c.h.b16 %v4277
    %v5505 = vunpack.c.l.b16 %v4278
    %v5506 = vunpack.c.h.b16 %v4278
    %v5507 = vunpack.c.l.b16 %v4279
    %v5508 = vunpack.c.h.b16 %v4279
    %v5509 = vunpack.c.l.b16 %v4280
    %v5510 = vunpack.c.h.b16 %v4280
    %v5511 = vunpack.c.l.b16 %v4281
    %v5512 = vunpack.c.h.b16 %v4281
    %v5513 = vunpack.c.l.b16 %v4282
    %v5514 = vunpack.c.h.b16 %v4282
    %v5515 = vunpack.c.l.b16 %v4283
    %v5516 = vunpack.c.h.b16 %v4283
    %v5517 = vunpack.c.l.b16 %v4284
    %v5518 = vunpack.c.h.b16 %v4284
    %v5519 = vunpack.c.l.b16 %v4285
    %v5520 = vunpack.c.h.b16 %v4285
    %v5521 = vunpack.c.l.b16 %v4286
    %v5522 = vunpack.c.h.b16 %v4286
    %v5523 = vunpack.c.l.b16 %v4287
    %v5524 = vunpack.c.h.b16 %v4287
    %v5525 = vunpack.c.l.b16 %v4288
    %v5526 = vunpack.c.h.b16 %v4288
    %v5527 = vunpack.c.l.b16 %v4289
    %v5528 = vunpack.c.h.b16 %v4289
    %v5529 = vunpack.c.l.b16 %v4290
    %v5530 = vunpack.c.h.b16 %v4290
    %v5531 = vunpack.c.l.b16 %v4291
    %v5532 = vunpack.c.h.b16 %v4291
    %v5533 = vunpack.c.l.b16 %v4292
    %v5534 = vunpack.c.h.b16 %v4292
    %v5535 = vunpack.c.l.b16 %v4293
    %v5536 = vunpack.c.h.b16 %v4293
    %v5537 = vunpack.c.l.b16 %v4294
    %v5538 = vunpack.c.h.b16 %v4294
    %v5539 = vunpack.c.l.b16 %v4295
    %v5540 = vunpack.c.h.b16 %v4295
    %v5541 = vunpack.c.l.b16 %v4296
    %v5542 = vunpack.c.h.b16 %v4296
    %v5543 = vunpack.c.l.b16 %v4297
    %v5544 = vunpack.c.h.b16 %v4297
    %v5545 = vunpack.c.l.b16 %v4298
    %v5546 = vunpack.c.h.b16 %v4298
    %v5547 = vunpack.c.l.b16 %v4299
    %v5548 = vunpack.c.h.b16 %v4299
    %v5549 = vunpack.c.l.b16 %v4300
    %v5550 = vunpack.c.h.b16 %v4300
    %v5551 = vunpack.c.l.b16 %v4301
    %v5552 = vunpack.c.h.b16 %v4301
    %v5553 = vunpack.c.l.b16 %v4302
    %v5554 = vunpack.c.h.b16 %v4302
    %v5555 = vunpack.c.l.b16 %v4303
    %v5556 = vunpack.c.h.b16 %v4303
    %v5557 = vunpack.c.l.b16 %v4304
    %v5558 = vunpack.c.h.b16 %v4304
    %v5559 = vunpack.c.l.b16 %v4305
    %v5560 = vunpack.c.h.b16 %v4305
    %v5561 = vunpack.c.l.b16 %v4306
    %v5562 = vunpack.c.h.b16 %v4306
    %v5563 = vunpack.c.l.b16 %v4307
    %v5564 = vunpack.c.h.b16 %v4307
    %v5565 = vunpack.c.l.b16 %v4308
    %v5566 = vunpack.c.h.b16 %v4308
    %v5567 = vunpack.c.l.b16 %v4309
    %v5568 = vunpack.c.h.b16 %v4309
    %v5569 = vunpack.c.l.b16 %v4310
    %v5570 = vunpack.c.h.b16 %v4310
    %v5571 = vunpack.c.l.b16 %v4311
    %v5572 = vunpack.c.h.b16 %v4311
    %v5573 = vunpack.c.l.b16 %v4312
    %v5574 = vunpack.c.h.b16 %v4312
    %v5575 = vunpack.c.l.b16 %v4313
    %v5576 = vunpack.c.h.b16 %v4313
    %v5577 = vunpack.c.l.b16 %v4314
    %v5578 = vunpack.c.h.b16 %v4314
    %v5579 = vunpack.c.l.b16 %v4315
    %v5580 = vunpack.c.h.b16 %v4315
    %v5581 = vunpack.c.l.b16 %v4316
    %v5582 = vunpack.c.h.b16 %v4316
    %v5583 = vunpack.c.l.b16 %v4317
    %v5584 = vunpack.c.h.b16 %v4317
    %v5585 = vunpack.c.l.b16 %v4318
    %v5586 = vunpack.c.h.b16 %v4318
    %v5587 = vunpack.c.l.b16 %v4319
    %v5588 = vunpack.c.h.b16 %v4319
    %v5589 = vunpack.c.l.b16 %v4320
    %v5590 = vunpack.c.h.b16 %v4320
    %v5591 = vunpack.c.l.b16 %v4321
    %v5592 = vunpack.c.h.b16 %v4321
    %v5593 = vunpack.c.l.b16 %v4322
    %v5594 = vunpack.c.h.b16 %v4322
    %v5595 = vunpack.c.l.b16 %v4323
    %v5596 = vunpack.c.h.b16 %v4323
    %v5597 = vunpack.c.l.b16 %v4324
    %v5598 = vunpack.c.h.b16 %v4324
    %v5599 = vunpack.c.l.b16 %v4325
    %v5600 = vunpack.c.h.b16 %v4325
    %v5601 = vunpack.c.l.b16 %v4326
    %v5602 = vunpack.c.h.b16 %v4326
    %v5603 = vunpack.c.l.b16 %v4327
    %v5604 = vunpack.c.h.b16 %v4327
    %v5605 = vunpack.c.l.b16 %v4328
    %v5606 = vunpack.c.h.b16 %v4328
    %v5607 = vunpack.c.l.b16 %v4329
    %v5608 = vunpack.c.h.b16 %v4329
    %v5609 = vunpack.c.l.b16 %v4330
    %v5610 = vunpack.c.h.b16 %v4330
    %v5611 = vunpack.c.l.b16 %v4331
    %v5612 = vunpack.c.h.b16 %v4331
    %v5613 = vunpack.c.l.b16 %v4332
    %v5614 = vunpack.c.h.b16 %v4332
    %v5615 = vunpack.c.l.b16 %v4333
    %v5616 = vunpack.c.h.b16 %v4333
    %v5617 = vunpack.c.l.b16 %v4334
    %v5618 = vunpack.c.h.b16 %v4334
    %v5619 = vunpack.c.l.b16 %v4335
    %v5620 = vunpack.c.h.b16 %v4335
    %v5621 = vunpack.c.l.b16 %v4336
    %v5622 = vunpack.c.h.b16 %v4336
    %v5623 = vunpack.c.l.b16 %v4337
    %v5624 = vunpack.c.h.b16 %v4337
    %v5625 = vunpack.c.l.b16 %v4338
    %v5626 = vunpack.c.h.b16 %v4338
    %v5627 = vunpack.c.l.b16 %v4339
    %v5628 = vunpack.c.h.b16 %v4339
    %v5629 = vunpack.c.l.b16 %v4340
    %v5630 = vunpack.c.h.b16 %v4340
    %v5631 = vunpack.c.l.b16 %v4341
    %v5632 = vunpack.c.h.b16 %v4341
    %v5633 = vunpack.c.l.b16 %v4342
    %v5634 = vunpack.c.h.b16 %v4342
    %v5635 = vunpack.c.l.b16 %v4343
    %v5636 = vunpack.c.h.b16 %v4343
    %v5637 = vunpack.c.l.b16 %v4344
    %v5638 = vunpack.c.h.b16 %v4344
    %v5639 = vunpack.c.l.b16 %v4345
    %v5640 = vunpack.c.h.b16 %v4345
    %v5641 = vunpack.c.l.b16 %v4346
    %v5642 = vunpack.c.h.b16 %v4346
    %v5643 = vunpack.c.l.b16 %v4347
    %v5644 = vunpack.c.h.b16 %v4347
    %v5645 = vunpack.c.l.b16 %v4348
    %v5646 = vunpack.c.h.b16 %v4348
    %v5647 = vunpack.c.l.b16 %v4349
    %v5648 = vunpack.c.h.b16 %v4349
    %v5649 = vunpack.c.l.b16 %v4350
    %v5650 = vunpack.c.h.b16 %v4350
    %v5651 = vunpack.c.l.b16 %v4351
    %v5652 = vunpack.c.h.b16 %v4351
    %v5653 = vunpack.c.l.b16 %v4352
    %v5654 = vunpack.c.h.b16 %v4352
    %v5655 = vunpack.c.l.b16 %v4353
    %v5656 = vunpack.c.h.b16 %v4353
    %v5657 = vunpack.c.l.b16 %v4354
    %v5658 = vunpack.c.h.b16 %v4354
    %v5659 = vunpack.c.l.b16 %v4355
    %v5660 = vunpack.c.h.b16 %v4355
    %v5661 = vunpack.c.l.b16 %v4356
    %v5662 = vunpack.c.h.b16 %v4356
    %v5663 = vunpack.c.l.b16 %v4357
    %v5664 = vunpack.c.h.b16 %v4357
    %v5665 = vunpack.c.l.b16 %v4358
    %v5666 = vunpack.c.h.b16 %v4358
    %v5667 = vunpack.c.l.b16 %v4359
    %v5668 = vunpack.c.h.b16 %v4359
    %v5669 = vunpack.c.l.b16 %v4360
    %v5670 = vunpack.c.h.b16 %v4360
    %v5671 = vunpack.c.l.b16 %v4361
    %v5672 = vunpack.c.h.b16 %v4361
    %v5673 = vunpack.c.l.b16 %v4362
    %v5674 = vunpack.c.h.b16 %v4362
    %v5675 = vunpack.c.l.b16 %v4363
    %v5676 = vunpack.c.h.b16 %v4363
    %v5677 = vunpack.c.l.b16 %v4364
    %v5678 = vunpack.c.h.b16 %v4364
    %v5679 = vunpack.c.l.b16 %v4365
    %v5680 = vunpack.c.h.b16 %v4365
    %v5681 = vunpack.c.l.b16 %v4366
    %v5682 = vunpack.c.h.b16 %v4366
    %v5683 = vunpack.c.l.b16 %v4367
    %v5684 = vunpack.c.h.b16 %v4367
    %v5685 = vunpack.c.l.b16 %v4368
    %v5686 = vunpack.c.h.b16 %v4368
    %v5687 = vunpack.c.l.b16 %v4369
    %v5688 = vunpack.c.h.b16 %v4369
    %v5689 = vunpack.c.l.b16 %v4370
    %v5690 = vunpack.c.h.b16 %v4370
    %v5691 = vunpack.c.l.b16 %v4371
    %v5692 = vunpack.c.h.b16 %v4371
    %v5693 = vunpack.c.l.b16 %v4372
    %v5694 = vunpack.c.h.b16 %v4372
    %v5695 = vunpack.c.l.b16 %v4373
    %v5696 = vunpack.c.h.b16 %v4373
    %v5697 = vunpack.c.l.b16 %v4374
    %v5698 = vunpack.c.h.b16 %v4374
    %v5699 = vunpack.c.l.b16 %v4375
    %v5700 = vunpack.c.h.b16 %v4375
    %v5701 = vunpack.c.l.b16 %v4376
    %v5702 = vunpack.c.h.b16 %v4376
    %v5703 = vunpack.c.l.b16 %v4377
    %v5704 = vunpack.c.h.b16 %v4377
    %v5705 = vunpack.c.l.b16 %v4378
    %v5706 = vunpack.c.h.b16 %v4378
    %v5707 = vunpack.c.l.b16 %v4379
    %v5708 = vunpack.c.h.b16 %v4379
    %v5709 = vunpack.c.l.b16 %v4380
    %v5710 = vunpack.c.h.b16 %v4380
    %v5711 = vunpack.c.l.b16 %v4381
    %v5712 = vunpack.c.h.b16 %v4381
    %v5713 = vunpack.c.l.b16 %v4382
    %v5714 = vunpack.c.h.b16 %v4382
    %v5715 = vunpack.c.l.b16 %v4383
    %v5716 = vunpack.c.h.b16 %v4383
    %v5717 = vunpack.c.l.b16 %v4384
    %v5718 = vunpack.c.h.b16 %v4384
    %v5719 = vunpack.c.l.b16 %v4385
    %v5720 = vunpack.c.h.b16 %v4385
    %v5721 = vunpack.c.l.b16 %v4386
    %v5722 = vunpack.c.h.b16 %v4386
    %v5723 = vunpack.c.l.b16 %v4387
    %v5724 = vunpack.c.h.b16 %v4387
    %v5725 = vunpack.c.l.b16 %v4388
    %v5726 = vunpack.c.h.b16 %v4388
    %v5727 = vunpack.c.l.b16 %v4389
    %v5728 = vunpack.c.h.b16 %v4389
    %v5729 = vunpack.c.l.b16 %v4390
    %v5730 = vunpack.c.h.b16 %v4390
    %v5731 = vunpack.c.l.b16 %v4391
    %v5732 = vunpack.c.h.b16 %v4391
    %v5733 = vunpack.c.l.b16 %v4392
    %v5734 = vunpack.c.h.b16 %v4392
    %v5735 = vunpack.c.l.b16 %v4393
    %v5736 = vunpack.c.h.b16 %v4393
    %v5737 = vunpack.c.l.b16 %v4394
    %v5738 = vunpack.c.h.b16 %v4394
    %v5739 = vunpack.c.l.b16 %v4395
    %v5740 = vunpack.c.h.b16 %v4395
    %v5741 = vunpack.c.l.b16 %v4396
    %v5742 = vunpack.c.h.b16 %v4396
    %v5743 = vunpack.c.l.b16 %v4397
    %v5744 = vunpack.c.h.b16 %v4397
    %v5745 = vunpack.c.l.b16 %v4398
    %v5746 = vunpack.c.h.b16 %v4398
    %v5747 = vunpack.c.l.b16 %v4399
    %v5748 = vunpack.c.h.b16 %v4399
    %v5749 = vunpack.c.l.b16 %v4400
    %v5750 = vunpack.c.h.b16 %v4400
    %v5751 = vunpack.c.l.b16 %v4401
    %v5752 = vunpack.c.h.b16 %v4401
    %v5753 = vunpack.c.l.b16 %v4402
    %v5754 = vunpack.c.h.b16 %v4402
    %v5755 = vunpack.c.l.b16 %v4403
    %v5756 = vunpack.c.h.b16 %v4403
    %v5757 = vunpack.c.l.b16 %v4404
    %v5758 = vunpack.c.h.b16 %v4404
    %v5759 = vunpack.c.l.b16 %v4405
    %v5760 = vunpack.c.h.b16 %v4405
    %v5761 = vunpack.c.l.b16 %v4406
    %v5762 = vunpack.c.h.b16 %v4406
    %v5763 = vunpack.c.l.b16 %v4407
    %v5764 = vunpack.c.h.b16 %v4407
    %v5765 = vunpack.c.l.b16 %v4408
    %v5766 = vunpack.c.h.b16 %v4408
    %v5767 = vunpack.c.l.b16 %v4409
    %v5768 = vunpack.c.h.b16 %v4409
    %v5769 = vunpack.c.l.b16 %v4410
    %v5770 = vunpack.c.h.b16 %v4410
    %v5771 = vunpack.c.l.b16 %v4411
    %v5772 = vunpack.c.h.b16 %v4411
    %v5773 = vunpack.c.l.b16 %v4412
    %v5774 = vunpack.c.h.b16 %v4412
    %v5775 = vunpack.c.l.b16 %v4413
    %v5776 = vunpack.c.h.b16 %v4413
    %v5777 = vunpack.c.l.b16 %v4414
    %v5778 = vunpack.c.h.b16 %v4414
    %v5779 = vunpack.c.l.b16 %v4415
    %v5780 = vunpack.c.h.b16 %v4415
    %v5781 = vunpack.c.l.b16 %v4416
    %v5782 = vunpack.c.h.b16 %v4416
    %v5783 = vunpack.c.l.b16 %v4417
    %v5784 = vunpack.c.h.b16 %v4417
    %v5785 = vunpack.c.l.b16 %v4418
    %v5786 = vunpack.c.h.b16 %v4418
    %v5787 = vunpack.c.l.b16 %v4419
    %v5788 = vunpack.c.h.b16 %v4419
    %v5789 = vunpack.c.l.b16 %v4420
    %v5790 = vunpack.c.h.b16 %v4420
    %v5791 = vunpack.c.l.b16 %v4421
    %v5792 = vunpack.c.h.b16 %v4421
    %v5793 = vunpack.c.l.b16 %v4422
    %v5794 = vunpack.c.h.b16 %v4422
    %v5795 = vunpack.c.l.b16 %v4423
    %v5796 = vunpack.c.h.b16 %v4423
    %v5797 = vunpack.c.l.b16 %v4424
    %v5798 = vunpack.c.h.b16 %v4424
    %v5799 = vunpack.c.l.b16 %v4425
    %v5800 = vunpack.c.h.b16 %v4425
    %v5801 = vunpack.c.l.b16 %v4426
    %v5802 = vunpack.c.h.b16 %v4426
    %v5803 = vunpack.c.l.b16 %v4427
    %v5804 = vunpack.c.h.b16 %v4427
    %v5805 = vunpack.c.l.b16 %v4428
    %v5806 = vunpack.c.h.b16 %v4428
    %v5807 = vunpack.c.l.b16 %v4429
    %v5808 = vunpack.c.h.b16 %v4429
    %v5809 = vunpack.c.l.b16 %v4430
    %v5810 = vunpack.c.h.b16 %v4430
    %v5811 = vunpack.c.l.b16 %v4431
    %v5812 = vunpack.c.h.b16 %v4431
    %v5813 = vunpack.c.l.b16 %v4432
    %v5814 = vunpack.c.h.b16 %v4432
    %v5815 = vunpack.c.l.b16 %v4433
    %v5816 = vunpack.c.h.b16 %v4433
    %v5817 = vunpack.c.l.b16 %v4434
    %v5818 = vunpack.c.h.b16 %v4434
    %v5819 = vunpack.c.l.b16 %v4435
    %v5820 = vunpack.c.h.b16 %v4435
    %v5821 = vunpack.c.l.b16 %v4436
    %v5822 = vunpack.c.h.b16 %v4436
    %v5823 = vunpack.c.l.b16 %v4437
    %v5824 = vunpack.c.h.b16 %v4437
    %v5825 = vunpack.c.l.b16 %v4438
    %v5826 = vunpack.c.h.b16 %v4438
    %v5827 = vunpack.c.l.b16 %v4439
    %v5828 = vunpack.c.h.b16 %v4439
    %v5829 = vunpack.c.l.b16 %v4440
    %v5830 = vunpack.c.h.b16 %v4440
    %v5831 = vunpack.c.l.b16 %v4441
    %v5832 = vunpack.c.h.b16 %v4441
    %v5833 = vunpack.c.l.b16 %v4442
    %v5834 = vunpack.c.h.b16 %v4442
    %v5835 = vunpack.c.l.b16 %v4443
    %v5836 = vunpack.c.h.b16 %v4443
    %v5837 = vunpack.c.l.b16 %v4444
    %v5838 = vunpack.c.h.b16 %v4444
    %v5839 = vunpack.c.l.b16 %v4445
    %v5840 = vunpack.c.h.b16 %v4445
    %v5841 = vunpack.c.l.b16 %v4446
    %v5842 = vunpack.c.h.b16 %v4446
    %v5843 = vunpack.c.l.b16 %v4447
    %v5844 = vunpack.c.h.b16 %v4447
    %v5845 = vunpack.c.l.b16 %v4448
    %v5846 = vunpack.c.h.b16 %v4448
    %v5847 = vunpack.c.l.b16 %v4449
    %v5848 = vunpack.c.h.b16 %v4449
    %v5849 = vunpack.c.l.b16 %v4450
    %v5850 = vunpack.c.h.b16 %v4450
    %v5851 = vunpack.c.l.b16 %v4451
    %v5852 = vunpack.c.h.b16 %v4451
    %v5853 = vunpack.c.l.b16 %v4452
    %v5854 = vunpack.c.h.b16 %v4452
    %v5855 = vunpack.c.l.b16 %v4453
    %v5856 = vunpack.c.h.b16 %v4453
    %v5857 = vunpack.c.l.b16 %v4454
    %v5858 = vunpack.c.h.b16 %v4454
    %v5859 = vunpack.c.l.b16 %v4455
    %v5860 = vunpack.c.h.b16 %v4455
    %v5861 = vunpack.c.l.b16 %v4456
    %v5862 = vunpack.c.h.b16 %v4456
    %v5863 = vunpack.c.l.b16 %v4457
    %v5864 = vunpack.c.h.b16 %v4457
    %v5865 = vunpack.c.l.b16 %v4458
    %v5866 = vunpack.c.h.b16 %v4458
    %v5867 = vunpack.c.l.b16 %v4459
    %v5868 = vunpack.c.h.b16 %v4459
    %v5869 = vunpack.c.l.b16 %v4460
    %v5870 = vunpack.c.h.b16 %v4460
    %v5871 = vunpack.c.l.b16 %v4461
    %v5872 = vunpack.c.h.b16 %v4461
    %v5873 = vunpack.c.l.b16 %v4462
    %v5874 = vunpack.c.h.b16 %v4462
    %v5875 = vunpack.c.l.b16 %v4463
    %v5876 = vunpack.c.h.b16 %v4463
    %v5877 = vunpack.c.l.b16 %v4464
    %v5878 = vunpack.c.h.b16 %v4464
    %v5879 = vunpack.c.l.b16 %v4465
    %v5880 = vunpack.c.h.b16 %v4465
    %v5881 = vunpack.c.l.b16 %v4466
    %v5882 = vunpack.c.h.b16 %v4466
    %v5883 = vunpack.c.l.b16 %v4467
    %v5884 = vunpack.c.h.b16 %v4467
    %v5885 = vunpack.c.l.b16 %v4468
    %v5886 = vunpack.c.h.b16 %v4468
    %v5887 = vunpack.c.l.b16 %v4469
    %v5888 = vunpack.c.h.b16 %v4469
    %v5889 = vunpack.c.l.b16 %v4470
    %v5890 = vunpack.c.h.b16 %v4470
    %v5891 = vunpack.c.l.b16 %v4471
    %v5892 = vunpack.c.h.b16 %v4471
    %v5893 = vunpack.c.l.b16 %v4472
    %v5894 = vunpack.c.h.b16 %v4472
    %v5895 = vunpack.c.l.b16 %v4473
    %v5896 = vunpack.c.h.b16 %v4473
    %v5897 = vunpack.c.l.b16 %v4474
    %v5898 = vunpack.c.h.b16 %v4474
    %v5899 = vunpack.c.l.b16 %v4475
    %v5900 = vunpack.c.h.b16 %v4475
    %v5901 = vunpack.c.l.b16 %v4476
    %v5902 = vunpack.c.h.b16 %v4476
    %v5903 = vunpack.c.l.b16 %v4477
    %v5904 = vunpack.c.h.b16 %v4477
    %v5905 = vunpack.c.l.b16 %v4478
    %v5906 = vunpack.c.h.b16 %v4478
    %v5907 = vunpack.c.l.b16 %v4479
    %v5908 = vunpack.c.h.b16 %v4479
    %v5909 = vunpack.c.l.b16 %v4480
    %v5910 = vunpack.c.h.b16 %v4480
    %v5911 = vunpack.c.l.b16 %v4481
    %v5912 = vunpack.c.h.b16 %v4481
    %v5913 = vunpack.c.l.b16 %v4482
    %v5914 = vunpack.c.h.b16 %v4482
    %v5915 = vunpack.c.l.b16 %v4483
    %v5916 = vunpack.c.h.b16 %v4483
    %v5917 = vunpack.c.l.b16 %v4484
    %v5918 = vunpack.c.h.b16 %v4484
    %v5919 = vunpack.c.l.b16 %v4485
    %v5920 = vunpack.c.h.b16 %v4485
    %v5921 = vunpack.c.l.b16 %v4486
    %v5922 = vunpack.c.h.b16 %v4486
    %v5923 = vunpack.c.l.b16 %v4487
    %v5924 = vunpack.c.h.b16 %v4487
    %v5925 = vunpack.c.l.b16 %v4488
    %v5926 = vunpack.c.h.b16 %v4488
    %v5927 = vunpack.c.l.b16 %v4489
    %v5928 = vunpack.c.h.b16 %v4489
    %v5929 = vunpack.c.l.b16 %v4490
    %v5930 = vunpack.c.h.b16 %v4490
    %v5931 = vunpack.c.l.b16 %v4491
    %v5932 = vunpack.c.h.b16 %v4491
    %v5933 = vunpack.c.l.b16 %v4492
    %v5934 = vunpack.c.h.b16 %v4492
    %v5935 = vunpack.c.l.b16 %v4493
    %v5936 = vunpack.c.h.b16 %v4493
    %v5937 = vunpack.c.l.b16 %v4494
    %v5938 = vunpack.c.h.b16 %v4494
    %v5939 = vunpack.c.l.b16 %v4495
    %v5940 = vunpack.c.h.b16 %v4495
    %v5941 = vunpack.c.l.b16 %v4496
    %v5942 = vunpack.c.h.b16 %v4496
    %v5943 = vunpack.c.l.b16 %v4497
    %v5944 = vunpack.c.h.b16 %v4497
    %v5945 = vunpack.c.l.b16 %v4498
    %v5946 = vunpack.c.h.b16 %v4498
    %v5947 = vunpack.c.l.b16 %v4499
    %v5948 = vunpack.c.h.b16 %v4499
    %v5949 = vunpack.c.l.b16 %v4500
    %v5950 = vunpack.c.h.b16 %v4500
    %v5951 = vunpack.c.l.b16 %v4501
    %v5952 = vunpack.c.h.b16 %v4501
    %v5953 = vunpack.c.l.b16 %v4502
    %v5954 = vunpack.c.h.b16 %v4502
    %v5955 = vunpack.c.l.b16 %v4503
    %v5956 = vunpack.c.h.b16 %v4503
    %v5957 = vunpack.c.l.b16 %v4504
    %v5958 = vunpack.c.h.b16 %v4504
    %v5959 = vunpack.c.l.b16 %v4505
    %v5960 = vunpack.c.h.b16 %v4505
    %v5961 = vunpack.c.l.b16 %v4506
    %v5962 = vunpack.c.h.b16 %v4506
    %v5963 = vunpack.c.l.b16 %v4507
    %v5964 = vunpack.c.h.b16 %v4507
    %v5965 = vunpack.c.l.b16 %v4508
    %v5966 = vunpack.c.h.b16 %v4508
    %v5967 = vunpack.c.l.b16 %v4509
    %v5968 = vunpack.c.h.b16 %v4509
    %v5969 = vunpack.c.l.b16 %v4510
    %v5970 = vunpack.c.h.b16 %v4510
    %v5971 = vunpack.c.l.b16 %v4511
    %v5972 = vunpack.c.h.b16 %v4511
    %v5973 = vunpack.c.l.b16 %v4512
    %v5974 = vunpack.c.h.b16 %v4512
    %v5975 = vunpack.c.l.b16 %v4513
    %v5976 = vunpack.c.h.b16 %v4513
    %v5977 = vunpack.c.l.b16 %v4514
    %v5978 = vunpack.c.h.b16 %v4514
    %v5979 = vunpack.c.l.b16 %v4515
    %v5980 = vunpack.c.h.b16 %v4515
    %v5981 = vunpack.c.l.b16 %v4516
    %v5982 = vunpack.c.h.b16 %v4516
    %v5983 = vunpack.c.l.b16 %v4517
    %v5984 = vunpack.c.h.b16 %v4517
    %v5985 = vunpack.c.l.b16 %v4518
    %v5986 = vunpack.c.h.b16 %v4518
    %v5987 = vunpack.c.l.b16 %v4519
    %v5988 = vunpack.c.h.b16 %v4519
    %v5989 = vunpack.c.l.b16 %v4520
    %v5990 = vunpack.c.h.b16 %v4520
    %v5991 = vunpack.c.l.b16 %v4521
    %v5992 = vunpack.c.h.b16 %v4521
    %v5993 = vunpack.c.l.b16 %v4522
    %v5994 = vunpack.c.h.b16 %v4522
    %v5995 = vunpack.c.l.b16 %v4523
    %v5996 = vunpack.c.h.b16 %v4523
    %v5997 = vunpack.c.l.b16 %v4524
    %v5998 = vunpack.c.h.b16 %v4524
    %v5999 = vunpack.c.l.b16 %v4525
    %v6000 = vunpack.c.h.b16 %v4525
    %v6001 = vunpack.c.l.b16 %v4526
    %v6002 = vunpack.c.h.b16 %v4526
    %v6003 = vunpack.c.l.b16 %v4527
    %v6004 = vunpack.c.h.b16 %v4527
    %v6005 = vunpack.c.l.b16 %v4528
    %v6006 = vunpack.c.h.b16 %v4528
    %v6007 = vunpack.c.l.b16 %v4529
    %v6008 = vunpack.c.h.b16 %v4529
    %v6009 = vunpack.c.l.b16 %v4530
    %v6010 = vunpack.c.h.b16 %v4530
    %v6011 = vunpack.c.l.b16 %v4531
    %v6012 = vunpack.c.h.b16 %v4531
    %v6013 = vunpack.c.l.b16 %v4532
    %v6014 = vunpack.c.h.b16 %v4532
    %v6015 = vunpack.c.l.b16 %v4533
    %v6016 = vunpack.c.h.b16 %v4533
    %v6017 = vunpack.c.l.b16 %v4534
    %v6018 = vunpack.c.h.b16 %v4534
    %v6019 = vunpack.c.l.b16 %v4535
    %v6020 = vunpack.c.h.b16 %v4535
    %v6021 = vunpack.c.l.b16 %v4536
    %v6022 = vunpack.c.h.b16 %v4536
    %v6023 = vunpack.c.l.b16 %v4537
    %v6024 = vunpack.c.h.b16 %v4537
    %v6025 = vunpack.c.l.b16 %v4538
    %v6026 = vunpack.c.h.b16 %v4538
    %v6027 = vunpack.c.l.b16 %v4539
    %v6028 = vunpack.c.h.b16 %v4539
    %v6029 = vunpack.c.l.b16 %v4540
    %v6030 = vunpack.c.h.b16 %v4540
    %v6031 = vunpack.c.l.b16 %v4541
    %v6032 = vunpack.c.h.b16 %v4541
    %v6033 = vunpack.c.l.b16 %v4542
    %v6034 = vunpack.c.h.b16 %v4542
    %v6035 = vunpack.c.l.b16 %v4543
    %v6036 = vunpack.c.h.b16 %v4543
    %v6037 = vunpack.c.l.b16 %v4544
    %v6038 = vunpack.c.h.b16 %v4544
    %v6039 = vunpack.c.l.b16 %v4545
    %v6040 = vunpack.c.h.b16 %v4545
    %v6041 = vunpack.c.l.b16 %v4546
    %v6042 = vunpack.c.h.b16 %v4546
    %v6043 = vunpack.c.l.b16 %v4547
    %v6044 = vunpack.c.h.b16 %v4547
    %v6045 = vunpack.c.l.b16 %v4548
    %v6046 = vunpack.c.h.b16 %v4548
    %v6047 = vunpack.c.l.b16 %v4549
    %v6048 = vunpack.c.h.b16 %v4549
    %v6049 = vunpack.c.l.b16 %v4550
    %v6050 = vunpack.c.h.b16 %v4550
    %v6051 = vunpack.c.l.b16 %v4551
    %v6052 = vunpack.c.h.b16 %v4551
    %v6053 = vunpack.c.l.b16 %v4552
    %v6054 = vunpack.c.h.b16 %v4552
    %v6055 = vunpack.c.l.b16 %v4553
    %v6056 = vunpack.c.h.b16 %v4553
    %v6057 = vunpack.c.l.b16 %v4554
    %v6058 = vunpack.c.h.b16 %v4554
    %v6059 = vunpack.c.l.b16 %v4555
    %v6060 = vunpack.c.h.b16 %v4555
    %v6061 = vunpack.c.l.b16 %v4556
    %v6062 = vunpack.c.h.b16 %v4556
    %v6063 = vunpack.c.l.b16 %v4557
    %v6064 = vunpack.c.h.b16 %v4557
    %v6065 = vunpack.c.l.b16 %v4558
    %v6066 = vunpack.c.h.b16 %v4558
    %v6067 = vunpack.c.l.b16 %v4559
    %v6068 = vunpack.c.h.b16 %v4559
    %v6069 = vunpack.c.l.b16 %v4560
    %v6070 = vunpack.c.h.b16 %v4560
    %v6071 = vunpack.c.l.b16 %v4561
    %v6072 = vunpack.c.h.b16 %v4561
    %v6073 = vunpack.c.l.b16 %v4562
    %v6074 = vunpack.c.h.b16 %v4562
    %v6075 = vunpack.c.l.b16 %v4563
    %v6076 = vunpack.c.h.b16 %v4563
    %v6077 = vunpack.c.l.b16 %v4564
    %v6078 = vunpack.c.h.b16 %v4564
    %v6079 = vunpack.c.l.b16 %v4565
    %v6080 = vunpack.c.h.b16 %v4565
    %v6081 = vunpack.c.l.b16 %v4566
    %v6082 = vunpack.c.h.b16 %v4566
    %v6083 = vunpack.c.l.b16 %v4567
    %v6084 = vunpack.c.h.b16 %v4567
    %v6085 = vunpack.c.l.b16 %v4568
    %v6086 = vunpack.c.h.b16 %v4568
    %v6087 = vunpack.c.l.b16 %v4569
    %v6088 = vunpack.c.h.b16 %v4569
    %v6089 = vunpack.c.l.b16 %v4570
    %v6090 = vunpack.c.h.b16 %v4570
    %v6091 = vunpack.c.l.b16 %v4571
    %v6092 = vunpack.c.h.b16 %v4571
    %v6093 = vunpack.c.l.b16 %v4572
    %v6094 = vunpack.c.h.b16 %v4572
    %v6095 = vunpack.c.l.b16 %v4573
    %v6096 = vunpack.c.h.b16 %v4573
    %v6097 = vunpack.c.l.b16 %v4574
    %v6098 = vunpack.c.h.b16 %v4574
    %v6099 = vunpack.c.l.b16 %v4575
    %v6100 = vunpack.c.h.b16 %v4575
    %v6101 = vunpack.c.l.b16 %v4576
    %v6102 = vunpack.c.h.b16 %v4576
    %v6103 = vunpack.c.l.b16 %v4577
    %v6104 = vunpack.c.h.b16 %v4577
    %v6105 = vunpack.c.l.b16 %v4578
    %v6106 = vunpack.c.h.b16 %v4578
    %v6107 = vunpack.c.l.b16 %v4579
    %v6108 = vunpack.c.h.b16 %v4579
    %v6109 = vunpack.c.l.b16 %v4580
    %v6110 = vunpack.c.h.b16 %v4580
    %v6111 = vunpack.c.l.b16 %v4581
    %v6112 = vunpack.c.h.b16 %v4581
    %v6113 = vunpack.c.l.b16 %v4582
    %v6114 = vunpack.c.h.b16 %v4582
    %v6115 = vunpack.c.l.b16 %v4583
    %v6116 = vunpack.c.h.b16 %v4583
    %v6117 = vunpack.c.l.b16 %v4584
    %v6118 = vunpack.c.h.b16 %v4584
    %v6119 = vunpack.c.l.b16 %v4585
    %v6120 = vunpack.c.h.b16 %v4585
    %v6121 = vunpack.c.l.b16 %v4586
    %v6122 = vunpack.c.h.b16 %v4586
    %v6123 = vunpack.c.l.b16 %v4587
    %v6124 = vunpack.c.h.b16 %v4587
    %v6125 = vunpack.c.l.b16 %v4588
    %v6126 = vunpack.c.h.b16 %v4588
    %v6127 = vunpack.c.l.b16 %v4589
    %v6128 = vunpack.c.h.b16 %v4589
    %v6129 = vunpack.c.l.b16 %v4590
    %v6130 = vunpack.c.h.b16 %v4590
    %v6131 = vunpack.c.l.b16 %v4591
    %v6132 = vunpack.c.h.b16 %v4591
    %v6133 = vunpack.c.l.b16 %v4592
    %v6134 = vunpack.c.h.b16 %v4592
    %v6135 = vunpack.c.l.b16 %v4593
    %v6136 = vunpack.c.h.b16 %v4593
    %v6137 = vunpack.c.l.b16 %v4594
    %v6138 = vunpack.c.h.b16 %v4594
    %v6139 = vunpack.c.l.b16 %v4595
    %v6140 = vunpack.c.h.b16 %v4595
    %v6141 = vunpack.c.l.b16 %v4596
    %v6142 = vunpack.c.h.b16 %v4596
    %v6143 = vpack.c.b16 %v5123, %v5119
    %v6144 = vpack.c.b16 %v5124, %v5120
    %v6145 = vpack.c.b16 %v5125, %v5121
    %v6146 = vpack.c.b16 %v5126, %v5122
    %v6147 = vpack.c.b16 %v5131, %v5127
    %v6148 = vpack.c.b16 %v5132, %v5128
    %v6149 = vpack.c.b16 %v5133, %v5129
    %v6150 = vpack.c.b16 %v5134, %v5130
    %v6151 = vpack.c.b16 %v5139, %v5135
    %v6152 = vpack.c.b16 %v5140, %v5136
    %v6153 = vpack.c.b16 %v5141, %v5137
    %v6154 = vpack.c.b16 %v5142, %v5138
    %v6155 = vpack.c.b16 %v5147, %v5143
    %v6156 = vpack.c.b16 %v5148, %v5144
    %v6157 = vpack.c.b16 %v5149, %v5145
    %v6158 = vpack.c.b16 %v5150, %v5146
    %v6159 = vpack.c.b16 %v5155, %v5151
    %v6160 = vpack.c.b16 %v5156, %v5152
    %v6161 = vpack.c.b16 %v5157, %v5153
    %v6162 = vpack.c.b16 %v5158, %v5154
    %v6163 = vpack.c.b16 %v5163, %v5159
    %v6164 = vpack.c.b16 %v5164, %v5160
    %v6165 = vpack.c.b16 %v5165, %v5161
    %v6166 = vpack.c.b16 %v5166, %v5162
    %v6167 = vpack.c.b16 %v5171, %v5167
    %v6168 = vpack.c.b16 %v5172, %v5168
    %v6169 = vpack.c.b16 %v5173, %v5169
    %v6170 = vpack.c.b16 %v5174, %v5170
    %v6171 = vpack.c.b16 %v5179, %v5175
    %v6172 = vpack.c.b16 %v5180, %v5176
    %v6173 = vpack.c.b16 %v5181, %v5177
    %v6174 = vpack.c.b16 %v5182, %v5178
    %v6175 = vpack.c.b16 %v5187, %v5183
    %v6176 = vpack.c.b16 %v5188, %v5184
    %v6177 = vpack.c.b16 %v5189, %v5185
    %v6178 = vpack.c.b16 %v5190, %v5186
    %v6179 = vpack.c.b16 %v5195, %v5191
    %v6180 = vpack.c.b16 %v5196, %v5192
    %v6181 = vpack.c.b16 %v5197, %v5193
    %v6182 = vpack.c.b16 %v5198, %v5194
    %v6183 = vpack.c.b16 %v5203, %v5199
    %v6184 = vpack.c.b16 %v5204, %v5200
    %v6185 = vpack.c.b16 %v5205, %v5201
    %v6186 = vpack.c.b16 %v5206, %v5202
    %v6187 = vpack.c.b16 %v5211, %v5207
    %v6188 = vpack.c.b16 %v5212, %v5208
    %v6189 = vpack.c.b16 %v5213, %v5209
    %v6190 = vpack.c.b16 %v5214, %v5210
    %v6191 = vpack.c.b16 %v5219, %v5215
    %v6192 = vpack.c.b16 %v5220, %v5216
    %v6193 = vpack.c.b16 %v5221, %v5217
    %v6194 = vpack.c.b16 %v5222, %v5218
    %v6195 = vpack.c.b16 %v5227, %v5223
    %v6196 = vpack.c.b16 %v5228, %v5224
    %v6197 = vpack.c.b16 %v5229, %v5225
    %v6198 = vpack.c.b16 %v5230, %v5226
    %v6199 = vpack.c.b16 %v5235, %v5231
    %v6200 = vpack.c.b16 %v5236, %v5232
    %v6201 = vpack.c.b16 %v5237, %v5233
    %v6202 = vpack.c.b16 %v5238, %v5234
    %v6203 = vpack.c.b16 %v5243, %v5239
    %v6204 = vpack.c.b16 %v5244, %v5240
    %v6205 = vpack.c.b16 %v5245, %v5241
    %v6206 = vpack.c.b16 %v5246, %v5242
    %v6207 = vpack.c.b16 %v5251, %v5247
    %v6208 = vpack.c.b16 %v5252, %v5248
    %v6209 = vpack.c.b16 %v5253, %v5249
    %v6210 = vpack.c.b16 %v5254, %v5250
    %v6211 = vpack.c.b16 %v5259, %v5255
    %v6212 = vpack.c.b16 %v5260, %v5256
    %v6213 = vpack.c.b16 %v5261, %v5257
    %v6214 = vpack.c.b16 %v5262, %v5258
    %v6215 = vpack.c.b16 %v5267, %v5263
    %v6216 = vpack.c.b16 %v5268, %v5264
    %v6217 = vpack.c.b16 %v5269, %v5265
    %v6218 = vpack.c.b16 %v5270, %v5266
    %v6219 = vpack.c.b16 %v5275, %v5271
    %v6220 = vpack.c.b16 %v5276, %v5272
    %v6221 = vpack.c.b16 %v5277, %v5273
    %v6222 = vpack.c.b16 %v5278, %v5274
    %v6223 = vpack.c.b16 %v5283, %v5279
    %v6224 = vpack.c.b16 %v5284, %v5280
    %v6225 = vpack.c.b16 %v5285, %v5281
    %v6226 = vpack.c.b16 %v5286, %v5282
    %v6227 = vpack.c.b16 %v5291, %v5287
    %v6228 = vpack.c.b16 %v5292, %v5288
    %v6229 = vpack.c.b16 %v5293, %v5289
    %v6230 = vpack.c.b16 %v5294, %v5290
    %v6231 = vpack.c.b16 %v5299, %v5295
    %v6232 = vpack.c.b16 %v5300, %v5296
    %v6233 = vpack.c.b16 %v5301, %v5297
    %v6234 = vpack.c.b16 %v5302, %v5298
    %v6235 = vpack.c.b16 %v5307, %v5303
    %v6236 = vpack.c.b16 %v5308, %v5304
    %v6237 = vpack.c.b16 %v5309, %v5305
    %v6238 = vpack.c.b16 %v5310, %v5306
    %v6239 = vpack.c.b16 %v5315, %v5311
    %v6240 = vpack.c.b16 %v5316, %v5312
    %v6241 = vpack.c.b16 %v5317, %v5313
    %v6242 = vpack.c.b16 %v5318, %v5314
    %v6243 = vpack.c.b16 %v5323, %v5319
    %v6244 = vpack.c.b16 %v5324, %v5320
    %v6245 = vpack.c.b16 %v5325, %v5321
    %v6246 = vpack.c.b16 %v5326, %v5322
    %v6247 = vpack.c.b16 %v5331, %v5327
    %v6248 = vpack.c.b16 %v5332, %v5328
    %v6249 = vpack.c.b16 %v5333, %v5329
    %v6250 = vpack.c.b16 %v5334, %v5330
    %v6251 = vpack.c.b16 %v5339, %v5335
    %v6252 = vpack.c.b16 %v5340, %v5336
    %v6253 = vpack.c.b16 %v5341, %v5337
    %v6254 = vpack.c.b16 %v5342, %v5338
    %v6255 = vpack.c.b16 %v5347, %v5343
    %v6256 = vpack.c.b16 %v5348, %v5344
    %v6257 = vpack.c.b16 %v5349, %v5345
    %v6258 = vpack.c.b16 %v5350, %v5346
    %v6259 = vpack.c.b16 %v5355, %v5351
    %v6260 = vpack.c.b16 %v5356, %v5352
    %v6261 = vpack.c.b16 %v5357, %v5353
    %v6262 = vpack.c.b16 %v5358, %v5354
    %v6263 = vpack.c.b16 %v5363, %v5359
    %v6264 = vpack.c.b16 %v5364, %v5360
    %v6265 = vpack.c.b16 %v5365, %v5361
    %v6266 = vpack.c.b16 %v5366, %v5362
    %v6267 = vpack.c.b16 %v5371, %v5367
    %v6268 = vpack.c.b16 %v5372, %v5368
    %v6269 = vpack.c.b16 %v5373, %v5369
    %v6270 = vpack.c.b16 %v5374, %v5370
    %v6271 = vpack.c.b16 %v5379, %v5375
    %v6272 = vpack.c.b16 %v5380, %v5376
    %v6273 = vpack.c.b16 %v5381, %v5377
    %v6274 = vpack.c.b16 %v5382, %v5378
    %v6275 = vpack.c.b16 %v5387, %v5383
    %v6276 = vpack.c.b16 %v5388, %v5384
    %v6277 = vpack.c.b16 %v5389, %v5385
    %v6278 = vpack.c.b16 %v5390, %v5386
    %v6279 = vpack.c.b16 %v5395, %v5391
    %v6280 = vpack.c.b16 %v5396, %v5392
    %v6281 = vpack.c.b16 %v5397, %v5393
    %v6282 = vpack.c.b16 %v5398, %v5394
    %v6283 = vpack.c.b16 %v5403, %v5399
    %v6284 = vpack.c.b16 %v5404, %v5400
    %v6285 = vpack.c.b16 %v5405, %v5401
    %v6286 = vpack.c.b16 %v5406, %v5402
    %v6287 = vpack.c.b16 %v5411, %v5407
    %v6288 = vpack.c.b16 %v5412, %v5408
    %v6289 = vpack.c.b16 %v5413, %v5409
    %v6290 = vpack.c.b16 %v5414, %v5410
    %v6291 = vpack.c.b16 %v5419, %v5415
    %v6292 = vpack.c.b16 %v5420, %v5416
    %v6293 = vpack.c.b16 %v5421, %v5417
    %v6294 = vpack.c.b16 %v5422, %v5418
    %v6295 = vpack.c.b16 %v5427, %v5423
    %v6296 = vpack.c.b16 %v5428, %v5424
    %v6297 = vpack.c.b16 %v5429, %v5425
    %v6298 = vpack.c.b16 %v5430, %v5426
    %v6299 = vpack.c.b16 %v5435, %v5431
    %v6300 = vpack.c.b16 %v5436, %v5432
    %v6301 = vpack.c.b16 %v5437, %v5433
    %v6302 = vpack.c.b16 %v5438, %v5434
    %v6303 = vpack.c.b16 %v5443, %v5439
    %v6304 = vpack.c.b16 %v5444, %v5440
    %v6305 = vpack.c.b16 %v5445, %v5441
    %v6306 = vpack.c.b16 %v5446, %v5442
    %v6307 = vpack.c.b16 %v5451, %v5447
    %v6308 = vpack.c.b16 %v5452, %v5448
    %v6309 = vpack.c.b16 %v5453, %v5449
    %v6310 = vpack.c.b16 %v5454, %v5450
    %v6311 = vpack.c.b16 %v5459, %v5455
    %v6312 = vpack.c.b16 %v5460, %v5456
    %v6313 = vpack.c.b16 %v5461, %v5457
    %v6314 = vpack.c.b16 %v5462, %v5458
    %v6315 = vpack.c.b16 %v5467, %v5463
    %v6316 = vpack.c.b16 %v5468, %v5464
    %v6317 = vpack.c.b16 %v5469, %v5465
    %v6318 = vpack.c.b16 %v5470, %v5466
    %v6319 = vpack.c.b16 %v5475, %v5471
    %v6320 = vpack.c.b16 %v5476, %v5472
    %v6321 = vpack.c.b16 %v5477, %v5473
    %v6322 = vpack.c.b16 %v5478, %v5474
    %v6323 = vpack.c.b16 %v5483, %v5479
    %v6324 = vpack.c.b16 %v5484, %v5480
    %v6325 = vpack.c.b16 %v5485, %v5481
    %v6326 = vpack.c.b16 %v5486, %v5482
    %v6327 = vpack.c.b16 %v5491, %v5487
    %v6328 = vpack.c.b16 %v5492, %v5488
    %v6329 = vpack.c.b16 %v5493, %v5489
    %v6330 = vpack.c.b16 %v5494, %v5490
    %v6331 = vpack.c.b16 %v5499, %v5495
    %v6332 = vpack.c.b16 %v5500, %v5496
    %v6333 = vpack.c.b16 %v5501, %v5497
    %v6334 = vpack.c.b16 %v5502, %v5498
    %v6335 = vpack.c.b16 %v5507, %v5503
    %v6336 = vpack.c.b16 %v5508, %v5504
    %v6337 = vpack.c.b16 %v5509, %v5505
    %v6338 = vpack.c.b16 %v5510, %v5506
    %v6339 = vpack.c.b16 %v5515, %v5511
    %v6340 = vpack.c.b16 %v5516, %v5512
    %v6341 = vpack.c.b16 %v5517, %v5513
    %v6342 = vpack.c.b16 %v5518, %v5514
    %v6343 = vpack.c.b16 %v5523, %v5519
    %v6344 = vpack.c.b16 %v5524, %v5520
    %v6345 = vpack.c.b16 %v5525, %v5521
    %v6346 = vpack.c.b16 %v5526, %v5522
    %v6347 = vpack.c.b16 %v5531, %v5527
    %v6348 = vpack.c.b16 %v5532, %v5528
    %v6349 = vpack.c.b16 %v5533, %v5529
    %v6350 = vpack.c.b16 %v5534, %v5530
    %v6351 = vpack.c.b16 %v5539, %v5535
    %v6352 = vpack.c.b16 %v5540, %v5536
    %v6353 = vpack.c.b16 %v5541, %v5537
    %v6354 = vpack.c.b16 %v5542, %v5538
    %v6355 = vpack.c.b16 %v5547, %v5543
    %v6356 = vpack.c.b16 %v5548, %v5544
    %v6357 = vpack.c.b16 %v5549, %v5545
    %v6358 = vpack.c.b16 %v5550, %v5546
    %v6359 = vpack.c.b16 %v5555, %v5551
    %v6360 = vpack.c.b16 %v5556, %v5552
    %v6361 = vpack.c.b16 %v5557, %v5553
    %v6362 = vpack.c.b16 %v5558, %v5554
    %v6363 = vpack.c.b16 %v5563, %v5559
    %v6364 = vpack.c.b16 %v5564, %v5560
    %v6365 = vpack.c.b16 %v5565, %v5561
    %v6366 = vpack.c.b16 %v5566, %v5562
    %v6367 = vpack.c.b16 %v5571, %v5567
    %v6368 = vpack.c.b16 %v5572, %v5568
    %v6369 = vpack.c.b16 %v5573, %v5569
    %v6370 = vpack.c.b16 %v5574, %v5570
    %v6371 = vpack.c.b16 %v5579, %v5575
    %v6372 = vpack.c.b16 %v5580, %v5576
    %v6373 = vpack.c.b16 %v5581, %v5577
    %v6374 = vpack.c.b16 %v5582, %v5578
    %v6375 = vpack.c.b16 %v5587, %v5583
    %v6376 = vpack.c.b16 %v5588, %v5584
    %v6377 = vpack.c.b16 %v5589, %v5585
    %v6378 = vpack.c.b16 %v5590, %v5586
    %v6379 = vpack.c.b16 %v5595, %v5591
    %v6380 = vpack.c.b16 %v5596, %v5592
    %v6381 = vpack.c.b16 %v5597, %v5593
    %v6382 = vpack.c.b16 %v5598, %v5594
    %v6383 = vpack.c.b16 %v5603, %v5599
    %v6384 = vpack.c.b16 %v5604, %v5600
    %v6385 = vpack.c.b16 %v5605, %v5601
    %v6386 = vpack.c.b16 %v5606, %v5602
    %v6387 = vpack.c.b16 %v5611, %v5607
    %v6388 = vpack.c.b16 %v5612, %v5608
    %v6389 = vpack.c.b16 %v5613, %v5609
    %v6390 = vpack.c.b16 %v5614, %v5610
    %v6391 = vpack.c.b16 %v5619, %v5615
    %v6392 = vpack.c.b16 %v5620, %v5616
    %v6393 = vpack.c.b16 %v5621, %v5617
    %v6394 = vpack.c.b16 %v5622, %v5618
    %v6395 = vpack.c.b16 %v5627, %v5623
    %v6396 = vpack.c.b16 %v5628, %v5624
    %v6397 = vpack.c.b16 %v5629, %v5625
    %v6398 = vpack.c.b16 %v5630, %v5626
    %v6399 = vpack.c.b16 %v5635, %v5631
    %v6400 = vpack.c.b16 %v5636, %v5632
    %v6401 = vpack.c.b16 %v5637, %v5633
    %v6402 = vpack.c.b16 %v5638, %v5634
    %v6403 = vpack.c.b16 %v5643, %v5639
    %v6404 = vpack.c.b16 %v5644, %v5640
    %v6405 = vpack.c.b16 %v5645, %v5641
    %v6406 = vpack.c.b16 %v5646, %v5642
    %v6407 = vpack.c.b16 %v5651, %v5647
    %v6408 = vpack.c.b16 %v5652, %v5648
    %v6409 = vpack.c.b16 %v5653, %v5649
    %v6410 = vpack.c.b16 %v5654, %v5650
    %v6411 = vpack.c.b16 %v5659, %v5655
    %v6412 = vpack.c.b16 %v5660, %v5656
    %v6413 = vpack.c.b16 %v5661, %v5657
    %v6414 = vpack.c.b16 %v5662, %v5658
    %v6415 = vpack.c.b16 %v5667, %v5663
    %v6416 = vpack.c.b16 %v5668, %v5664
    %v6417 = vpack.c.b16 %v5669, %v5665
    %v6418 = vpack.c.b16 %v5670, %v5666
    %v6419 = vpack.c.b16 %v5675, %v5671
    %v6420 = vpack.c.b16 %v5676, %v5672
    %v6421 = vpack.c.b16 %v5677, %v5673
    %v6422 = vpack.c.b16 %v5678, %v5674
    %v6423 = vpack.c.b16 %v5683, %v5679
    %v6424 = vpack.c.b16 %v5684, %v5680
    %v6425 = vpack.c.b16 %v5685, %v5681
    %v6426 = vpack.c.b16 %v5686, %v5682
    %v6427 = vpack.c.b16 %v5691, %v5687
    %v6428 = vpack.c.b16 %v5692, %v5688
    %v6429 = vpack.c.b16 %v5693, %v5689
    %v6430 = vpack.c.b16 %v5694, %v5690
    %v6431 = vpack.c.b16 %v5699, %v5695
    %v6432 = vpack.c.b16 %v5700, %v5696
    %v6433 = vpack.c.b16 %v5701, %v5697
    %v6434 = vpack.c.b16 %v5702, %v5698
    %v6435 = vpack.c.b16 %v5707, %v5703
    %v6436 = vpack.c.b16 %v5708, %v5704
    %v6437 = vpack.c.b16 %v5709, %v5705
    %v6438 = vpack.c.b16 %v5710, %v5706
    %v6439 = vpack.c.b16 %v5715, %v5711
    %v6440 = vpack.c.b16 %v5716, %v5712
    %v6441 = vpack.c.b16 %v5717, %v5713
    %v6442 = vpack.c.b16 %v5718, %v5714
    %v6443 = vpack.c.b16 %v5723, %v5719
    %v6444 = vpack.c.b16 %v5724, %v5720
    %v6445 = vpack.c.b16 %v5725, %v5721
    %v6446 = vpack.c.b16 %v5726, %v5722
    %v6447 = vpack.c.b16 %v5731, %v5727
    %v6448 = vpack.c.b16 %v5732, %v5728
    %v6449 = vpack.c.b16 %v5733, %v5729
    %v6450 = vpack.c.b16 %v5734, %v5730
    %v6451 = vpack.c.b16 %v5739, %v5735
    %v6452 = vpack.c.b16 %v5740, %v5736
    %v6453 = vpack.c.b16 %v5741, %v5737
    %v6454 = vpack.c.b16 %v5742, %v5738
    %v6455 = vpack.c.b16 %v5747, %v5743
    %v6456 = vpack.c.b16 %v5748, %v5744
    %v6457 = vpack.c.b16 %v5749, %v5745
    %v6458 = vpack.c.b16 %v5750, %v5746
    %v6459 = vpack.c.b16 %v5755, %v5751
    %v6460 = vpack.c.b16 %v5756, %v5752
    %v6461 = vpack.c.b16 %v5757, %v5753
    %v6462 = vpack.c.b16 %v5758, %v5754
    %v6463 = vpack.c.b16 %v5763, %v5759
    %v6464 = vpack.c.b16 %v5764, %v5760
    %v6465 = vpack.c.b16 %v5765, %v5761
    %v6466 = vpack.c.b16 %v5766, %v5762
    %v6467 = vpack.c.b16 %v5771, %v5767
    %v6468 = vpack.c.b16 %v5772, %v5768
    %v6469 = vpack.c.b16 %v5773, %v5769
    %v6470 = vpack.c.b16 %v5774, %v5770
    %v6471 = vpack.c.b16 %v5779, %v5775
    %v6472 = vpack.c.b16 %v5780, %v5776
    %v6473 = vpack.c.b16 %v5781, %v5777
    %v6474 = vpack.c.b16 %v5782, %v5778
    %v6475 = vpack.c.b16 %v5787, %v5783
    %v6476 = vpack.c.b16 %v5788, %v5784
    %v6477 = vpack.c.b16 %v5789, %v5785
    %v6478 = vpack.c.b16 %v5790, %v5786
    %v6479 = vpack.c.b16 %v5795, %v5791
    %v6480 = vpack.c.b16 %v5796, %v5792
    %v6481 = vpack.c.b16 %v5797, %v5793
    %v6482 = vpack.c.b16 %v5798, %v5794
    %v6483 = vpack.c.b16 %v5803, %v5799
    %v6484 = vpack.c.b16 %v5804, %v5800
    %v6485 = vpack.c.b16 %v5805, %v5801
    %v6486 = vpack.c.b16 %v5806, %v5802
    %v6487 = vpack.c.b16 %v5811, %v5807
    %v6488 = vpack.c.b16 %v5812, %v5808
    %v6489 = vpack.c.b16 %v5813, %v5809
    %v6490 = vpack.c.b16 %v5814, %v5810
    %v6491 = vpack.c.b16 %v5819, %v5815
    %v6492 = vpack.c.b16 %v5820, %v5816
    %v6493 = vpack.c.b16 %v5821, %v5817
    %v6494 = vpack.c.b16 %v5822, %v5818
    %v6495 = vpack.c.b16 %v5827, %v5823
    %v6496 = vpack.c.b16 %v5828, %v5824
    %v6497 = vpack.c.b16 %v5829, %v5825
    %v6498 = vpack.c.b16 %v5830, %v5826
    %v6499 = vpack.c.b16 %v5835, %v5831
    %v6500 = vpack.c.b16 %v5836, %v5832
    %v6501 = vpack.c.b16 %v5837, %v5833
    %v6502 = vpack.c.b16 %v5838, %v5834
    %v6503 = vpack.c.b16 %v5843, %v5839
    %v6504 = vpack.c.b16 %v5844, %v5840
    %v6505 = vpack.c.b16 %v5845, %v5841
    %v6506 = vpack.c.b16 %v5846, %v5842
    %v6507 = vpack.c.b16 %v5851, %v5847
    %v6508 = vpack.c.b16 %v5852, %v5848
    %v6509 = vpack.c.b16 %v5853, %v5849
    %v6510 = vpack.c.b16 %v5854, %v5850
    %v6511 = vpack.c.b16 %v5859, %v5855
    %v6512 = vpack.c.b16 %v5860, %v5856
    %v6513 = vpack.c.b16 %v5861, %v5857
    %v6514 = vpack.c.b16 %v5862, %v5858
    %v6515 = vpack.c.b16 %v5867, %v5863
    %v6516 = vpack.c.b16 %v5868, %v5864
    %v6517 = vpack.c.b16 %v5869, %v5865
    %v6518 = vpack.c.b16 %v5870, %v5866
    %v6519 = vpack.c.b16 %v5875, %v5871
    %v6520 = vpack.c.b16 %v5876, %v5872
    %v6521 = vpack.c.b16 %v5877, %v5873
    %v6522 = vpack.c.b16 %v5878, %v5874
    %v6523 = vpack.c.b16 %v5883, %v5879
    %v6524 = vpack.c.b16 %v5884, %v5880
    %v6525 = vpack.c.b16 %v5885, %v5881
    %v6526 = vpack.c.b16 %v5886, %v5882
    %v6527 = vpack.c.b16 %v5891, %v5887
    %v6528 = vpack.c.b16 %v5892, %v5888
    %v6529 = vpack.c.b16 %v5893, %v5889
    %v6530 = vpack.c.b16 %v5894, %v5890
    %v6531 = vpack.c.b16 %v5899, %v5895
    %v6532 = vpack.c.b16 %v5900, %v5896
    %v6533 = vpack.c.b16 %v5901, %v5897
    %v6534 = vpack.c.b16 %v5902, %v5898
    %v6535 = vpack.c.b16 %v5907, %v5903
    %v6536 = vpack.c.b16 %v5908, %v5904
    %v6537 = vpack.c.b16 %v5909, %v5905
    %v6538 = vpack.c.b16 %v5910, %v5906
    %v6539 = vpack.c.b16 %v5915, %v5911
    %v6540 = vpack.c.b16 %v5916, %v5912
    %v6541 = vpack.c.b16 %v5917, %v5913
    %v6542 = vpack.c.b16 %v5918, %v5914
    %v6543 = vpack.c.b16 %v5923, %v5919
    %v6544 = vpack.c.b16 %v5924, %v5920
    %v6545 = vpack.c.b16 %v5925, %v5921
    %v6546 = vpack.c.b16 %v5926, %v5922
    %v6547 = vpack.c.b16 %v5931, %v5927
    %v6548 = vpack.c.b16 %v5932, %v5928
    %v6549 = vpack.c.b16 %v5933, %v5929
    %v6550 = vpack.c.b16 %v5934, %v5930
    %v6551 = vpack.c.b16 %v5939, %v5935
    %v6552 = vpack.c.b16 %v5940, %v5936
    %v6553 = vpack.c.b16 %v5941, %v5937
    %v6554 = vpack.c.b16 %v5942, %v5938
    %v6555 = vpack.c.b16 %v5947, %v5943
    %v6556 = vpack.c.b16 %v5948, %v5944
    %v6557 = vpack.c.b16 %v5949, %v5945
    %v6558 = vpack.c.b16 %v5950, %v5946
    %v6559 = vpack.c.b16 %v5955, %v5951
    %v6560 = vpack.c.b16 %v5956, %v5952
    %v6561 = vpack.c.b16 %v5957, %v5953
    %v6562 = vpack.c.b16 %v5958, %v5954
    %v6563 = vpack.c.b16 %v5963, %v5959
    %v6564 = vpack.c.b16 %v5964, %v5960
    %v6565 = vpack.c.b16 %v5965, %v5961
    %v6566 = vpack.c.b16 %v5966, %v5962
    %v6567 = vpack.c.b16 %v5971, %v5967
    %v6568 = vpack.c.b16 %v5972, %v5968
    %v6569 = vpack.c.b16 %v5973, %v5969
    %v6570 = vpack.c.b16 %v5974, %v5970
    %v6571 = vpack.c.b16 %v5979, %v5975
    %v6572 = vpack.c.b16 %v5980, %v5976
    %v6573 = vpack.c.b16 %v5981, %v5977
    %v6574 = vpack.c.b16 %v5982, %v5978
    %v6575 = vpack.c.b16 %v5987, %v5983
    %v6576 = vpack.c.b16 %v5988, %v5984
    %v6577 = vpack.c.b16 %v5989, %v5985
    %v6578 = vpack.c.b16 %v5990, %v5986
    %v6579 = vpack.c.b16 %v5995, %v5991
    %v6580 = vpack.c.b16 %v5996, %v5992
    %v6581 = vpack.c.b16 %v5997, %v5993
    %v6582 = vpack.c.b16 %v5998, %v5994
    %v6583 = vpack.c.b16 %v6003, %v5999
    %v6584 = vpack.c.b16 %v6004, %v6000
    %v6585 = vpack.c.b16 %v6005, %v6001
    %v6586 = vpack.c.b16 %v6006, %v6002
    %v6587 = vpack.c.b16 %v6011, %v6007
    %v6588 = vpack.c.b16 %v6012, %v6008
    %v6589 = vpack.c.b16 %v6013, %v6009
    %v6590 = vpack.c.b16 %v6014, %v6010
    %v6591 = vpack.c.b16 %v6019, %v6015
    %v6592 = vpack.c.b16 %v6020, %v6016
    %v6593 = vpack.c.b16 %v6021, %v6017
    %v6594 = vpack.c.b16 %v6022, %v6018
    %v6595 = vpack.c.b16 %v6027, %v6023
    %v6596 = vpack.c.b16 %v6028, %v6024
    %v6597 = vpack.c.b16 %v6029, %v6025
    %v6598 = vpack.c.b16 %v6030, %v6026
    %v6599 = vpack.c.b16 %v6035, %v6031
    %v6600 = vpack.c.b16 %v6036, %v6032
    %v6601 = vpack.c.b16 %v6037, %v6033
    %v6602 = vpack.c.b16 %v6038, %v6034
    %v6603 = vpack.c.b16 %v6043, %v6039
    %v6604 = vpack.c.b16 %v6044, %v6040
    %v6605 = vpack.c.b16 %v6045, %v6041
    %v6606 = vpack.c.b16 %v6046, %v6042
    %v6607 = vpack.c.b16 %v6051, %v6047
    %v6608 = vpack.c.b16 %v6052, %v6048
    %v6609 = vpack.c.b16 %v6053, %v6049
    %v6610 = vpack.c.b16 %v6054, %v6050
    %v6611 = vpack.c.b16 %v6059, %v6055
    %v6612 = vpack.c.b16 %v6060, %v6056
    %v6613 = vpack.c.b16 %v6061, %v6057
    %v6614 = vpack.c.b16 %v6062, %v6058
    %v6615 = vpack.c.b16 %v6067, %v6063
    %v6616 = vpack.c.b16 %v6068, %v6064
    %v6617 = vpack.c.b16 %v6069, %v6065
    %v6618 = vpack.c.b16 %v6070, %v6066
    %v6619 = vpack.c.b16 %v6075, %v6071
    %v6620 = vpack.c.b16 %v6076, %v6072
    %v6621 = vpack.c.b16 %v6077, %v6073
    %v6622 = vpack.c.b16 %v6078, %v6074
    %v6623 = vpack.c.b16 %v6083, %v6079
    %v6624 = vpack.c.b16 %v6084, %v6080
    %v6625 = vpack.c.b16 %v6085, %v6081
    %v6626 = vpack.c.b16 %v6086, %v6082
    %v6627 = vpack.c.b16 %v6091, %v6087
    %v6628 = vpack.c.b16 %v6092, %v6088
    %v6629 = vpack.c.b16 %v6093, %v6089
    %v6630 = vpack.c.b16 %v6094, %v6090
    %v6631 = vpack.c.b16 %v6099, %v6095
    %v6632 = vpack.c.b16 %v6100, %v6096
    %v6633 = vpack.c.b16 %v6101, %v6097
    %v6634 = vpack.c.b16 %v6102, %v6098
    %v6635 = vpack.c.b16 %v6107, %v6103
    %v6636 = vpack.c.b16 %v6108, %v6104
    %v6637 = vpack.c.b16 %v6109, %v6105
    %v6638 = vpack.c.b16 %v6110, %v6106
    %v6639 = vpack.c.b16 %v6115, %v6111
    %v6640 = vpack.c.b16 %v6116, %v6112
    %v6641 = vpack.c.b16 %v6117, %v6113
    %v6642 = vpack.c.b16 %v6118, %v6114
    %v6643 = vpack.c.b16 %v6123, %v6119
    %v6644 = vpack.c.b16 %v6124, %v6120
    %v6645 = vpack.c.b16 %v6125, %v6121
    %v6646 = vpack.c.b16 %v6126, %v6122
    %v6647 = vpack.c.b16 %v6131, %v6127
    %v6648 = vpack.c.b16 %v6132, %v6128
    %v6649 = vpack.c.b16 %v6133, %v6129
    %v6650 = vpack.c.b16 %v6134, %v6130
    %v6651 = vpack.c.b16 %v6139, %v6135
    %v6652 = vpack.c.b16 %v6140, %v6136
    %v6653 = vpack.c.b16 %v6141, %v6137
    %v6654 = vpack.c.b16 %v6142, %v6138
    %7167 = vmatpush.bf16.msra.mxu0 %v6171
    %7168 = vmatpush.bf16.msra.mxu0 %v6167
    %7169 = vmatpush.bf16.msra.mxu0 %v6163
    %7170 = vmatpush.bf16.msra.mxu0 %v6159
    %7171 = vmatpush.bf16.msra.mxu0 %v6155
    %7172 = vmatpush.bf16.msra.mxu0 %v6151
    %7173 = vmatpush.bf16.msra.mxu0 %v6147
    %7174 = vmatpush.bf16.msra.mxu0 %v6143
    %7175 = vmatmul.bf16.gmra.mxu0 %v4069
    %v7176 = vpop.f32.mrf.mxu0
    %v7177 = vadd.f32 %v4599, %v7176
    %v7178 = vpop.f32.mrf.mxu0
    %v7179 = vadd.f32 %v4599, %v7178
    %7180 = vdwg.mxu0
    %7181 = vmatpush.bf16.msra.mxu0 %v6203
    %7182 = vmatpush.bf16.msra.mxu0 %v6199
    %7183 = vmatpush.bf16.msra.mxu0 %v6195
    %7184 = vmatpush.bf16.msra.mxu0 %v6191
    %7185 = vmatpush.bf16.msra.mxu0 %v6187
    %7186 = vmatpush.bf16.msra.mxu0 %v6183
    %7187 = vmatpush.bf16.msra.mxu0 %v6179
    %7188 = vmatpush.bf16.msra.mxu0 %v6175
    %7189 = vmatmul.bf16.gmra.mxu0 %v4070
    %v7190 = vpop.f32.mrf.mxu0
    %v7191 = vadd.f32 %v7177, %v7190
    %v7192 = vpop.f32.mrf.mxu0
    %v7193 = vadd.f32 %v7179, %v7192
    %7194 = vdwg.mxu0
    %7195 = vmatpush.bf16.msra.mxu0 %v6235
    %7196 = vmatpush.bf16.msra.mxu0 %v6231
    %7197 = vmatpush.bf16.msra.mxu0 %v6227
    %7198 = vmatpush.bf16.msra.mxu0 %v6223
    %7199 = vmatpush.bf16.msra.mxu0 %v6219
    %7200 = vmatpush.bf16.msra.mxu0 %v6215
    %7201 = vmatpush.bf16.msra.mxu0 %v6211
    %7202 = vmatpush.bf16.msra.mxu0 %v6207
    %7203 = vmatmul.bf16.gmra.mxu0 %v4071
    %v7204 = vpop.f32.mrf.mxu0
    %v7205 = vadd.f32 %v7191, %v7204
    %v7206 = vpop.f32.mrf.mxu0
    %v7207 = vadd.f32 %v7193, %v7206
    %7208 = vdwg.mxu0
    %7209 = vmatpush.bf16.msra.mxu0 %v6267
    %7210 = vmatpush.bf16.msra.mxu0 %v6263
    %7211 = vmatpush.bf16.msra.mxu0 %v6259
    %7212 = vmatpush.bf16.msra.mxu0 %v6255
    %7213 = vmatpush.bf16.msra.mxu0 %v6251
    %7214 = vmatpush.bf16.msra.mxu0 %v6247
    %7215 = vmatpush.bf16.msra.mxu0 %v6243
    %7216 = vmatpush.bf16.msra.mxu0 %v6239
    %7217 = vmatmul.bf16.gmra.mxu0 %v4072
    %v7218 = vpop.f32.mrf.mxu0
    %v7219 = vadd.f32 %v7205, %v7218
    %v7220 = vpop.f32.mrf.mxu0
    %v7221 = vadd.f32 %v7207, %v7220
    %7222 = vdwg.mxu0
    %7223 = vmatpush.bf16.msra.mxu0 %v6299
    %7224 = vmatpush.bf16.msra.mxu0 %v6295
    %7225 = vmatpush.bf16.msra.mxu0 %v6291
    %7226 = vmatpush.bf16.msra.mxu0 %v6287
    %7227 = vmatpush.bf16.msra.mxu0 %v6283
    %7228 = vmatpush.bf16.msra.mxu0 %v6279
    %7229 = vmatpush.bf16.msra.mxu0 %v6275
    %7230 = vmatpush.bf16.msra.mxu0 %v6271
    %7231 = vmatmul.bf16.gmra.mxu0 %v4073
    %v7232 = vpop.f32.mrf.mxu0
    %v7233 = vadd.f32 %v7219, %v7232
    %v7234 = vpop.f32.mrf.mxu0
    %v7235 = vadd.f32 %v7221, %v7234
    %7236 = vdwg.mxu0
    %7237 = vmatpush.bf16.msra.mxu0 %v6331
    %7238 = vmatpush.bf16.msra.mxu0 %v6327
    %7239 = vmatpush.bf16.msra.mxu0 %v6323
    %7240 = vmatpush.bf16.msra.mxu0 %v6319
    %7241 = vmatpush.bf16.msra.mxu0 %v6315
    %7242 = vmatpush.bf16.msra.mxu0 %v6311
    %7243 = vmatpush.bf16.msra.mxu0 %v6307
    %7244 = vmatpush.bf16.msra.mxu0 %v6303
    %7245 = vmatmul.bf16.gmra.mxu0 %v4074
    %v7246 = vpop.f32.mrf.mxu0
    %v7247 = vadd.f32 %v7233, %v7246
    %v7248 = vpop.f32.mrf.mxu0
    %v7249 = vadd.f32 %v7235, %v7248
    %7250 = vdwg.mxu0
    %7251 = vmatpush.bf16.msra.mxu0 %v6363
    %7252 = vmatpush.bf16.msra.mxu0 %v6359
    %7253 = vmatpush.bf16.msra.mxu0 %v6355
    %7254 = vmatpush.bf16.msra.mxu0 %v6351
    %7255 = vmatpush.bf16.msra.mxu0 %v6347
    %7256 = vmatpush.bf16.msra.mxu0 %v6343
    %7257 = vmatpush.bf16.msra.mxu0 %v6339
    %7258 = vmatpush.bf16.msra.mxu0 %v6335
    %7259 = vmatmul.bf16.gmra.mxu0 %v4075
    %v7260 = vpop.f32.mrf.mxu0
    %v7261 = vadd.f32 %v7247, %v7260
    %v7262 = vpop.f32.mrf.mxu0
    %v7263 = vadd.f32 %v7249, %v7262
    %7264 = vdwg.mxu0
    %7265 = vmatpush.bf16.msra.mxu0 %v6395
    %7266 = vmatpush.bf16.msra.mxu0 %v6391
    %7267 = vmatpush.bf16.msra.mxu0 %v6387
    %7268 = vmatpush.bf16.msra.mxu0 %v6383
    %7269 = vmatpush.bf16.msra.mxu0 %v6379
    %7270 = vmatpush.bf16.msra.mxu0 %v6375
    %7271 = vmatpush.bf16.msra.mxu0 %v6371
    %7272 = vmatpush.bf16.msra.mxu0 %v6367
    %7273 = vmatmul.bf16.gmra.mxu0 %v4076
    %v7274 = vpop.f32.mrf.mxu0
    %v7275 = vadd.f32 %v7261, %v7274
    %v7276 = vpop.f32.mrf.mxu0
    %v7277 = vadd.f32 %v7263, %v7276
    %7278 = vdwg.mxu0
    %7279 = vmatpush.bf16.msra.mxu0 %v6427
    %7280 = vmatpush.bf16.msra.mxu0 %v6423
    %7281 = vmatpush.bf16.msra.mxu0 %v6419
    %7282 = vmatpush.bf16.msra.mxu0 %v6415
    %7283 = vmatpush.bf16.msra.mxu0 %v6411
    %7284 = vmatpush.bf16.msra.mxu0 %v6407
    %7285 = vmatpush.bf16.msra.mxu0 %v6403
    %7286 = vmatpush.bf16.msra.mxu0 %v6399
    %7287 = vmatmul.bf16.gmra.mxu0 %v4077
    %v7288 = vpop.f32.mrf.mxu0
    %v7289 = vadd.f32 %v7275, %v7288
    %v7290 = vpop.f32.mrf.mxu0
    %v7291 = vadd.f32 %v7277, %v7290
    %7292 = vdwg.mxu0
    %7293 = vmatpush.bf16.msra.mxu0 %v6459
    %7294 = vmatpush.bf16.msra.mxu0 %v6455
    %7295 = vmatpush.bf16.msra.mxu0 %v6451
    %7296 = vmatpush.bf16.msra.mxu0 %v6447
    %7297 = vmatpush.bf16.msra.mxu0 %v6443
    %7298 = vmatpush.bf16.msra.mxu0 %v6439
    %7299 = vmatpush.bf16.msra.mxu0 %v6435
    %7300 = vmatpush.bf16.msra.mxu0 %v6431
    %7301 = vmatmul.bf16.gmra.mxu0 %v4078
    %v7302 = vpop.f32.mrf.mxu0
    %v7303 = vadd.f32 %v7289, %v7302
    %v7304 = vpop.f32.mrf.mxu0
    %v7305 = vadd.f32 %v7291, %v7304
    %7306 = vdwg.mxu0
    %7307 = vmatpush.bf16.msra.mxu0 %v6491
    %7308 = vmatpush.bf16.msra.mxu0 %v6487
    %7309 = vmatpush.bf16.msra.mxu0 %v6483
    %7310 = vmatpush.bf16.msra.mxu0 %v6479
    %7311 = vmatpush.bf16.msra.mxu0 %v6475
    %7312 = vmatpush.bf16.msra.mxu0 %v6471
    %7313 = vmatpush.bf16.msra.mxu0 %v6467
    %7314 = vmatpush.bf16.msra.mxu0 %v6463
    %7315 = vmatmul.bf16.gmra.mxu0 %v4079
    %v7316 = vpop.f32.mrf.mxu0
    %v7317 = vadd.f32 %v7303, %v7316
    %v7318 = vpop.f32.mrf.mxu0
    %v7319 = vadd.f32 %v7305, %v7318
    %7320 = vdwg.mxu0
    %7321 = vmatpush.bf16.msra.mxu0 %v6523
    %7322 = vmatpush.bf16.msra.mxu0 %v6519
    %7323 = vmatpush.bf16.msra.mxu0 %v6515
    %7324 = vmatpush.bf16.msra.mxu0 %v6511
    %7325 = vmatpush.bf16.msra.mxu0 %v6507
    %7326 = vmatpush.bf16.msra.mxu0 %v6503
    %7327 = vmatpush.bf16.msra.mxu0 %v6499
    %7328 = vmatpush.bf16.msra.mxu0 %v6495
    %7329 = vmatmul.bf16.gmra.mxu0 %v4080
    %v7330 = vpop.f32.mrf.mxu0
    %v7331 = vadd.f32 %v7317, %v7330
    %v7332 = vpop.f32.mrf.mxu0
    %v7333 = vadd.f32 %v7319, %v7332
    %7334 = vdwg.mxu0
    %7335 = vmatpush.bf16.msra.mxu0 %v6555
    %7336 = vmatpush.bf16.msra.mxu0 %v6551
    %7337 = vmatpush.bf16.msra.mxu0 %v6547
    %7338 = vmatpush.bf16.msra.mxu0 %v6543
    %7339 = vmatpush.bf16.msra.mxu0 %v6539
    %7340 = vmatpush.bf16.msra.mxu0 %v6535
    %7341 = vmatpush.bf16.msra.mxu0 %v6531
    %7342 = vmatpush.bf16.msra.mxu0 %v6527
    %7343 = vmatmul.bf16.gmra.mxu0 %v4081
    %v7344 = vpop.f32.mrf.mxu0
    %v7345 = vadd.f32 %v7331, %v7344
    %v7346 = vpop.f32.mrf.mxu0
    %v7347 = vadd.f32 %v7333, %v7346
    %7348 = vdwg.mxu0
    %7349 = vmatpush.bf16.msra.mxu0 %v6587
    %7350 = vmatpush.bf16.msra.mxu0 %v6583
    %7351 = vmatpush.bf16.msra.mxu0 %v6579
    %7352 = vmatpush.bf16.msra.mxu0 %v6575
    %7353 = vmatpush.bf16.msra.mxu0 %v6571
    %7354 = vmatpush.bf16.msra.mxu0 %v6567
    %7355 = vmatpush.bf16.msra.mxu0 %v6563
    %7356 = vmatpush.bf16.msra.mxu0 %v6559
    %7357 = vmatmul.bf16.gmra.mxu0 %v4082
    %v7358 = vpop.f32.mrf.mxu0
    %v7359 = vadd.f32 %v7345, %v7358
    %v7360 = vpop.f32.mrf.mxu0
    %v7361 = vadd.f32 %v7347, %v7360
    %7362 = vdwg.mxu0
    %7363 = vmatpush.bf16.msra.mxu0 %v6619
    %7364 = vmatpush.bf16.msra.mxu0 %v6615
    %7365 = vmatpush.bf16.msra.mxu0 %v6611
    %7366 = vmatpush.bf16.msra.mxu0 %v6607
    %7367 = vmatpush.bf16.msra.mxu0 %v6603
    %7368 = vmatpush.bf16.msra.mxu0 %v6599
    %7369 = vmatpush.bf16.msra.mxu0 %v6595
    %7370 = vmatpush.bf16.msra.mxu0 %v6591
    %7371 = vmatmul.bf16.gmra.mxu0 %v4083
    %v7372 = vpop.f32.mrf.mxu0
    %v7373 = vadd.f32 %v7359, %v7372
    %v7374 = vpop.f32.mrf.mxu0
    %v7375 = vadd.f32 %v7361, %v7374
    %7376 = vdwg.mxu0
    %7377 = vmatpush.bf16.msra.mxu0 %v6651
    %7378 = vmatpush.bf16.msra.mxu0 %v6647
    %7379 = vmatpush.bf16.msra.mxu0 %v6643
    %7380 = vmatpush.bf16.msra.mxu0 %v6639
    %7381 = vmatpush.bf16.msra.mxu0 %v6635
    %7382 = vmatpush.bf16.msra.mxu0 %v6631
    %7383 = vmatpush.bf16.msra.mxu0 %v6627
    %7384 = vmatpush.bf16.msra.mxu0 %v6623
    %7385 = vmatmul.bf16.gmra.mxu0 %v4084
    %v7386 = vpop.f32.mrf.mxu0
    %v7387 = vadd.f32 %v7373, %v7386
    %v7388 = vpop.f32.mrf.mxu0
    %v7389 = vadd.f32 %v7375, %v7388
    %7390 = vdwg.mxu0
    %7391 = vmatpush.bf16.msra.mxu0 %v6172
    %7392 = vmatpush.bf16.msra.mxu0 %v6168
    %7393 = vmatpush.bf16.msra.mxu0 %v6164
    %7394 = vmatpush.bf16.msra.mxu0 %v6160
    %7395 = vmatpush.bf16.msra.mxu0 %v6156
    %7396 = vmatpush.bf16.msra.mxu0 %v6152
    %7397 = vmatpush.bf16.msra.mxu0 %v6148
    %7398 = vmatpush.bf16.msra.mxu0 %v6144
    %7399 = vmatmul.bf16.gmra.mxu0 %v4069
    %v7400 = vpop.f32.mrf.mxu0
    %v7401 = vadd.f32 %v4600, %v7400
    %v7402 = vpop.f32.mrf.mxu0
    %v7403 = vadd.f32 %v4600, %v7402
    %7404 = vdwg.mxu0
    %7405 = vmatpush.bf16.msra.mxu0 %v6204
    %7406 = vmatpush.bf16.msra.mxu0 %v6200
    %7407 = vmatpush.bf16.msra.mxu0 %v6196
    %7408 = vmatpush.bf16.msra.mxu0 %v6192
    %7409 = vmatpush.bf16.msra.mxu0 %v6188
    %7410 = vmatpush.bf16.msra.mxu0 %v6184
    %7411 = vmatpush.bf16.msra.mxu0 %v6180
    %7412 = vmatpush.bf16.msra.mxu0 %v6176
    %7413 = vmatmul.bf16.gmra.mxu0 %v4070
    %v7414 = vpop.f32.mrf.mxu0
    %v7415 = vadd.f32 %v7401, %v7414
    %v7416 = vpop.f32.mrf.mxu0
    %v7417 = vadd.f32 %v7403, %v7416
    %7418 = vdwg.mxu0
    %7419 = vmatpush.bf16.msra.mxu0 %v6236
    %7420 = vmatpush.bf16.msra.mxu0 %v6232
    %7421 = vmatpush.bf16.msra.mxu0 %v6228
    %7422 = vmatpush.bf16.msra.mxu0 %v6224
    %7423 = vmatpush.bf16.msra.mxu0 %v6220
    %7424 = vmatpush.bf16.msra.mxu0 %v6216
    %7425 = vmatpush.bf16.msra.mxu0 %v6212
    %7426 = vmatpush.bf16.msra.mxu0 %v6208
    %7427 = vmatmul.bf16.gmra.mxu0 %v4071
    %v7428 = vpop.f32.mrf.mxu0
    %v7429 = vadd.f32 %v7415, %v7428
    %v7430 = vpop.f32.mrf.mxu0
    %v7431 = vadd.f32 %v7417, %v7430
    %7432 = vdwg.mxu0
    %7433 = vmatpush.bf16.msra.mxu0 %v6268
    %7434 = vmatpush.bf16.msra.mxu0 %v6264
    %7435 = vmatpush.bf16.msra.mxu0 %v6260
    %7436 = vmatpush.bf16.msra.mxu0 %v6256
    %7437 = vmatpush.bf16.msra.mxu0 %v6252
    %7438 = vmatpush.bf16.msra.mxu0 %v6248
    %7439 = vmatpush.bf16.msra.mxu0 %v6244
    %7440 = vmatpush.bf16.msra.mxu0 %v6240
    %7441 = vmatmul.bf16.gmra.mxu0 %v4072
    %v7442 = vpop.f32.mrf.mxu0
    %v7443 = vadd.f32 %v7429, %v7442
    %v7444 = vpop.f32.mrf.mxu0
    %v7445 = vadd.f32 %v7431, %v7444
    %7446 = vdwg.mxu0
    %7447 = vmatpush.bf16.msra.mxu0 %v6300
    %7448 = vmatpush.bf16.msra.mxu0 %v6296
    %7449 = vmatpush.bf16.msra.mxu0 %v6292
    %7450 = vmatpush.bf16.msra.mxu0 %v6288
    %7451 = vmatpush.bf16.msra.mxu0 %v6284
    %7452 = vmatpush.bf16.msra.mxu0 %v6280
    %7453 = vmatpush.bf16.msra.mxu0 %v6276
    %7454 = vmatpush.bf16.msra.mxu0 %v6272
    %7455 = vmatmul.bf16.gmra.mxu0 %v4073
    %v7456 = vpop.f32.mrf.mxu0
    %v7457 = vadd.f32 %v7443, %v7456
    %v7458 = vpop.f32.mrf.mxu0
    %v7459 = vadd.f32 %v7445, %v7458
    %7460 = vdwg.mxu0
    %7461 = vmatpush.bf16.msra.mxu0 %v6332
    %7462 = vmatpush.bf16.msra.mxu0 %v6328
    %7463 = vmatpush.bf16.msra.mxu0 %v6324
    %7464 = vmatpush.bf16.msra.mxu0 %v6320
    %7465 = vmatpush.bf16.msra.mxu0 %v6316
    %7466 = vmatpush.bf16.msra.mxu0 %v6312
    %7467 = vmatpush.bf16.msra.mxu0 %v6308
    %7468 = vmatpush.bf16.msra.mxu0 %v6304
    %7469 = vmatmul.bf16.gmra.mxu0 %v4074
    %v7470 = vpop.f32.mrf.mxu0
    %v7471 = vadd.f32 %v7457, %v7470
    %v7472 = vpop.f32.mrf.mxu0
    %v7473 = vadd.f32 %v7459, %v7472
    %7474 = vdwg.mxu0
    %7475 = vmatpush.bf16.msra.mxu0 %v6364
    %7476 = vmatpush.bf16.msra.mxu0 %v6360
    %7477 = vmatpush.bf16.msra.mxu0 %v6356
    %7478 = vmatpush.bf16.msra.mxu0 %v6352
    %7479 = vmatpush.bf16.msra.mxu0 %v6348
    %7480 = vmatpush.bf16.msra.mxu0 %v6344
    %7481 = vmatpush.bf16.msra.mxu0 %v6340
    %7482 = vmatpush.bf16.msra.mxu0 %v6336
    %7483 = vmatmul.bf16.gmra.mxu0 %v4075
    %v7484 = vpop.f32.mrf.mxu0
    %v7485 = vadd.f32 %v7471, %v7484
    %v7486 = vpop.f32.mrf.mxu0
    %v7487 = vadd.f32 %v7473, %v7486
    %7488 = vdwg.mxu0
    %7489 = vmatpush.bf16.msra.mxu0 %v6396
    %7490 = vmatpush.bf16.msra.mxu0 %v6392
    %7491 = vmatpush.bf16.msra.mxu0 %v6388
    %7492 = vmatpush.bf16.msra.mxu0 %v6384
    %7493 = vmatpush.bf16.msra.mxu0 %v6380
    %7494 = vmatpush.bf16.msra.mxu0 %v6376
    %7495 = vmatpush.bf16.msra.mxu0 %v6372
    %7496 = vmatpush.bf16.msra.mxu0 %v6368
    %7497 = vmatmul.bf16.gmra.mxu0 %v4076
    %v7498 = vpop.f32.mrf.mxu0
    %v7499 = vadd.f32 %v7485, %v7498
    %v7500 = vpop.f32.mrf.mxu0
    %v7501 = vadd.f32 %v7487, %v7500
    %7502 = vdwg.mxu0
    %7503 = vmatpush.bf16.msra.mxu0 %v6428
    %7504 = vmatpush.bf16.msra.mxu0 %v6424
    %7505 = vmatpush.bf16.msra.mxu0 %v6420
    %7506 = vmatpush.bf16.msra.mxu0 %v6416
    %7507 = vmatpush.bf16.msra.mxu0 %v6412
    %7508 = vmatpush.bf16.msra.mxu0 %v6408
    %7509 = vmatpush.bf16.msra.mxu0 %v6404
    %7510 = vmatpush.bf16.msra.mxu0 %v6400
    %7511 = vmatmul.bf16.gmra.mxu0 %v4077
    %v7512 = vpop.f32.mrf.mxu0
    %v7513 = vadd.f32 %v7499, %v7512
    %v7514 = vpop.f32.mrf.mxu0
    %v7515 = vadd.f32 %v7501, %v7514
    %7516 = vdwg.mxu0
    %7517 = vmatpush.bf16.msra.mxu0 %v6460
    %7518 = vmatpush.bf16.msra.mxu0 %v6456
    %7519 = vmatpush.bf16.msra.mxu0 %v6452
    %7520 = vmatpush.bf16.msra.mxu0 %v6448
    %7521 = vmatpush.bf16.msra.mxu0 %v6444
    %7522 = vmatpush.bf16.msra.mxu0 %v6440
    %7523 = vmatpush.bf16.msra.mxu0 %v6436
    %7524 = vmatpush.bf16.msra.mxu0 %v6432
    %7525 = vmatmul.bf16.gmra.mxu0 %v4078
    %v7526 = vpop.f32.mrf.mxu0
    %v7527 = vadd.f32 %v7513, %v7526
    %v7528 = vpop.f32.mrf.mxu0
    %v7529 = vadd.f32 %v7515, %v7528
    %7530 = vdwg.mxu0
    %7531 = vmatpush.bf16.msra.mxu0 %v6492
    %7532 = vmatpush.bf16.msra.mxu0 %v6488
    %7533 = vmatpush.bf16.msra.mxu0 %v6484
    %7534 = vmatpush.bf16.msra.mxu0 %v6480
    %7535 = vmatpush.bf16.msra.mxu0 %v6476
    %7536 = vmatpush.bf16.msra.mxu0 %v6472
    %7537 = vmatpush.bf16.msra.mxu0 %v6468
    %7538 = vmatpush.bf16.msra.mxu0 %v6464
    %7539 = vmatmul.bf16.gmra.mxu0 %v4079
    %v7540 = vpop.f32.mrf.mxu0
    %v7541 = vadd.f32 %v7527, %v7540
    %v7542 = vpop.f32.mrf.mxu0
    %v7543 = vadd.f32 %v7529, %v7542
    %7544 = vdwg.mxu0
    %7545 = vmatpush.bf16.msra.mxu0 %v6524
    %7546 = vmatpush.bf16.msra.mxu0 %v6520
    %7547 = vmatpush.bf16.msra.mxu0 %v6516
    %7548 = vmatpush.bf16.msra.mxu0 %v6512
    %7549 = vmatpush.bf16.msra.mxu0 %v6508
    %7550 = vmatpush.bf16.msra.mxu0 %v6504
    %7551 = vmatpush.bf16.msra.mxu0 %v6500
    %7552 = vmatpush.bf16.msra.mxu0 %v6496
    %7553 = vmatmul.bf16.gmra.mxu0 %v4080
    %v7554 = vpop.f32.mrf.mxu0
    %v7555 = vadd.f32 %v7541, %v7554
    %v7556 = vpop.f32.mrf.mxu0
    %v7557 = vadd.f32 %v7543, %v7556
    %7558 = vdwg.mxu0
    %7559 = vmatpush.bf16.msra.mxu0 %v6556
    %7560 = vmatpush.bf16.msra.mxu0 %v6552
    %7561 = vmatpush.bf16.msra.mxu0 %v6548
    %7562 = vmatpush.bf16.msra.mxu0 %v6544
    %7563 = vmatpush.bf16.msra.mxu0 %v6540
    %7564 = vmatpush.bf16.msra.mxu0 %v6536
    %7565 = vmatpush.bf16.msra.mxu0 %v6532
    %7566 = vmatpush.bf16.msra.mxu0 %v6528
    %7567 = vmatmul.bf16.gmra.mxu0 %v4081
    %v7568 = vpop.f32.mrf.mxu0
    %v7569 = vadd.f32 %v7555, %v7568
    %v7570 = vpop.f32.mrf.mxu0
    %v7571 = vadd.f32 %v7557, %v7570
    %7572 = vdwg.mxu0
    %7573 = vmatpush.bf16.msra.mxu0 %v6588
    %7574 = vmatpush.bf16.msra.mxu0 %v6584
    %7575 = vmatpush.bf16.msra.mxu0 %v6580
    %7576 = vmatpush.bf16.msra.mxu0 %v6576
    %7577 = vmatpush.bf16.msra.mxu0 %v6572
    %7578 = vmatpush.bf16.msra.mxu0 %v6568
    %7579 = vmatpush.bf16.msra.mxu0 %v6564
    %7580 = vmatpush.bf16.msra.mxu0 %v6560
    %7581 = vmatmul.bf16.gmra.mxu0 %v4082
    %v7582 = vpop.f32.mrf.mxu0
    %v7583 = vadd.f32 %v7569, %v7582
    %v7584 = vpop.f32.mrf.mxu0
    %v7585 = vadd.f32 %v7571, %v7584
    %7586 = vdwg.mxu0
    %7587 = vmatpush.bf16.msra.mxu0 %v6620
    %7588 = vmatpush.bf16.msra.mxu0 %v6616
    %7589 = vmatpush.bf16.msra.mxu0 %v6612
    %7590 = vmatpush.bf16.msra.mxu0 %v6608
    %7591 = vmatpush.bf16.msra.mxu0 %v6604
    %7592 = vmatpush.bf16.msra.mxu0 %v6600
    %7593 = vmatpush.bf16.msra.mxu0 %v6596
    %7594 = vmatpush.bf16.msra.mxu0 %v6592
    %7595 = vmatmul.bf16.gmra.mxu0 %v4083
    %v7596 = vpop.f32.mrf.mxu0
    %v7597 = vadd.f32 %v7583, %v7596
    %v7598 = vpop.f32.mrf.mxu0
    %v7599 = vadd.f32 %v7585, %v7598
    %7600 = vdwg.mxu0
    %7601 = vmatpush.bf16.msra.mxu0 %v6652
    %7602 = vmatpush.bf16.msra.mxu0 %v6648
    %7603 = vmatpush.bf16.msra.mxu0 %v6644
    %7604 = vmatpush.bf16.msra.mxu0 %v6640
    %7605 = vmatpush.bf16.msra.mxu0 %v6636
    %7606 = vmatpush.bf16.msra.mxu0 %v6632
    %7607 = vmatpush.bf16.msra.mxu0 %v6628
    %7608 = vmatpush.bf16.msra.mxu0 %v6624
    %7609 = vmatmul.bf16.gmra.mxu0 %v4084
    %v7610 = vpop.f32.mrf.mxu0
    %v7611 = vadd.f32 %v7597, %v7610
    %v7612 = vpop.f32.mrf.mxu0
    %v7613 = vadd.f32 %v7599, %v7612
    %7614 = vdwg.mxu0
    %7615 = vmatpush.bf16.msra.mxu0 %v6173
    %7616 = vmatpush.bf16.msra.mxu0 %v6169
    %7617 = vmatpush.bf16.msra.mxu0 %v6165
    %7618 = vmatpush.bf16.msra.mxu0 %v6161
    %7619 = vmatpush.bf16.msra.mxu0 %v6157
    %7620 = vmatpush.bf16.msra.mxu0 %v6153
    %7621 = vmatpush.bf16.msra.mxu0 %v6149
    %7622 = vmatpush.bf16.msra.mxu0 %v6145
    %7623 = vmatmul.bf16.gmra.mxu0 %v4069
    %v7624 = vpop.f32.mrf.mxu0
    %v7625 = vadd.f32 %v4601, %v7624
    %v7626 = vpop.f32.mrf.mxu0
    %v7627 = vadd.f32 %v4601, %v7626
    %7628 = vdwg.mxu0
    %7629 = vmatpush.bf16.msra.mxu0 %v6205
    %7630 = vmatpush.bf16.msra.mxu0 %v6201
    %7631 = vmatpush.bf16.msra.mxu0 %v6197
    %7632 = vmatpush.bf16.msra.mxu0 %v6193
    %7633 = vmatpush.bf16.msra.mxu0 %v6189
    %7634 = vmatpush.bf16.msra.mxu0 %v6185
    %7635 = vmatpush.bf16.msra.mxu0 %v6181
    %7636 = vmatpush.bf16.msra.mxu0 %v6177
    %7637 = vmatmul.bf16.gmra.mxu0 %v4070
    %v7638 = vpop.f32.mrf.mxu0
    %v7639 = vadd.f32 %v7625, %v7638
    %v7640 = vpop.f32.mrf.mxu0
    %v7641 = vadd.f32 %v7627, %v7640
    %7642 = vdwg.mxu0
    %7643 = vmatpush.bf16.msra.mxu0 %v6237
    %7644 = vmatpush.bf16.msra.mxu0 %v6233
    %7645 = vmatpush.bf16.msra.mxu0 %v6229
    %7646 = vmatpush.bf16.msra.mxu0 %v6225
    %7647 = vmatpush.bf16.msra.mxu0 %v6221
    %7648 = vmatpush.bf16.msra.mxu0 %v6217
    %7649 = vmatpush.bf16.msra.mxu0 %v6213
    %7650 = vmatpush.bf16.msra.mxu0 %v6209
    %7651 = vmatmul.bf16.gmra.mxu0 %v4071
    %v7652 = vpop.f32.mrf.mxu0
    %v7653 = vadd.f32 %v7639, %v7652
    %v7654 = vpop.f32.mrf.mxu0
    %v7655 = vadd.f32 %v7641, %v7654
    %7656 = vdwg.mxu0
    %7657 = vmatpush.bf16.msra.mxu0 %v6269
    %7658 = vmatpush.bf16.msra.mxu0 %v6265
    %7659 = vmatpush.bf16.msra.mxu0 %v6261
    %7660 = vmatpush.bf16.msra.mxu0 %v6257
    %7661 = vmatpush.bf16.msra.mxu0 %v6253
    %7662 = vmatpush.bf16.msra.mxu0 %v6249
    %7663 = vmatpush.bf16.msra.mxu0 %v6245
    %7664 = vmatpush.bf16.msra.mxu0 %v6241
    %7665 = vmatmul.bf16.gmra.mxu0 %v4072
    %v7666 = vpop.f32.mrf.mxu0
    %v7667 = vadd.f32 %v7653, %v7666
    %v7668 = vpop.f32.mrf.mxu0
    %v7669 = vadd.f32 %v7655, %v7668
    %7670 = vdwg.mxu0
    %7671 = vmatpush.bf16.msra.mxu0 %v6301
    %7672 = vmatpush.bf16.msra.mxu0 %v6297
    %7673 = vmatpush.bf16.msra.mxu0 %v6293
    %7674 = vmatpush.bf16.msra.mxu0 %v6289
    %7675 = vmatpush.bf16.msra.mxu0 %v6285
    %7676 = vmatpush.bf16.msra.mxu0 %v6281
    %7677 = vmatpush.bf16.msra.mxu0 %v6277
    %7678 = vmatpush.bf16.msra.mxu0 %v6273
    %7679 = vmatmul.bf16.gmra.mxu0 %v4073
    %v7680 = vpop.f32.mrf.mxu0
    %v7681 = vadd.f32 %v7667, %v7680
    %v7682 = vpop.f32.mrf.mxu0
    %v7683 = vadd.f32 %v7669, %v7682
    %7684 = vdwg.mxu0
    %7685 = vmatpush.bf16.msra.mxu0 %v6333
    %7686 = vmatpush.bf16.msra.mxu0 %v6329
    %7687 = vmatpush.bf16.msra.mxu0 %v6325
    %7688 = vmatpush.bf16.msra.mxu0 %v6321
    %7689 = vmatpush.bf16.msra.mxu0 %v6317
    %7690 = vmatpush.bf16.msra.mxu0 %v6313
    %7691 = vmatpush.bf16.msra.mxu0 %v6309
    %7692 = vmatpush.bf16.msra.mxu0 %v6305
    %7693 = vmatmul.bf16.gmra.mxu0 %v4074
    %v7694 = vpop.f32.mrf.mxu0
    %v7695 = vadd.f32 %v7681, %v7694
    %v7696 = vpop.f32.mrf.mxu0
    %v7697 = vadd.f32 %v7683, %v7696
    %7698 = vdwg.mxu0
    %7699 = vmatpush.bf16.msra.mxu0 %v6365
    %7700 = vmatpush.bf16.msra.mxu0 %v6361
    %7701 = vmatpush.bf16.msra.mxu0 %v6357
    %7702 = vmatpush.bf16.msra.mxu0 %v6353
    %7703 = vmatpush.bf16.msra.mxu0 %v6349
    %7704 = vmatpush.bf16.msra.mxu0 %v6345
    %7705 = vmatpush.bf16.msra.mxu0 %v6341
    %7706 = vmatpush.bf16.msra.mxu0 %v6337
    %7707 = vmatmul.bf16.gmra.mxu0 %v4075
    %v7708 = vpop.f32.mrf.mxu0
    %v7709 = vadd.f32 %v7695, %v7708
    %v7710 = vpop.f32.mrf.mxu0
    %v7711 = vadd.f32 %v7697, %v7710
    %7712 = vdwg.mxu0
    %7713 = vmatpush.bf16.msra.mxu0 %v6397
    %7714 = vmatpush.bf16.msra.mxu0 %v6393
    %7715 = vmatpush.bf16.msra.mxu0 %v6389
    %7716 = vmatpush.bf16.msra.mxu0 %v6385
    %7717 = vmatpush.bf16.msra.mxu0 %v6381
    %7718 = vmatpush.bf16.msra.mxu0 %v6377
    %7719 = vmatpush.bf16.msra.mxu0 %v6373
    %7720 = vmatpush.bf16.msra.mxu0 %v6369
    %7721 = vmatmul.bf16.gmra.mxu0 %v4076
    %v7722 = vpop.f32.mrf.mxu0
    %v7723 = vadd.f32 %v7709, %v7722
    %v7724 = vpop.f32.mrf.mxu0
    %v7725 = vadd.f32 %v7711, %v7724
    %7726 = vdwg.mxu0
    %7727 = vmatpush.bf16.msra.mxu0 %v6429
    %7728 = vmatpush.bf16.msra.mxu0 %v6425
    %7729 = vmatpush.bf16.msra.mxu0 %v6421
    %7730 = vmatpush.bf16.msra.mxu0 %v6417
    %7731 = vmatpush.bf16.msra.mxu0 %v6413
    %7732 = vmatpush.bf16.msra.mxu0 %v6409
    %7733 = vmatpush.bf16.msra.mxu0 %v6405
    %7734 = vmatpush.bf16.msra.mxu0 %v6401
    %7735 = vmatmul.bf16.gmra.mxu0 %v4077
    %v7736 = vpop.f32.mrf.mxu0
    %v7737 = vadd.f32 %v7723, %v7736
    %v7738 = vpop.f32.mrf.mxu0
    %v7739 = vadd.f32 %v7725, %v7738
    %7740 = vdwg.mxu0
    %7741 = vmatpush.bf16.msra.mxu0 %v6461
    %7742 = vmatpush.bf16.msra.mxu0 %v6457
    %7743 = vmatpush.bf16.msra.mxu0 %v6453
    %7744 = vmatpush.bf16.msra.mxu0 %v6449
    %7745 = vmatpush.bf16.msra.mxu0 %v6445
    %7746 = vmatpush.bf16.msra.mxu0 %v6441
    %7747 = vmatpush.bf16.msra.mxu0 %v6437
    %7748 = vmatpush.bf16.msra.mxu0 %v6433
    %7749 = vmatmul.bf16.gmra.mxu0 %v4078
    %v7750 = vpop.f32.mrf.mxu0
    %v7751 = vadd.f32 %v7737, %v7750
    %v7752 = vpop.f32.mrf.mxu0
    %v7753 = vadd.f32 %v7739, %v7752
    %7754 = vdwg.mxu0
    %7755 = vmatpush.bf16.msra.mxu0 %v6493
    %7756 = vmatpush.bf16.msra.mxu0 %v6489
    %7757 = vmatpush.bf16.msra.mxu0 %v6485
    %7758 = vmatpush.bf16.msra.mxu0 %v6481
    %7759 = vmatpush.bf16.msra.mxu0 %v6477
    %7760 = vmatpush.bf16.msra.mxu0 %v6473
    %7761 = vmatpush.bf16.msra.mxu0 %v6469
    %7762 = vmatpush.bf16.msra.mxu0 %v6465
    %7763 = vmatmul.bf16.gmra.mxu0 %v4079
    %v7764 = vpop.f32.mrf.mxu0
    %v7765 = vadd.f32 %v7751, %v7764
    %v7766 = vpop.f32.mrf.mxu0
    %v7767 = vadd.f32 %v7753, %v7766
    %7768 = vdwg.mxu0
    %7769 = vmatpush.bf16.msra.mxu0 %v6525
    %7770 = vmatpush.bf16.msra.mxu0 %v6521
    %7771 = vmatpush.bf16.msra.mxu0 %v6517
    %7772 = vmatpush.bf16.msra.mxu0 %v6513
    %7773 = vmatpush.bf16.msra.mxu0 %v6509
    %7774 = vmatpush.bf16.msra.mxu0 %v6505
    %7775 = vmatpush.bf16.msra.mxu0 %v6501
    %7776 = vmatpush.bf16.msra.mxu0 %v6497
    %7777 = vmatmul.bf16.gmra.mxu0 %v4080
    %v7778 = vpop.f32.mrf.mxu0
    %v7779 = vadd.f32 %v7765, %v7778
    %v7780 = vpop.f32.mrf.mxu0
    %v7781 = vadd.f32 %v7767, %v7780
    %7782 = vdwg.mxu0
    %7783 = vmatpush.bf16.msra.mxu0 %v6557
    %7784 = vmatpush.bf16.msra.mxu0 %v6553
    %7785 = vmatpush.bf16.msra.mxu0 %v6549
    %7786 = vmatpush.bf16.msra.mxu0 %v6545
    %7787 = vmatpush.bf16.msra.mxu0 %v6541
    %7788 = vmatpush.bf16.msra.mxu0 %v6537
    %7789 = vmatpush.bf16.msra.mxu0 %v6533
    %7790 = vmatpush.bf16.msra.mxu0 %v6529
    %7791 = vmatmul.bf16.gmra.mxu0 %v4081
    %v7792 = vpop.f32.mrf.mxu0
    %v7793 = vadd.f32 %v7779, %v7792
    %v7794 = vpop.f32.mrf.mxu0
    %v7795 = vadd.f32 %v7781, %v7794
    %7796 = vdwg.mxu0
    %7797 = vmatpush.bf16.msra.mxu0 %v6589
    %7798 = vmatpush.bf16.msra.mxu0 %v6585
    %7799 = vmatpush.bf16.msra.mxu0 %v6581
    %7800 = vmatpush.bf16.msra.mxu0 %v6577
    %7801 = vmatpush.bf16.msra.mxu0 %v6573
    %7802 = vmatpush.bf16.msra.mxu0 %v6569
    %7803 = vmatpush.bf16.msra.mxu0 %v6565
    %7804 = vmatpush.bf16.msra.mxu0 %v6561
    %7805 = vmatmul.bf16.gmra.mxu0 %v4082
    %v7806 = vpop.f32.mrf.mxu0
    %v7807 = vadd.f32 %v7793, %v7806
    %v7808 = vpop.f32.mrf.mxu0
    %v7809 = vadd.f32 %v7795, %v7808
    %7810 = vdwg.mxu0
    %7811 = vmatpush.bf16.msra.mxu0 %v6621
    %7812 = vmatpush.bf16.msra.mxu0 %v6617
    %7813 = vmatpush.bf16.msra.mxu0 %v6613
    %7814 = vmatpush.bf16.msra.mxu0 %v6609
    %7815 = vmatpush.bf16.msra.mxu0 %v6605
    %7816 = vmatpush.bf16.msra.mxu0 %v6601
    %7817 = vmatpush.bf16.msra.mxu0 %v6597
    %7818 = vmatpush.bf16.msra.mxu0 %v6593
    %7819 = vmatmul.bf16.gmra.mxu0 %v4083
    %v7820 = vpop.f32.mrf.mxu0
    %v7821 = vadd.f32 %v7807, %v7820
    %v7822 = vpop.f32.mrf.mxu0
    %v7823 = vadd.f32 %v7809, %v7822
    %7824 = vdwg.mxu0
    %7825 = vmatpush.bf16.msra.mxu0 %v6653
    %7826 = vmatpush.bf16.msra.mxu0 %v6649
    %7827 = vmatpush.bf16.msra.mxu0 %v6645
    %7828 = vmatpush.bf16.msra.mxu0 %v6641
    %7829 = vmatpush.bf16.msra.mxu0 %v6637
    %7830 = vmatpush.bf16.msra.mxu0 %v6633
    %7831 = vmatpush.bf16.msra.mxu0 %v6629
    %7832 = vmatpush.bf16.msra.mxu0 %v6625
    %7833 = vmatmul.bf16.gmra.mxu0 %v4084
    %v7834 = vpop.f32.mrf.mxu0
    %v7835 = vadd.f32 %v7821, %v7834
    %v7836 = vpop.f32.mrf.mxu0
    %v7837 = vadd.f32 %v7823, %v7836
    %7838 = vdwg.mxu0
    %7839 = vmatpush.bf16.msra.mxu0 %v6174
    %7840 = vmatpush.bf16.msra.mxu0 %v6170
    %7841 = vmatpush.bf16.msra.mxu0 %v6166
    %7842 = vmatpush.bf16.msra.mxu0 %v6162
    %7843 = vmatpush.bf16.msra.mxu0 %v6158
    %7844 = vmatpush.bf16.msra.mxu0 %v6154
    %7845 = vmatpush.bf16.msra.mxu0 %v6150
    %7846 = vmatpush.bf16.msra.mxu0 %v6146
    %7847 = vmatmul.bf16.gmra.mxu0 %v4069
    %v7848 = vpop.f32.mrf.mxu0
    %v7849 = vadd.f32 %v4602, %v7848
    %v7850 = vpop.f32.mrf.mxu0
    %v7851 = vadd.f32 %v4602, %v7850
    %7852 = vdwg.mxu0
    %7853 = vmatpush.bf16.msra.mxu0 %v6206
    %7854 = vmatpush.bf16.msra.mxu0 %v6202
    %7855 = vmatpush.bf16.msra.mxu0 %v6198
    %7856 = vmatpush.bf16.msra.mxu0 %v6194
    %7857 = vmatpush.bf16.msra.mxu0 %v6190
    %7858 = vmatpush.bf16.msra.mxu0 %v6186
    %7859 = vmatpush.bf16.msra.mxu0 %v6182
    %7860 = vmatpush.bf16.msra.mxu0 %v6178
    %7861 = vmatmul.bf16.gmra.mxu0 %v4070
    %v7862 = vpop.f32.mrf.mxu0
    %v7863 = vadd.f32 %v7849, %v7862
    %v7864 = vpop.f32.mrf.mxu0
    %v7865 = vadd.f32 %v7851, %v7864
    %7866 = vdwg.mxu0
    %7867 = vmatpush.bf16.msra.mxu0 %v6238
    %7868 = vmatpush.bf16.msra.mxu0 %v6234
    %7869 = vmatpush.bf16.msra.mxu0 %v6230
    %7870 = vmatpush.bf16.msra.mxu0 %v6226
    %7871 = vmatpush.bf16.msra.mxu0 %v6222
    %7872 = vmatpush.bf16.msra.mxu0 %v6218
    %7873 = vmatpush.bf16.msra.mxu0 %v6214
    %7874 = vmatpush.bf16.msra.mxu0 %v6210
    %7875 = vmatmul.bf16.gmra.mxu0 %v4071
    %v7876 = vpop.f32.mrf.mxu0
    %v7877 = vadd.f32 %v7863, %v7876
    %v7878 = vpop.f32.mrf.mxu0
    %v7879 = vadd.f32 %v7865, %v7878
    %7880 = vdwg.mxu0
    %7881 = vmatpush.bf16.msra.mxu0 %v6270
    %7882 = vmatpush.bf16.msra.mxu0 %v6266
    %7883 = vmatpush.bf16.msra.mxu0 %v6262
    %7884 = vmatpush.bf16.msra.mxu0 %v6258
    %7885 = vmatpush.bf16.msra.mxu0 %v6254
    %7886 = vmatpush.bf16.msra.mxu0 %v6250
    %7887 = vmatpush.bf16.msra.mxu0 %v6246
    %7888 = vmatpush.bf16.msra.mxu0 %v6242
    %7889 = vmatmul.bf16.gmra.mxu0 %v4072
    %v7890 = vpop.f32.mrf.mxu0
    %v7891 = vadd.f32 %v7877, %v7890
    %v7892 = vpop.f32.mrf.mxu0
    %v7893 = vadd.f32 %v7879, %v7892
    %7894 = vdwg.mxu0
    %7895 = vmatpush.bf16.msra.mxu0 %v6302
    %7896 = vmatpush.bf16.msra.mxu0 %v6298
    %7897 = vmatpush.bf16.msra.mxu0 %v6294
    %7898 = vmatpush.bf16.msra.mxu0 %v6290
    %7899 = vmatpush.bf16.msra.mxu0 %v6286
    %7900 = vmatpush.bf16.msra.mxu0 %v6282
    %7901 = vmatpush.bf16.msra.mxu0 %v6278
    %7902 = vmatpush.bf16.msra.mxu0 %v6274
    %7903 = vmatmul.bf16.gmra.mxu0 %v4073
    %v7904 = vpop.f32.mrf.mxu0
    %v7905 = vadd.f32 %v7891, %v7904
    %v7906 = vpop.f32.mrf.mxu0
    %v7907 = vadd.f32 %v7893, %v7906
    %7908 = vdwg.mxu0
    %7909 = vmatpush.bf16.msra.mxu0 %v6334
    %7910 = vmatpush.bf16.msra.mxu0 %v6330
    %7911 = vmatpush.bf16.msra.mxu0 %v6326
    %7912 = vmatpush.bf16.msra.mxu0 %v6322
    %7913 = vmatpush.bf16.msra.mxu0 %v6318
    %7914 = vmatpush.bf16.msra.mxu0 %v6314
    %7915 = vmatpush.bf16.msra.mxu0 %v6310
    %7916 = vmatpush.bf16.msra.mxu0 %v6306
    %7917 = vmatmul.bf16.gmra.mxu0 %v4074
    %v7918 = vpop.f32.mrf.mxu0
    %v7919 = vadd.f32 %v7905, %v7918
    %v7920 = vpop.f32.mrf.mxu0
    %v7921 = vadd.f32 %v7907, %v7920
    %7922 = vdwg.mxu0
    %7923 = vmatpush.bf16.msra.mxu0 %v6366
    %7924 = vmatpush.bf16.msra.mxu0 %v6362
    %7925 = vmatpush.bf16.msra.mxu0 %v6358
    %7926 = vmatpush.bf16.msra.mxu0 %v6354
    %7927 = vmatpush.bf16.msra.mxu0 %v6350
    %7928 = vmatpush.bf16.msra.mxu0 %v6346
    %7929 = vmatpush.bf16.msra.mxu0 %v6342
    %7930 = vmatpush.bf16.msra.mxu0 %v6338
    %7931 = vmatmul.bf16.gmra.mxu0 %v4075
    %v7932 = vpop.f32.mrf.mxu0
    %v7933 = vadd.f32 %v7919, %v7932
    %v7934 = vpop.f32.mrf.mxu0
    %v7935 = vadd.f32 %v7921, %v7934
    %7936 = vdwg.mxu0
    %7937 = vmatpush.bf16.msra.mxu0 %v6398
    %7938 = vmatpush.bf16.msra.mxu0 %v6394
    %7939 = vmatpush.bf16.msra.mxu0 %v6390
    %7940 = vmatpush.bf16.msra.mxu0 %v6386
    %7941 = vmatpush.bf16.msra.mxu0 %v6382
    %7942 = vmatpush.bf16.msra.mxu0 %v6378
    %7943 = vmatpush.bf16.msra.mxu0 %v6374
    %7944 = vmatpush.bf16.msra.mxu0 %v6370
    %7945 = vmatmul.bf16.gmra.mxu0 %v4076
    %v7946 = vpop.f32.mrf.mxu0
    %v7947 = vadd.f32 %v7933, %v7946
    %v7948 = vpop.f32.mrf.mxu0
    %v7949 = vadd.f32 %v7935, %v7948
    %7950 = vdwg.mxu0
    %7951 = vmatpush.bf16.msra.mxu0 %v6430
    %7952 = vmatpush.bf16.msra.mxu0 %v6426
    %7953 = vmatpush.bf16.msra.mxu0 %v6422
    %7954 = vmatpush.bf16.msra.mxu0 %v6418
    %7955 = vmatpush.bf16.msra.mxu0 %v6414
    %7956 = vmatpush.bf16.msra.mxu0 %v6410
    %7957 = vmatpush.bf16.msra.mxu0 %v6406
    %7958 = vmatpush.bf16.msra.mxu0 %v6402
    %7959 = vmatmul.bf16.gmra.mxu0 %v4077
    %v7960 = vpop.f32.mrf.mxu0
    %v7961 = vadd.f32 %v7947, %v7960
    %v7962 = vpop.f32.mrf.mxu0
    %v7963 = vadd.f32 %v7949, %v7962
    %7964 = vdwg.mxu0
    %7965 = vmatpush.bf16.msra.mxu0 %v6462
    %7966 = vmatpush.bf16.msra.mxu0 %v6458
    %7967 = vmatpush.bf16.msra.mxu0 %v6454
    %7968 = vmatpush.bf16.msra.mxu0 %v6450
    %7969 = vmatpush.bf16.msra.mxu0 %v6446
    %7970 = vmatpush.bf16.msra.mxu0 %v6442
    %7971 = vmatpush.bf16.msra.mxu0 %v6438
    %7972 = vmatpush.bf16.msra.mxu0 %v6434
    %7973 = vmatmul.bf16.gmra.mxu0 %v4078
    %v7974 = vpop.f32.mrf.mxu0
    %v7975 = vadd.f32 %v7961, %v7974
    %v7976 = vpop.f32.mrf.mxu0
    %v7977 = vadd.f32 %v7963, %v7976
    %7978 = vdwg.mxu0
    %7979 = vmatpush.bf16.msra.mxu0 %v6494
    %7980 = vmatpush.bf16.msra.mxu0 %v6490
    %7981 = vmatpush.bf16.msra.mxu0 %v6486
    %7982 = vmatpush.bf16.msra.mxu0 %v6482
    %7983 = vmatpush.bf16.msra.mxu0 %v6478
    %7984 = vmatpush.bf16.msra.mxu0 %v6474
    %7985 = vmatpush.bf16.msra.mxu0 %v6470
    %7986 = vmatpush.bf16.msra.mxu0 %v6466
    %7987 = vmatmul.bf16.gmra.mxu0 %v4079
    %v7988 = vpop.f32.mrf.mxu0
    %v7989 = vadd.f32 %v7975, %v7988
    %v7990 = vpop.f32.mrf.mxu0
    %v7991 = vadd.f32 %v7977, %v7990
    %7992 = vdwg.mxu0
    %7993 = vmatpush.bf16.msra.mxu0 %v6526
    %7994 = vmatpush.bf16.msra.mxu0 %v6522
    %7995 = vmatpush.bf16.msra.mxu0 %v6518
    %7996 = vmatpush.bf16.msra.mxu0 %v6514
    %7997 = vmatpush.bf16.msra.mxu0 %v6510
    %7998 = vmatpush.bf16.msra.mxu0 %v6506
    %7999 = vmatpush.bf16.msra.mxu0 %v6502
    %8000 = vmatpush.bf16.msra.mxu0 %v6498
    %8001 = vmatmul.bf16.gmra.mxu0 %v4080
    %v8002 = vpop.f32.mrf.mxu0
    %v8003 = vadd.f32 %v7989, %v8002
    %v8004 = vpop.f32.mrf.mxu0
    %v8005 = vadd.f32 %v7991, %v8004
    %8006 = vdwg.mxu0
    %8007 = vmatpush.bf16.msra.mxu0 %v6558
    %8008 = vmatpush.bf16.msra.mxu0 %v6554
    %8009 = vmatpush.bf16.msra.mxu0 %v6550
    %8010 = vmatpush.bf16.msra.mxu0 %v6546
    %8011 = vmatpush.bf16.msra.mxu0 %v6542
    %8012 = vmatpush.bf16.msra.mxu0 %v6538
    %8013 = vmatpush.bf16.msra.mxu0 %v6534
    %8014 = vmatpush.bf16.msra.mxu0 %v6530
    %8015 = vmatmul.bf16.gmra.mxu0 %v4081
    %v8016 = vpop.f32.mrf.mxu0
    %v8017 = vadd.f32 %v8003, %v8016
    %v8018 = vpop.f32.mrf.mxu0
    %v8019 = vadd.f32 %v8005, %v8018
    %8020 = vdwg.mxu0
    %8021 = vmatpush.bf16.msra.mxu0 %v6590
    %8022 = vmatpush.bf16.msra.mxu0 %v6586
    %8023 = vmatpush.bf16.msra.mxu0 %v6582
    %8024 = vmatpush.bf16.msra.mxu0 %v6578
    %8025 = vmatpush.bf16.msra.mxu0 %v6574
    %8026 = vmatpush.bf16.msra.mxu0 %v6570
    %8027 = vmatpush.bf16.msra.mxu0 %v6566
    %8028 = vmatpush.bf16.msra.mxu0 %v6562
    %8029 = vmatmul.bf16.gmra.mxu0 %v4082
    %v8030 = vpop.f32.mrf.mxu0
    %v8031 = vadd.f32 %v8017, %v8030
    %v8032 = vpop.f32.mrf.mxu0
    %v8033 = vadd.f32 %v8019, %v8032
    %8034 = vdwg.mxu0
    %8035 = vmatpush.bf16.msra.mxu0 %v6622
    %8036 = vmatpush.bf16.msra.mxu0 %v6618
    %8037 = vmatpush.bf16.msra.mxu0 %v6614
    %8038 = vmatpush.bf16.msra.mxu0 %v6610
    %8039 = vmatpush.bf16.msra.mxu0 %v6606
    %8040 = vmatpush.bf16.msra.mxu0 %v6602
    %8041 = vmatpush.bf16.msra.mxu0 %v6598
    %8042 = vmatpush.bf16.msra.mxu0 %v6594
    %8043 = vmatmul.bf16.gmra.mxu0 %v4083
    %v8044 = vpop.f32.mrf.mxu0
    %v8045 = vadd.f32 %v8031, %v8044
    %v8046 = vpop.f32.mrf.mxu0
    %v8047 = vadd.f32 %v8033, %v8046
    %8048 = vdwg.mxu0
    %8049 = vmatpush.bf16.msra.mxu0 %v6654
    %8050 = vmatpush.bf16.msra.mxu0 %v6650
    %8051 = vmatpush.bf16.msra.mxu0 %v6646
    %8052 = vmatpush.bf16.msra.mxu0 %v6642
    %8053 = vmatpush.bf16.msra.mxu0 %v6638
    %8054 = vmatpush.bf16.msra.mxu0 %v6634
    %8055 = vmatpush.bf16.msra.mxu0 %v6630
    %8056 = vmatpush.bf16.msra.mxu0 %v6626
    %8057 = vmatmul.bf16.gmra.mxu0 %v4084
    %v8058 = vpop.f32.mrf.mxu0
    %v8059 = vadd.f32 %v8045, %v8058
    %v8060 = vpop.f32.mrf.mxu0
    %v8061 = vadd.f32 %v8047, %v8060
    %8062 = vdwg.mxu0
    %8063 = vst [vmem:[#allocation2] sm:$0xff] %v7387
    %8064 = vst [vmem:[#allocation2 + $0x8] sm:$0xff] %v7611
    %8065 = vst [vmem:[#allocation2 + $0x10] sm:$0xff] %v7835
    %8066 = vst [vmem:[#allocation2 + $0x18] sm:$0xff] %v8059
    %8067 = vst [vmem:[#allocation2 + $0x20] sm:$0xff] %v7389
    %8068 = vst [vmem:[#allocation2 + $0x28] sm:$0xff] %v7613
    %8069 = vst [vmem:[#allocation2 + $0x30] sm:$0xff] %v7837
    %8070 = vst [vmem:[#allocation2 + $0x38] sm:$0xff] %v8061
    // Predicated region
    $region22: #{position_wise_feed_forward.1} parent=1 // pred_check
      _
    $region23: #{position_wise_feed_forward.1} parent=1 // pred_check_branch
      %8072 = sbr.rel (0) target = $region25
    $region24: #{position_wise_feed_forward.1} parent=1 // pred_region
      %8074 = vsyncadd [#allocation3], 0
      %s8075 = sshll.u32 [#allocation2], 4
      %s8076 = int_to_ptr.vmem [resolvable:$true] %s8075
      %s8077 = sshll.u32 %s5, 4
      %s8078 = int_to_ptr.hbm [resolvable:$true] %s8077
      %8083 = dma.vmem_to_hbm [thread:$0]  %s8076, 1024, %s8078, [#allocation3], 512, 512, 32
    $region25: #{position_wise_feed_forward.1} parent=1 // pred_fallthru
      _
    // Predicated region
    $region26: #{position_wise_feed_forward.1} parent=1 // pred_check
      _
    $region27: #{position_wise_feed_forward.1} parent=1 // pred_check_branch
      %8085 = sbr.rel (0) target = $region29
    $region28: #{position_wise_feed_forward.1} parent=1 // pred_region
      %8087 = dma.done [#allocation3], 1024
    $region29: #{position_wise_feed_forward.1} parent=1 // pred_fallthru
      _
    %8088 = vsyncpa [#allocation3], 1

</llo_original>
